<compile_context>
chip_gen: v7x
topology: tpu7x:2x2x1
jax: 0.10.0
libtpu: 0.0.40
codegen_flags: <defaults>
</compile_context>

<pallas_src>
import jax
import jax.numpy as jnp
from jax import lax
from jax.experimental import pallas as pl
from jax.experimental.pallas import tpu as pltpu


def resblock_kernel(xp_ref, w1_ref, b1_ref, w2_ref, b2_ref, o_ref, ypad_ref):
    # xp_ref  : (1, H+2, W+2, Cp)  spatially padded, channel-padded input
    # w*_ref  : (9*Cp, Cp)         im2col weights: row (dy*3+dx)*Cp + cin, col cout
    # b*_ref  : (1, Cp)
    # o_ref   : (1, H, W, Cp)
    # ypad_ref: VMEM scratch (H+2, W+2, Cp) f32 (padded conv1 output)
    H, W, Cp = o_ref.shape[1], o_ref.shape[2], o_ref.shape[3]

    xp = xp_ref[0]                                   # (H+2, W+2, Cp)

    def im2col(src):
        # 9 shifted 3-D windows concatenated on the dense lane axis, then one
        # leading-dim collapse -> (H*W, 9*Cp) patch slab (single relayout).
        taps = [src[dy:dy + H, dx:dx + W, :]
                for dy in range(3) for dx in range(3)]
        return jnp.concatenate(taps, axis=-1).reshape(H * W, 9 * Cp)

    # ---- conv1 + bias + ReLU: a single MXU matmul with K = 9*Cp ----
    slab1 = im2col(xp)                               # (H*W, 9*Cp)
    y1 = jnp.dot(slab1, w1_ref[...], preferred_element_type=jnp.float32)
    y1 = jnp.maximum(y1 + b1_ref[...], 0.0).reshape(H, W, Cp)

    # ---- padded intermediate: zero only the 1-px border, write the interior ----
    zrow = jnp.zeros((1, W + 2, Cp), jnp.float32)
    zcol = jnp.zeros((H, 1, Cp), jnp.float32)
    ypad_ref[0:1, :, :] = zrow
    ypad_ref[H + 1:H + 2, :, :] = zrow
    ypad_ref[1:H + 1, 0:1, :] = zcol
    ypad_ref[1:H + 1, W + 1:W + 2, :] = zcol
    ypad_ref[1:H + 1, 1:W + 1, :] = y1

    # ---- conv2 + bias: a single MXU matmul ----
    slab2 = im2col(ypad_ref[...])
    y2 = jnp.dot(slab2, w2_ref[...], preferred_element_type=jnp.float32)
    y2 = y2 + b2_ref[...]                            # (H*W, Cp)

    # ---- residual add + ReLU ----
    # centre tap (dy=1, dx=1) of slab1 == unpadded x; lane-aligned slice.
    resid = slab1[:, 4 * Cp:5 * Cp]                  # (H*W, Cp)
    o_ref[0] = jnp.maximum(resid + y2, 0.0).reshape(H, W, Cp).astype(o_ref.dtype)


def residual_block_pallas(x_nchw, w1, b1, w2, b2):
    """x_nchw: (N, C, H, W) f32; w*: (C, C, 3, 3) PyTorch OIHW; b*: (C,)."""
    N, C, H, W = x_nchw.shape
    Cp = ((C + 127) // 128) * 128                    # lane-dense channel axis

    # Glue (wrapper, runs in XLA): NCHW -> NHWC, pad channels to Cp, halo of 1.
    x = jnp.transpose(x_nchw, (0, 2, 3, 1))                           # (N,H,W,C)
    x = jnp.pad(x, ((0, 0), (1, 1), (1, 1), (0, Cp - C)))             # (N,H+2,W+2,Cp)

    def prep_w(w):
        # OIHW -> (kh, kw, Cin, Cout) -> pad channels -> (9*Cp, Cp) im2col slab.
        wt = jnp.transpose(w, (2, 3, 1, 0))
        wt = jnp.pad(wt, ((0, 0), (0, 0), (0, Cp - C), (0, Cp - C)))
        return wt.reshape(9 * Cp, Cp)

    def prep_b(b):
        return jnp.pad(b, (0, Cp - C)).reshape(1, Cp)

    w1k, w2k = prep_w(w1), prep_w(w2)
    b1r, b2r = prep_b(b1), prep_b(b2)

    out_nhwc = pl.pallas_call(
        resblock_kernel,
        out_shape=jax.ShapeDtypeStruct((N, H, W, Cp), x_nchw.dtype),
        grid=(N,),
        in_specs=[
            pl.BlockSpec((1, H + 2, W + 2, Cp), lambda b: (b, 0, 0, 0)),
            pl.BlockSpec((9 * Cp, Cp), lambda b: (0, 0)),
            pl.BlockSpec((1, Cp), lambda b: (0, 0)),
            pl.BlockSpec((9 * Cp, Cp), lambda b: (0, 0)),
            pl.BlockSpec((1, Cp), lambda b: (0, 0)),
        ],
        out_specs=pl.BlockSpec((1, H, W, Cp), lambda b: (b, 0, 0, 0)),
        scratch_shapes=[pltpu.VMEM((H + 2, W + 2, Cp), jnp.float32)],
        compiler_params=pltpu.CompilerParams(
            dimension_semantics=("parallel",),
            vmem_limit_bytes=64 * 1024 * 1024),
    )(x, w1k, b1r, w2k, b2r)

    out_nhwc = out_nhwc[..., :C]                                      # drop channel pad
    return jnp.transpose(out_nhwc, (0, 3, 1, 2))                      # back to NCHW


def residual_block_ref(x, w1, b1, w2, b2):
    dn = ("NCHW", "OIHW", "NCHW")
    y = lax.conv_general_dilated(x, w1, (1, 1), "SAME", dimension_numbers=dn)
    y = jnp.maximum(y + b1[None, :, None, None], 0.0)
    y = lax.conv_general_dilated(y, w2, (1, 1), "SAME", dimension_numbers=dn)
    y = y + b2[None, :, None, None]
    return jnp.maximum(x + y, 0.0)


if __name__ == "__main__":
    key = jax.random.PRNGKey(0)
    k_x, k_w1, k_b1, k_w2, k_b2 = jax.random.split(key, 5)

    N, C, H, W = 2, 4, 16, 16
    x = jax.random.normal(k_x, (N, C, H, W), dtype=jnp.float32)
    # Deterministic parameters (shapes match nn.Conv2d(C, C, 3, padding=1)).
    w1 = jax.random.normal(k_w1, (C, C, 3, 3), dtype=jnp.float32) * 0.1
    b1 = jax.random.normal(k_b1, (C,), dtype=jnp.float32) * 0.1
    w2 = jax.random.normal(k_w2, (C, C, 3, 3), dtype=jnp.float32) * 0.1
    b2 = jax.random.normal(k_b2, (C,), dtype=jnp.float32) * 0.1

    out = residual_block_pallas(x, w1, b1, w2, b2)
    out = jax.block_until_ready(out)

    ref = jax.block_until_ready(residual_block_ref(x, w1, b1, w2, b2))
    assert out.shape == (N, C, H, W)
    assert jnp.allclose(out, ref, atol=1e-4, rtol=1e-4), \
        f"max abs err = {jnp.max(jnp.abs(out - ref))}"

    print("KERNEL_OK")
</pallas_src>

<mosaic_0001>
module attributes {stable_mosaic.version = 11 : i64} {
  func.func @resblock_kernel(%arg0: i32, %arg1: memref<1x18x18x128xf32, #tpu.memory_space<vmem>>, %arg2: memref<1152x128xf32, #tpu.memory_space<vmem>>, %arg3: memref<1x128xf32, #tpu.memory_space<vmem>>, %arg4: memref<1152x128xf32, #tpu.memory_space<vmem>>, %arg5: memref<1x128xf32, #tpu.memory_space<vmem>>, %arg6: memref<1x16x16x128xf32, #tpu.memory_space<vmem>>, %arg7: memref<18x18x128xf32, #tpu.memory_space<vmem>>) attributes {dimension_semantics = [#tpu.dimension_semantics<parallel>], iteration_bounds = array<i64: 2>, scalar_prefetch = 0 : i64, scratch_operands = 1 : i64, tpu.core_type = #tpu.core_type<tc>, window_params = [{transform_indices = @transform_0, window_bounds = array<i64: 1, 18, 18, 128>}, {pipeline_mode = #tpu.pipeline_mode<synchronous>, transform_indices = @transform_1, window_bounds = array<i64: 1152, 128>}, {pipeline_mode = #tpu.pipeline_mode<synchronous>, transform_indices = @transform_2, window_bounds = array<i64: 1, 128>}, {pipeline_mode = #tpu.pipeline_mode<synchronous>, transform_indices = @transform_3, window_bounds = array<i64: 1152, 128>}, {pipeline_mode = #tpu.pipeline_mode<synchronous>, transform_indices = @transform_4, window_bounds = array<i64: 1, 128>}, {transform_indices = @transform_5, window_bounds = array<i64: 1, 16, 16, 128>}]} {
    %c0 = arith.constant 0 : index
    %c0_0 = arith.constant 0 : index
    %c0_1 = arith.constant 0 : index
    %c0_2 = arith.constant 0 : index
    %0 = vector.load %arg1[%c0, %c0_0, %c0_1, %c0_2] : memref<1x18x18x128xf32, #tpu.memory_space<vmem>>, vector<1x18x18x128xf32>
    %1 = vector.shape_cast %0 : vector<1x18x18x128xf32> to vector<18x18x128xf32>
    %2 = vector.extract_strided_slice %1 {offsets = [0, 0, 0], sizes = [16, 16, 128], strides = [1, 1, 1]} : vector<18x18x128xf32> to vector<16x16x128xf32>
    %3 = vector.extract_strided_slice %1 {offsets = [0, 1, 0], sizes = [16, 16, 128], strides = [1, 1, 1]} : vector<18x18x128xf32> to vector<16x16x128xf32>
    %4 = vector.extract_strided_slice %1 {offsets = [0, 2, 0], sizes = [16, 16, 128], strides = [1, 1, 1]} : vector<18x18x128xf32> to vector<16x16x128xf32>
    %5 = vector.extract_strided_slice %1 {offsets = [1, 0, 0], sizes = [16, 16, 128], strides = [1, 1, 1]} : vector<18x18x128xf32> to vector<16x16x128xf32>
    %6 = vector.extract_strided_slice %1 {offsets = [1, 1, 0], sizes = [16, 16, 128], strides = [1, 1, 1]} : vector<18x18x128xf32> to vector<16x16x128xf32>
    %7 = vector.extract_strided_slice %1 {offsets = [1, 2, 0], sizes = [16, 16, 128], strides = [1, 1, 1]} : vector<18x18x128xf32> to vector<16x16x128xf32>
    %8 = vector.extract_strided_slice %1 {offsets = [2, 0, 0], sizes = [16, 16, 128], strides = [1, 1, 1]} : vector<18x18x128xf32> to vector<16x16x128xf32>
    %9 = vector.extract_strided_slice %1 {offsets = [2, 1, 0], sizes = [16, 16, 128], strides = [1, 1, 1]} : vector<18x18x128xf32> to vector<16x16x128xf32>
    %10 = vector.extract_strided_slice %1 {offsets = [2, 2, 0], sizes = [16, 16, 128], strides = [1, 1, 1]} : vector<18x18x128xf32> to vector<16x16x128xf32>
    %11 = tpu.concatenate %2, %3, %4, %5, %6, %7, %8, %9, %10 in 2 : vector<16x16x128xf32>, vector<16x16x128xf32>, vector<16x16x128xf32>, vector<16x16x128xf32>, vector<16x16x128xf32>, vector<16x16x128xf32>, vector<16x16x128xf32>, vector<16x16x128xf32>, vector<16x16x128xf32> -> vector<16x16x1152xf32>
    %12 = vector.shape_cast %11 : vector<16x16x1152xf32> to vector<256x1152xf32>
    %c0_3 = arith.constant 0 : index
    %c0_4 = arith.constant 0 : index
    %13 = vector.load %arg2[%c0_3, %c0_4] : memref<1152x128xf32, #tpu.memory_space<vmem>>, vector<1152x128xf32>
    %cst = arith.constant dense<0.000000e+00> : vector<256x128xf32>
    %14 = tpu.matmul %12, %13, %cst {dimension_numbers = #tpu.dot_dimension_numbers<[1], [0], [0], [1], [0, 0, 1, 1], [], []>} : vector<256x1152xf32>, vector<1152x128xf32>, vector<256x128xf32> -> vector<256x128xf32>
    %c0_5 = arith.constant 0 : index
    %c0_6 = arith.constant 0 : index
    %15 = vector.load %arg3[%c0_5, %c0_6] : memref<1x128xf32, #tpu.memory_space<vmem>>, vector<1x128xf32>
    %16 = vector.broadcast %15 : vector<1x128xf32> to vector<256x128xf32>
    %17 = arith.addf %14, %16 : vector<256x128xf32>
    %cst_7 = arith.constant 0.000000e+00 : f32
    %18 = vector.broadcast %cst_7 : f32 to vector<256x128xf32>
    %19 = arith.maximumf %17, %18 : vector<256x128xf32>
    %20 = vector.shape_cast %19 : vector<256x128xf32> to vector<16x16x128xf32>
    %cst_8 = arith.constant 0.000000e+00 : f32
    %21 = vector.broadcast %cst_8 : f32 to vector<1x18x128xf32>
    %cst_9 = arith.constant 0.000000e+00 : f32
    %22 = vector.broadcast %cst_9 : f32 to vector<16x1x128xf32>
    %c0_10 = arith.constant 0 : index
    %c0_11 = arith.constant 0 : index
    %c0_12 = arith.constant 0 : index
    %23 = vector.load %arg7[%c0_10, %c0_11, %c0_12] : memref<18x18x128xf32, #tpu.memory_space<vmem>>, vector<1x18x128xf32>
    tpu.vector_store %arg7[%c0_10, %c0_11, %c0_12], %21 {strides = array<i32>} : memref<18x18x128xf32, #tpu.memory_space<vmem>>, vector<1x18x128xf32>,
    %c17 = arith.constant 17 : index
    %c0_13 = arith.constant 0 : index
    %c0_14 = arith.constant 0 : index
    %24 = vector.load %arg7[%c17, %c0_13, %c0_14] : memref<18x18x128xf32, #tpu.memory_space<vmem>>, vector<1x18x128xf32>
    tpu.vector_store %arg7[%c17, %c0_13, %c0_14], %21 {strides = array<i32>} : memref<18x18x128xf32, #tpu.memory_space<vmem>>, vector<1x18x128xf32>,
    %c1 = arith.constant 1 : index
    %c0_15 = arith.constant 0 : index
    %c0_16 = arith.constant 0 : index
    %25 = vector.load %arg7[%c1, %c0_15, %c0_16] : memref<18x18x128xf32, #tpu.memory_space<vmem>>, vector<16x1x128xf32>
    tpu.vector_store %arg7[%c1, %c0_15, %c0_16], %22 {strides = array<i32>} : memref<18x18x128xf32, #tpu.memory_space<vmem>>, vector<16x1x128xf32>,
    %c1_17 = arith.constant 1 : index
    %c17_18 = arith.constant 17 : index
    %c0_19 = arith.constant 0 : index
    %26 = vector.load %arg7[%c1_17, %c17_18, %c0_19] : memref<18x18x128xf32, #tpu.memory_space<vmem>>, vector<16x1x128xf32>
    tpu.vector_store %arg7[%c1_17, %c17_18, %c0_19], %22 {strides = array<i32>} : memref<18x18x128xf32, #tpu.memory_space<vmem>>, vector<16x1x128xf32>,
    %c1_20 = arith.constant 1 : index
    %c1_21 = arith.constant 1 : index
    %c0_22 = arith.constant 0 : index
    %27 = vector.load %arg7[%c1_20, %c1_21, %c0_22] : memref<18x18x128xf32, #tpu.memory_space<vmem>>, vector<16x16x128xf32>
    tpu.vector_store %arg7[%c1_20, %c1_21, %c0_22], %20 {strides = array<i32>} : memref<18x18x128xf32, #tpu.memory_space<vmem>>, vector<16x16x128xf32>,
    %c0_23 = arith.constant 0 : index
    %c0_24 = arith.constant 0 : index
    %c0_25 = arith.constant 0 : index
    %28 = vector.load %arg7[%c0_23, %c0_24, %c0_25] : memref<18x18x128xf32, #tpu.memory_space<vmem>>, vector<18x18x128xf32>
    %29 = vector.extract_strided_slice %28 {offsets = [0, 0, 0], sizes = [16, 16, 128], strides = [1, 1, 1]} : vector<18x18x128xf32> to vector<16x16x128xf32>
    %30 = vector.extract_strided_slice %28 {offsets = [0, 1, 0], sizes = [16, 16, 128], strides = [1, 1, 1]} : vector<18x18x128xf32> to vector<16x16x128xf32>
    %31 = vector.extract_strided_slice %28 {offsets = [0, 2, 0], sizes = [16, 16, 128], strides = [1, 1, 1]} : vector<18x18x128xf32> to vector<16x16x128xf32>
    %32 = vector.extract_strided_slice %28 {offsets = [1, 0, 0], sizes = [16, 16, 128], strides = [1, 1, 1]} : vector<18x18x128xf32> to vector<16x16x128xf32>
    %33 = vector.extract_strided_slice %28 {offsets = [1, 1, 0], sizes = [16, 16, 128], strides = [1, 1, 1]} : vector<18x18x128xf32> to vector<16x16x128xf32>
    %34 = vector.extract_strided_slice %28 {offsets = [1, 2, 0], sizes = [16, 16, 128], strides = [1, 1, 1]} : vector<18x18x128xf32> to vector<16x16x128xf32>
    %35 = vector.extract_strided_slice %28 {offsets = [2, 0, 0], sizes = [16, 16, 128], strides = [1, 1, 1]} : vector<18x18x128xf32> to vector<16x16x128xf32>
    %36 = vector.extract_strided_slice %28 {offsets = [2, 1, 0], sizes = [16, 16, 128], strides = [1, 1, 1]} : vector<18x18x128xf32> to vector<16x16x128xf32>
    %37 = vector.extract_strided_slice %28 {offsets = [2, 2, 0], sizes = [16, 16, 128], strides = [1, 1, 1]} : vector<18x18x128xf32> to vector<16x16x128xf32>
    %38 = tpu.concatenate %29, %30, %31, %32, %33, %34, %35, %36, %37 in 2 : vector<16x16x128xf32>, vector<16x16x128xf32>, vector<16x16x128xf32>, vector<16x16x128xf32>, vector<16x16x128xf32>, vector<16x16x128xf32>, vector<16x16x128xf32>, vector<16x16x128xf32>, vector<16x16x128xf32> -> vector<16x16x1152xf32>
    %39 = vector.shape_cast %38 : vector<16x16x1152xf32> to vector<256x1152xf32>
    %c0_26 = arith.constant 0 : index
    %c0_27 = arith.constant 0 : index
    %40 = vector.load %arg4[%c0_26, %c0_27] : memref<1152x128xf32, #tpu.memory_space<vmem>>, vector<1152x128xf32>
    %cst_28 = arith.constant dense<0.000000e+00> : vector<256x128xf32>
    %41 = tpu.matmul %39, %40, %cst_28 {dimension_numbers = #tpu.dot_dimension_numbers<[1], [0], [0], [1], [0, 0, 1, 1], [], []>} : vector<256x1152xf32>, vector<1152x128xf32>, vector<256x128xf32> -> vector<256x128xf32>
    %c0_29 = arith.constant 0 : index
    %c0_30 = arith.constant 0 : index
    %42 = vector.load %arg5[%c0_29, %c0_30] : memref<1x128xf32, #tpu.memory_space<vmem>>, vector<1x128xf32>
    %43 = vector.broadcast %42 : vector<1x128xf32> to vector<256x128xf32>
    %44 = arith.addf %41, %43 : vector<256x128xf32>
    %45 = vector.extract_strided_slice %12 {offsets = [0, 512], sizes = [256, 128], strides = [1, 1]} : vector<256x1152xf32> to vector<256x128xf32>
    %46 = arith.addf %45, %44 : vector<256x128xf32>
    %cst_31 = arith.constant 0.000000e+00 : f32
    %47 = vector.broadcast %cst_31 : f32 to vector<256x128xf32>
    %48 = arith.maximumf %46, %47 : vector<256x128xf32>
    %49 = vector.shape_cast %48 : vector<256x128xf32> to vector<16x16x128xf32>
    %c0_32 = arith.constant 0 : index
    %c0_33 = arith.constant 0 : index
    %c0_34 = arith.constant 0 : index
    %c0_35 = arith.constant 0 : index
    %50 = vector.load %arg6[%c0_32, %c0_33, %c0_34, %c0_35] : memref<1x16x16x128xf32, #tpu.memory_space<vmem>>, vector<1x16x16x128xf32>
    %51 = vector.shape_cast %50 : vector<1x16x16x128xf32> to vector<16x16x128xf32>
    %52 = vector.shape_cast %49 : vector<16x16x128xf32> to vector<1x16x16x128xf32>
    tpu.vector_store %arg6[%c0_32, %c0_33, %c0_34, %c0_35], %52 {strides = array<i32>} : memref<1x16x16x128xf32, #tpu.memory_space<vmem>>, vector<1x16x16x128xf32>,
    return
  }
  func.func @transform_0(%arg0: i32) -> (i32, i32, i32, i32) {
    %c0_i32 = arith.constant 0 : i32
    %c0_i32_0 = arith.constant 0 : i32
    %c0_i32_1 = arith.constant 0 : i32
    %c0_i32_2 = arith.constant 0 : i32
    return %arg0, %c0_i32, %c0_i32_0, %c0_i32_1 : i32, i32, i32, i32
  }
  func.func @transform_1(%arg0: i32) -> (i32, i32) {
    %c0_i32 = arith.constant 0 : i32
    %c0_i32_0 = arith.constant 0 : i32
    %c0_i32_1 = arith.constant 0 : i32
    return %c0_i32, %c0_i32_0 : i32, i32
  }
  func.func @transform_2(%arg0: i32) -> (i32, i32) {
    %c0_i32 = arith.constant 0 : i32
    %c0_i32_0 = arith.constant 0 : i32
    %c0_i32_1 = arith.constant 0 : i32
    return %c0_i32, %c0_i32_0 : i32, i32
  }
  func.func @transform_3(%arg0: i32) -> (i32, i32) {
    %c0_i32 = arith.constant 0 : i32
    %c0_i32_0 = arith.constant 0 : i32
    %c0_i32_1 = arith.constant 0 : i32
    return %c0_i32, %c0_i32_0 : i32, i32
  }
  func.func @transform_4(%arg0: i32) -> (i32, i32) {
    %c0_i32 = arith.constant 0 : i32
    %c0_i32_0 = arith.constant 0 : i32
    %c0_i32_1 = arith.constant 0 : i32
    return %c0_i32, %c0_i32_0 : i32, i32
  }
  func.func @transform_5(%arg0: i32) -> (i32, i32, i32, i32) {
    %c0_i32 = arith.constant 0 : i32
    %c0_i32_0 = arith.constant 0 : i32
    %c0_i32_1 = arith.constant 0 : i32
    %c0_i32_2 = arith.constant 0 : i32
    return %arg0, %c0_i32, %c0_i32_0, %c0_i32_1 : i32, i32, i32, i32
  }
}

</mosaic_0001>

<llo_original>
// kernel: tpu_custom_call.1
$region0: #{tpu_custom_call.1}
  #allocation0 [shape = 'u32[]', space=smem, size = 0x4, offset = 0x4, fixed_abs, tag = 'smem constant byte address 0x4 - core index']
  #allocation1 [shape = 'u32[144,128]{1,0:T(1,128)}', space=vmem, size = 0x12000, scoped, tag = 'internal scratch']
  #allocation2 [shape = 'f32[18,18,128]{2,1,0:T(8,128)}', space=vmem, size = 0x36000, scoped, tag = 'scratch operand']
  %s0 = inlined_call_operand.hbm [shape: f32[2,18,18,128], index: 0, kind: input, shape index: {}]
  %s1 = inlined_call_operand.hbm [shape: f32[1152,128], index: 1, kind: input, shape index: {}]
  %s2 = inlined_call_operand.hbm [shape: f32[1,128], index: 2, kind: input, shape index: {}]
  %s3 = inlined_call_operand.hbm [shape: f32[1152,128], index: 3, kind: input, shape index: {}]
  %s4 = inlined_call_operand.hbm [shape: f32[1,128], index: 4, kind: input, shape index: {}]
  %s5 = inlined_call_operand.hbm [shape: f32[2,16,16,128], index: 5, kind: output, shape index: {}]
  %s6 = sld [smem:[#allocation0]]
  $region73: #{tpu_custom_call.1} parent=0
    _
  %s8 = ssub.s32 1, %s6
  %s9 = scalar_select 0, %s8, %s6
  $region1: #{tpu_custom_call.1} parent=0
    #allocation3 [shape = 'u8[442368]{0}', space=vmem, size = 0x6c000, scoped, tag = 'input window, operand 0']
    #allocation4 [shape = 's32[2]{0}', space=sflag, size = 0x8, scoped, tag = 'scoped memory for tpu_custom_call.1']
    #allocation5 [shape = 's32[2]{0}', space=sflag, size = 0x8, scoped, tag = 'scoped memory for tpu_custom_call.1']
    #allocation6 [shape = 'u8[589824]{0}', space=vmem, size = 0x90000, scoped, tag = 'input window, operand 1, single buffered']
    #allocation7 [shape = 's32[1]{0}', space=sflag, size = 0x4, scoped, tag = 'scoped memory for tpu_custom_call.1']
    #allocation8 [shape = 'u8[512]{0}', space=vmem, size = 0x400, scoped, tag = 'input window, operand 2, single buffered']
    #allocation9 [shape = 'u8[589824]{0}', space=vmem, size = 0x90000, scoped, tag = 'input window, operand 3, single buffered']
    #allocation10 [shape = 's32[1]{0}', space=sflag, size = 0x4, scoped, tag = 'scoped memory for tpu_custom_call.1']
    #allocation11 [shape = 'u8[512]{0}', space=vmem, size = 0x400, scoped, tag = 'input window, operand 4, single buffered']
    #allocation12 [shape = 'u8[262144]{0}', space=vmem, size = 0x40000, scoped, tag = 'output window, operand 0']
    %10 = vsyncpa [#allocation4], 0
    %s11 = scalar_lea.sflag [#allocation4], 1
    %12 = vsyncpa %s11, 0
    %13 = vsyncpa [#allocation7], 0
    %14 = vsyncpa [#allocation10], 0
    %15 = vsyncpa [#allocation5], 0
    %s16 = scalar_lea.sflag [#allocation5], 1
    %17 = vsyncpa %s16, 0
    loop: start=0, step=1, limit=4
    $region2: #{tpu_custom_call.1} parent=1 // loop_pre_header
      _
    $region3: #{tpu_custom_call.1} parent=1 // loop_header
      %s19 = sphi 0, %s23
      %p20 = scmp.ge.s32.totalorder %s19, 4
      %s29 = sphi 0, %s31
      %s32 = sphi 0, %s29
      %s33 = sphi 0, %s32
      %s49 = sphi 0, %s33
      %s53 = sphi 0, %s53
      %s55 = sphi 0, %s53
      %s56 = sphi 0, %s55
      %s70 = sphi 0, %s56
      %s74 = sphi 0, %s74
      %s76 = sphi 0, %s74
      %s77 = sphi 0, %s76
      %s91 = sphi 0, %s77
      %s95 = sphi 0, %s95
      %s97 = sphi 0, %s95
      %s98 = sphi 0, %s97
      %s112 = sphi 0, %s98
      %s116 = sphi 0, %s116
      %s118 = sphi 0, %s116
      %s119 = sphi 0, %s118
      %s133 = sphi 0, %s119
      %s139 = sphi 0, %s141
      %s142 = sphi 0, %s139
      %s143 = sphi 0, %s142
      %s159 = sphi 0, %s143
    $region4: #{tpu_custom_call.1} parent=1 // loop_header_branch
      %22 = sbr.rel (%p20) target = $region8
    $region5: #{tpu_custom_call.1} parent=1 // loop_body
      %s24 = ssub.s32 %s19, 1
      %s25 = ssub.s32 %s19, 2
      %s26 = sadd.s32 %s19, 1
      %s27 = ssub.s32 %s19, %s26
      %p28 = scmp.eq.s32.totalorder %s27, 0
      %s30 = sadd.s32 %s29, 1
      %s31 = scalar_select %p28, %s29, %s30
      %p34 = pneg %p28
      %p35 = scmp.eq.s32.totalorder %s19, 1
      %p36 = por %p34, %p35
      %p37 = scmp.ne.s32.totalorder %s29, %s32
      %p38 = scmp.eq.s32.totalorder %s19, 0
      %p39 = por %p37, %p38
      %p40 = scmp.ne.s32.totalorder %s29, %s32
      %p41 = scmp.eq.s32.totalorder %s24, 1
      %p42 = por %p40, %p41
      %p43 = scmp.ne.s32.totalorder %s32, %s33
      %p44 = scmp.eq.s32.totalorder %s24, 0
      %p45 = por %p43, %p44
      %p46 = scmp.ne.s32.totalorder %s32, %s33
      %p47 = scmp.eq.s32.totalorder %s25, 1
      %p48 = por %p46, %p47
      %p50 = scmp.ne.s32.totalorder %s33, %s49
      %p51 = scmp.eq.s32.totalorder %s25, 0
      %p52 = por %p50, %p51
      %s54 = sadd.s32 %s53, 1
      %p57 = scmp.eq.s32.totalorder %s19, 1
      %p58 = scmp.ne.s32.totalorder %s53, %s55
      %p59 = scmp.eq.s32.totalorder %s19, 0
      %p60 = por %p58, %p59
      %p61 = scmp.ne.s32.totalorder %s53, %s55
      %p62 = scmp.eq.s32.totalorder %s24, 1
      %p63 = por %p61, %p62
      %p64 = scmp.ne.s32.totalorder %s55, %s56
      %p65 = scmp.eq.s32.totalorder %s24, 0
      %p66 = por %p64, %p65
      %p67 = scmp.ne.s32.totalorder %s55, %s56
      %p68 = scmp.eq.s32.totalorder %s25, 1
      %p69 = por %p67, %p68
      %p71 = scmp.ne.s32.totalorder %s56, %s70
      %p72 = scmp.eq.s32.totalorder %s25, 0
      %p73 = por %p71, %p72
      %s75 = sadd.s32 %s74, 1
      %p78 = scmp.eq.s32.totalorder %s19, 1
      %p79 = scmp.ne.s32.totalorder %s74, %s76
      %p80 = scmp.eq.s32.totalorder %s19, 0
      %p81 = por %p79, %p80
      %p82 = scmp.ne.s32.totalorder %s74, %s76
      %p83 = scmp.eq.s32.totalorder %s24, 1
      %p84 = por %p82, %p83
      %p85 = scmp.ne.s32.totalorder %s76, %s77
      %p86 = scmp.eq.s32.totalorder %s24, 0
      %p87 = por %p85, %p86
      %p88 = scmp.ne.s32.totalorder %s76, %s77
      %p89 = scmp.eq.s32.totalorder %s25, 1
      %p90 = por %p88, %p89
      %p92 = scmp.ne.s32.totalorder %s77, %s91
      %p93 = scmp.eq.s32.totalorder %s25, 0
      %p94 = por %p92, %p93
      %s96 = sadd.s32 %s95, 1
      %p99 = scmp.eq.s32.totalorder %s19, 1
      %p100 = scmp.ne.s32.totalorder %s95, %s97
      %p101 = scmp.eq.s32.totalorder %s19, 0
      %p102 = por %p100, %p101
      %p103 = scmp.ne.s32.totalorder %s95, %s97
      %p104 = scmp.eq.s32.totalorder %s24, 1
      %p105 = por %p103, %p104
      %p106 = scmp.ne.s32.totalorder %s97, %s98
      %p107 = scmp.eq.s32.totalorder %s24, 0
      %p108 = por %p106, %p107
      %p109 = scmp.ne.s32.totalorder %s97, %s98
      %p110 = scmp.eq.s32.totalorder %s25, 1
      %p111 = por %p109, %p110
      %p113 = scmp.ne.s32.totalorder %s98, %s112
      %p114 = scmp.eq.s32.totalorder %s25, 0
      %p115 = por %p113, %p114
      %s117 = sadd.s32 %s116, 1
      %p120 = scmp.eq.s32.totalorder %s19, 1
      %p121 = scmp.ne.s32.totalorder %s116, %s118
      %p122 = scmp.eq.s32.totalorder %s19, 0
      %p123 = por %p121, %p122
      %p124 = scmp.ne.s32.totalorder %s116, %s118
      %p125 = scmp.eq.s32.totalorder %s24, 1
      %p126 = por %p124, %p125
      %p127 = scmp.ne.s32.totalorder %s118, %s119
      %p128 = scmp.eq.s32.totalorder %s24, 0
      %p129 = por %p127, %p128
      %p130 = scmp.ne.s32.totalorder %s118, %s119
      %p131 = scmp.eq.s32.totalorder %s25, 1
      %p132 = por %p130, %p131
      %p134 = scmp.ne.s32.totalorder %s119, %s133
      %p135 = scmp.eq.s32.totalorder %s25, 0
      %p136 = por %p134, %p135
      %s137 = ssub.s32 %s19, %s26
      %p138 = scmp.eq.s32.totalorder %s137, 0
      %s140 = sadd.s32 %s139, 1
      %s141 = scalar_select %p138, %s139, %s140
      %p144 = pneg %p138
      %p145 = scmp.eq.s32.totalorder %s19, 1
      %p146 = por %p144, %p145
      %p147 = scmp.ne.s32.totalorder %s139, %s142
      %p148 = scmp.eq.s32.totalorder %s19, 0
      %p149 = por %p147, %p148
      %p150 = scmp.ne.s32.totalorder %s139, %s142
      %p151 = scmp.eq.s32.totalorder %s24, 1
      %p152 = por %p150, %p151
      %p153 = scmp.ne.s32.totalorder %s142, %s143
      %p154 = scmp.eq.s32.totalorder %s24, 0
      %p155 = por %p153, %p154
      %p156 = scmp.ne.s32.totalorder %s142, %s143
      %p157 = scmp.eq.s32.totalorder %s25, 1
      %p158 = por %p156, %p157
      %p160 = scmp.ne.s32.totalorder %s143, %s159
      %p161 = scmp.eq.s32.totalorder %s25, 0
      %p162 = por %p160, %p161
      %p163 = scmp.le.s32.totalorder 1, %s19
      %p164 = scmp.lt.s32.totalorder %s19, 3
      %p165 = pnand %p163, %p164
      %p166 = pneg %p165
      // Predicated region
      $region9: #{tpu_custom_call.1} parent=5 // pred_check
        _
      $region10: #{tpu_custom_call.1} parent=5 // pred_check_branch
        %168 = sbr.rel (%p165) target = $region12
      $region11: #{tpu_custom_call.1} parent=5 // pred_region
        %s169 = ssub.s32 %s19, 1
        // Predicated region
        $region13: #{tpu_custom_call.1} parent=11 // pred_check
          %p170 = pneg %p66
        $region14: #{tpu_custom_call.1} parent=11 // pred_check_branch
          %172 = sbr.rel (%p170) target = $region16
        $region15: #{tpu_custom_call.1} parent=11 // pred_region
          %s174 = ssub.s32 18432, 18432
          %175 = vsyncadd [#allocation7], %s174
          %s176 = sshll.u32 [#allocation6], 4
          %s177 = int_to_ptr.vmem [resolvable:$true] %s176
          %182 = dma.hbm_to_vmem [thread:$0]  %s1, 18432, %s177, [#allocation7], 128, 128, 8
        $region16: #{tpu_custom_call.1} parent=11 // pred_fallthru
          _
        // Predicated region
        $region17: #{tpu_custom_call.1} parent=11 // pred_check
          %p183 = pneg %p87
        $region18: #{tpu_custom_call.1} parent=11 // pred_check_branch
          %185 = sbr.rel (%p183) target = $region20
        $region19: #{tpu_custom_call.1} parent=11 // pred_region
          %s187 = ssub.s32 16, 16
          %188 = vsyncadd [#allocation7], %s187
          %s190 = sshll.u32 [#allocation8], 4
          %s191 = int_to_ptr.vmem [resolvable:$true] %s190
          %193 = dma.hbm_to_vmem [thread:$0]  %s2, 16, %s191, [#allocation7]
        $region20: #{tpu_custom_call.1} parent=11 // pred_fallthru
          _
        // Predicated region
        $region21: #{tpu_custom_call.1} parent=11 // pred_check
          %p194 = pneg %p108
        $region22: #{tpu_custom_call.1} parent=11 // pred_check_branch
          %196 = sbr.rel (%p194) target = $region24
        $region23: #{tpu_custom_call.1} parent=11 // pred_region
          %s198 = ssub.s32 18432, 18432
          %199 = vsyncadd [#allocation10], %s198
          %s200 = sshll.u32 [#allocation9], 4
          %s201 = int_to_ptr.vmem [resolvable:$true] %s200
          %206 = dma.hbm_to_vmem [thread:$0]  %s3, 18432, %s201, [#allocation10], 128, 128, 8
        $region24: #{tpu_custom_call.1} parent=11 // pred_fallthru
          _
        // Predicated region
        $region25: #{tpu_custom_call.1} parent=11 // pred_check
          %p207 = pneg %p129
        $region26: #{tpu_custom_call.1} parent=11 // pred_check_branch
          %209 = sbr.rel (%p207) target = $region28
        $region27: #{tpu_custom_call.1} parent=11 // pred_region
          %s211 = ssub.s32 16, 16
          %212 = vsyncadd [#allocation10], %s211
          %s214 = sshll.u32 [#allocation11], 4
          %s215 = int_to_ptr.vmem [resolvable:$true] %s214
          %217 = dma.hbm_to_vmem [thread:$0]  %s4, 16, %s215, [#allocation10]
        $region28: #{tpu_custom_call.1} parent=11 // pred_fallthru
          _
      $region12: #{tpu_custom_call.1} parent=5 // pred_fallthru
        _
      %p218 = scmp.lt.s32.totalorder %s19, 2
      // Predicated region
      $region29: #{tpu_custom_call.1} parent=5 // pred_check
        %p219 = pneg %p218
      $region30: #{tpu_custom_call.1} parent=5 // pred_check_branch
        %221 = sbr.rel (%p219) target = $region32
      $region31: #{tpu_custom_call.1} parent=5 // pred_region
        // Predicated region
        $region33: #{tpu_custom_call.1} parent=31 // pred_check
          %p222 = pneg %p39
        $region34: #{tpu_custom_call.1} parent=31 // pred_check_branch
          %224 = sbr.rel (%p222) target = $region36
        $region35: #{tpu_custom_call.1} parent=31 // pred_region
          %s225 = sand.u32 %s29, 1
          %s226 = scalar_lea.sflag [#allocation4], %s225
          %s227 = sand.u32 %s29, 1
          %s228 = smul.addr %s227, 432
          %s229 = scalar_lea.vmem [#allocation3], %s228
          %s231 = ssub.s32 6912, 6912
          %232 = vsyncadd %s226, %s231
          %s233 = smul.addr %s19, 54
          %s234 = smul.addr %s233, 128
          %s235 = scalar_lea.hbm %s0, %s234
          %s236 = sshll.u32 %s229, 4
          %s237 = int_to_ptr.vmem [resolvable:$true] %s236
          %242 = dma.hbm_to_vmem [thread:$0]  %s235, 6912, %s237, %s226, 128, 128, 8
        $region36: #{tpu_custom_call.1} parent=31 // pred_fallthru
          _
      $region32: #{tpu_custom_call.1} parent=5 // pred_fallthru
        _
      %p243 = scmp.le.s32.totalorder 1, %s19
      %p244 = scmp.lt.s32.totalorder %s19, 3
      %p245 = pnand %p243, %p244
      %p246 = pneg %p245
      // Predicated region
      $region37: #{tpu_custom_call.1} parent=5 // pred_check
        _
      $region38: #{tpu_custom_call.1} parent=5 // pred_check_branch
        %248 = sbr.rel (%p245) target = $region40
      $region39: #{tpu_custom_call.1} parent=5 // pred_region
        %s249 = ssub.s32 %s19, 1
        %s250 = sand.u32 %s32, 1
        %s251 = scalar_lea.sflag [#allocation4], %s250
        %s252 = sand.u32 %s32, 1
        %s253 = smul.addr %s252, 432
        %s254 = scalar_lea.vmem [#allocation3], %s253
        // Predicated region
        $region41: #{tpu_custom_call.1} parent=39 // pred_check
          %p255 = pneg %p45
        $region42: #{tpu_custom_call.1} parent=39 // pred_check_branch
          %257 = sbr.rel (%p255) target = $region44
        $region43: #{tpu_custom_call.1} parent=39 // pred_region
          %258 = dma.done %s251, 6912
        $region44: #{tpu_custom_call.1} parent=39 // pred_fallthru
          _
        // Predicated region
        $region45: #{tpu_custom_call.1} parent=39 // pred_check
          %p259 = pneg %p66
        $region46: #{tpu_custom_call.1} parent=39 // pred_check_branch
          %261 = sbr.rel (%p259) target = $region48
        $region47: #{tpu_custom_call.1} parent=39 // pred_region
          %262 = dma.done [#allocation7], 18432
        $region48: #{tpu_custom_call.1} parent=39 // pred_fallthru
          _
        // Predicated region
        $region49: #{tpu_custom_call.1} parent=39 // pred_check
          %p263 = pneg %p87
        $region50: #{tpu_custom_call.1} parent=39 // pred_check_branch
          %265 = sbr.rel (%p263) target = $region52
        $region51: #{tpu_custom_call.1} parent=39 // pred_region
          %266 = dma.done [#allocation7], 16
        $region52: #{tpu_custom_call.1} parent=39 // pred_fallthru
          _
        // Predicated region
        $region53: #{tpu_custom_call.1} parent=39 // pred_check
          %p267 = pneg %p108
        $region54: #{tpu_custom_call.1} parent=39 // pred_check_branch
          %269 = sbr.rel (%p267) target = $region56
        $region55: #{tpu_custom_call.1} parent=39 // pred_region
          %270 = dma.done [#allocation10], 18432
        $region56: #{tpu_custom_call.1} parent=39 // pred_fallthru
          _
        // Predicated region
        $region57: #{tpu_custom_call.1} parent=39 // pred_check
          %p271 = pneg %p129
        $region58: #{tpu_custom_call.1} parent=39 // pred_check_branch
          %273 = sbr.rel (%p271) target = $region60
        $region59: #{tpu_custom_call.1} parent=39 // pred_region
          %274 = dma.done [#allocation10], 16
        $region60: #{tpu_custom_call.1} parent=39 // pred_fallthru
          _
        %s275 = sand.u32 %s32, 1
        %s276 = scalar_lea.sflag [#allocation4], %s275
        %s277 = sand.u32 %s32, 1
        %s278 = smul.addr %s277, 432
        %s279 = scalar_lea.vmem [#allocation3], %s278
        %p280 = pneg %p45
        %p281 = pneg %p42
        %p282 = pneg %p66
        %p283 = pneg %p63
        %p284 = pneg %p87
        %p285 = pneg %p84
        %p286 = pneg %p108
        %p287 = pneg %p105
        %p288 = pneg %p129
        %p289 = pneg %p126
        %p290 = pneg %p155
        %p291 = pneg %p152
        %s292 = sand.u32 %s142, 1
        %s293 = scalar_lea.sflag [#allocation5], %s292
        %s294 = sand.u32 %s142, 1
        %s295 = smul.addr %s294, 256
        %s296 = scalar_lea.vmem [#allocation12], %s295
        %v297 = vld [vmem:[%s254] sm:$0xff]
        %v298 = vld [vmem:[%s254 + $0x8] sm:$0xff]
        %v299 = vld [vmem:[%s254 + $0x10] sm:$0x3]
        %v300 = vld [vmem:[%s254 + $0x18] sm:$0xff]
        %v301 = vld [vmem:[%s254 + $0x20] sm:$0xff]
        %v302 = vld [vmem:[%s254 + $0x28] sm:$0x3]
        %v303 = vld [vmem:[%s254 + $0x30] sm:$0xff]
        %v304 = vld [vmem:[%s254 + $0x38] sm:$0xff]
        %v305 = vld [vmem:[%s254 + $0x40] sm:$0x3]
        %v306 = vld [vmem:[%s254 + $0x48] sm:$0xff]
        %v307 = vld [vmem:[%s254 + $0x50] sm:$0xff]
        %v308 = vld [vmem:[%s254 + $0x58] sm:$0x3]
        %v309 = vld [vmem:[%s254 + $0x60] sm:$0xff]
        %v310 = vld [vmem:[%s254 + $0x68] sm:$0xff]
        %v311 = vld [vmem:[%s254 + $0x70] sm:$0x3]
        %v312 = vld [vmem:[%s254 + $0x78] sm:$0xff]
        %v313 = vld [vmem:[%s254 + $0x80] sm:$0xff]
        %v314 = vld [vmem:[%s254 + $0x88] sm:$0x3]
        %v315 = vld [vmem:[%s254 + $0x90] sm:$0xff]
        %v316 = vld [vmem:[%s254 + $0x98] sm:$0xff]
        %v317 = vld [vmem:[%s254 + $0xa0] sm:$0x3]
        %v318 = vld [vmem:[%s254 + $0xa8] sm:$0xff]
        %v319 = vld [vmem:[%s254 + $0xb0] sm:$0xff]
        %v320 = vld [vmem:[%s254 + $0xb8] sm:$0x3]
        %v321 = vld [vmem:[%s254 + $0xc0] sm:$0xff]
        %v322 = vld [vmem:[%s254 + $0xc8] sm:$0xff]
        %v323 = vld [vmem:[%s254 + $0xd0] sm:$0x3]
        %v324 = vld [vmem:[%s254 + $0xd8] sm:$0xff]
        %v325 = vld [vmem:[%s254 + $0xe0] sm:$0xff]
        %v326 = vld [vmem:[%s254 + $0xe8] sm:$0x3]
        %v327 = vld [vmem:[%s254 + $0xf0] sm:$0xff]
        %v328 = vld [vmem:[%s254 + $0xf8] sm:$0xff]
        %v329 = vld [vmem:[%s254 + $0x100] sm:$0x3]
        %v330 = vld [vmem:[%s254 + $0x108] sm:$0xff]
        %v331 = vld [vmem:[%s254 + $0x110] sm:$0xff]
        %v332 = vld [vmem:[%s254 + $0x118] sm:$0x3]
        %v333 = vld [vmem:[%s254 + $0x120] sm:$0xff]
        %v334 = vld [vmem:[%s254 + $0x128] sm:$0xff]
        %v335 = vld [vmem:[%s254 + $0x130] sm:$0x3]
        %v336 = vld [vmem:[%s254 + $0x138] sm:$0xff]
        %v337 = vld [vmem:[%s254 + $0x140] sm:$0xff]
        %v338 = vld [vmem:[%s254 + $0x148] sm:$0x3]
        %v339 = vld [vmem:[%s254 + $0x150] sm:$0xff]
        %v340 = vld [vmem:[%s254 + $0x158] sm:$0xff]
        %v341 = vld [vmem:[%s254 + $0x160] sm:$0x3]
        %v342 = vld [vmem:[%s254 + $0x168] sm:$0xff]
        %v343 = vld [vmem:[%s254 + $0x170] sm:$0xff]
        %v344 = vld [vmem:[%s254 + $0x178] sm:$0x3]
        %v345 = vld [vmem:[%s254 + $0x180] sm:$0xff]
        %v346 = vld [vmem:[%s254 + $0x188] sm:$0xff]
        %v347 = vld [vmem:[%s254 + $0x190] sm:$0x3]
        %v348 = vld [vmem:[%s254 + $0x198] sm:$0xff]
        %v349 = vld [vmem:[%s254 + $0x1a0] sm:$0xff]
        %v350 = vld [vmem:[%s254 + $0x1a8] sm:$0x3]
        %vm399 = vcmask 1046528
        %v400 = vrot.slane %v297, 1
        %v401 = vrot.slane %v298, 1
        %v402 = vsel %vm399, %v400, %v401
        %v403 = vrot.slane %v299, 1
        %v404 = vsel %vm399, %v401, %v403
        %v405 = vrot.slane %v300, 1
        %v406 = vrot.slane %v301, 1
        %v407 = vsel %vm399, %v405, %v406
        %v408 = vrot.slane %v302, 1
        %v409 = vsel %vm399, %v406, %v408
        %v410 = vrot.slane %v303, 1
        %v411 = vrot.slane %v304, 1
        %v412 = vsel %vm399, %v410, %v411
        %v413 = vrot.slane %v305, 1
        %v414 = vsel %vm399, %v411, %v413
        %v415 = vrot.slane %v306, 1
        %v416 = vrot.slane %v307, 1
        %v417 = vsel %vm399, %v415, %v416
        %v418 = vrot.slane %v308, 1
        %v419 = vsel %vm399, %v416, %v418
        %v420 = vrot.slane %v309, 1
        %v421 = vrot.slane %v310, 1
        %v422 = vsel %vm399, %v420, %v421
        %v423 = vrot.slane %v311, 1
        %v424 = vsel %vm399, %v421, %v423
        %v425 = vrot.slane %v312, 1
        %v426 = vrot.slane %v313, 1
        %v427 = vsel %vm399, %v425, %v426
        %v428 = vrot.slane %v314, 1
        %v429 = vsel %vm399, %v426, %v428
        %v430 = vrot.slane %v315, 1
        %v431 = vrot.slane %v316, 1
        %v432 = vsel %vm399, %v430, %v431
        %v433 = vrot.slane %v317, 1
        %v434 = vsel %vm399, %v431, %v433
        %v435 = vrot.slane %v318, 1
        %v436 = vrot.slane %v319, 1
        %v437 = vsel %vm399, %v435, %v436
        %v438 = vrot.slane %v320, 1
        %v439 = vsel %vm399, %v436, %v438
        %v440 = vrot.slane %v321, 1
        %v441 = vrot.slane %v322, 1
        %v442 = vsel %vm399, %v440, %v441
        %v443 = vrot.slane %v323, 1
        %v444 = vsel %vm399, %v441, %v443
        %v445 = vrot.slane %v324, 1
        %v446 = vrot.slane %v325, 1
        %v447 = vsel %vm399, %v445, %v446
        %v448 = vrot.slane %v326, 1
        %v449 = vsel %vm399, %v446, %v448
        %v450 = vrot.slane %v327, 1
        %v451 = vrot.slane %v328, 1
        %v452 = vsel %vm399, %v450, %v451
        %v453 = vrot.slane %v329, 1
        %v454 = vsel %vm399, %v451, %v453
        %v455 = vrot.slane %v330, 1
        %v456 = vrot.slane %v331, 1
        %v457 = vsel %vm399, %v455, %v456
        %v458 = vrot.slane %v332, 1
        %v459 = vsel %vm399, %v456, %v458
        %v460 = vrot.slane %v333, 1
        %v461 = vrot.slane %v334, 1
        %v462 = vsel %vm399, %v460, %v461
        %v463 = vrot.slane %v335, 1
        %v464 = vsel %vm399, %v461, %v463
        %v465 = vrot.slane %v336, 1
        %v466 = vrot.slane %v337, 1
        %v467 = vsel %vm399, %v465, %v466
        %v468 = vrot.slane %v338, 1
        %v469 = vsel %vm399, %v466, %v468
        %v470 = vrot.slane %v339, 1
        %v471 = vrot.slane %v340, 1
        %v472 = vsel %vm399, %v470, %v471
        %v473 = vrot.slane %v341, 1
        %v474 = vsel %vm399, %v471, %v473
        %v475 = vrot.slane %v342, 1
        %v476 = vrot.slane %v343, 1
        %v477 = vsel %vm399, %v475, %v476
        %v478 = vrot.slane %v344, 1
        %v479 = vsel %vm399, %v476, %v478
        %vm512 = vcmask 1045504
        %v513 = vrot.slane %v297, 2
        %v514 = vrot.slane %v298, 2
        %v515 = vsel %vm512, %v513, %v514
        %v516 = vrot.slane %v299, 2
        %v517 = vsel %vm512, %v514, %v516
        %v518 = vrot.slane %v300, 2
        %v519 = vrot.slane %v301, 2
        %v520 = vsel %vm512, %v518, %v519
        %v521 = vrot.slane %v302, 2
        %v522 = vsel %vm512, %v519, %v521
        %v523 = vrot.slane %v303, 2
        %v524 = vrot.slane %v304, 2
        %v525 = vsel %vm512, %v523, %v524
        %v526 = vrot.slane %v305, 2
        %v527 = vsel %vm512, %v524, %v526
        %v528 = vrot.slane %v306, 2
        %v529 = vrot.slane %v307, 2
        %v530 = vsel %vm512, %v528, %v529
        %v531 = vrot.slane %v308, 2
        %v532 = vsel %vm512, %v529, %v531
        %v533 = vrot.slane %v309, 2
        %v534 = vrot.slane %v310, 2
        %v535 = vsel %vm512, %v533, %v534
        %v536 = vrot.slane %v311, 2
        %v537 = vsel %vm512, %v534, %v536
        %v538 = vrot.slane %v312, 2
        %v539 = vrot.slane %v313, 2
        %v540 = vsel %vm512, %v538, %v539
        %v541 = vrot.slane %v314, 2
        %v542 = vsel %vm512, %v539, %v541
        %v543 = vrot.slane %v315, 2
        %v544 = vrot.slane %v316, 2
        %v545 = vsel %vm512, %v543, %v544
        %v546 = vrot.slane %v317, 2
        %v547 = vsel %vm512, %v544, %v546
        %v548 = vrot.slane %v318, 2
        %v549 = vrot.slane %v319, 2
        %v550 = vsel %vm512, %v548, %v549
        %v551 = vrot.slane %v320, 2
        %v552 = vsel %vm512, %v549, %v551
        %v553 = vrot.slane %v321, 2
        %v554 = vrot.slane %v322, 2
        %v555 = vsel %vm512, %v553, %v554
        %v556 = vrot.slane %v323, 2
        %v557 = vsel %vm512, %v554, %v556
        %v558 = vrot.slane %v324, 2
        %v559 = vrot.slane %v325, 2
        %v560 = vsel %vm512, %v558, %v559
        %v561 = vrot.slane %v326, 2
        %v562 = vsel %vm512, %v559, %v561
        %v563 = vrot.slane %v327, 2
        %v564 = vrot.slane %v328, 2
        %v565 = vsel %vm512, %v563, %v564
        %v566 = vrot.slane %v329, 2
        %v567 = vsel %vm512, %v564, %v566
        %v568 = vrot.slane %v330, 2
        %v569 = vrot.slane %v331, 2
        %v570 = vsel %vm512, %v568, %v569
        %v571 = vrot.slane %v332, 2
        %v572 = vsel %vm512, %v569, %v571
        %v573 = vrot.slane %v333, 2
        %v574 = vrot.slane %v334, 2
        %v575 = vsel %vm512, %v573, %v574
        %v576 = vrot.slane %v335, 2
        %v577 = vsel %vm512, %v574, %v576
        %v578 = vrot.slane %v336, 2
        %v579 = vrot.slane %v337, 2
        %v580 = vsel %vm512, %v578, %v579
        %v581 = vrot.slane %v338, 2
        %v582 = vsel %vm512, %v579, %v581
        %v583 = vrot.slane %v339, 2
        %v584 = vrot.slane %v340, 2
        %v585 = vsel %vm512, %v583, %v584
        %v586 = vrot.slane %v341, 2
        %v587 = vsel %vm512, %v584, %v586
        %v588 = vrot.slane %v342, 2
        %v589 = vrot.slane %v343, 2
        %v590 = vsel %vm512, %v588, %v589
        %v591 = vrot.slane %v344, 2
        %v592 = vsel %vm512, %v589, %v591
        %v628 = vrot.slane %v345, 1
        %v629 = vrot.slane %v346, 1
        %v630 = vsel %vm399, %v628, %v629
        %v631 = vrot.slane %v347, 1
        %v632 = vsel %vm399, %v629, %v631
        %v635 = vrot.slane %v345, 2
        %v636 = vrot.slane %v346, 2
        %v637 = vsel %vm512, %v635, %v636
        %v638 = vrot.slane %v347, 2
        %v639 = vsel %vm512, %v636, %v638
        %v645 = vrot.slane %v348, 1
        %v646 = vrot.slane %v349, 1
        %v647 = vsel %vm399, %v645, %v646
        %v648 = vrot.slane %v350, 1
        %v649 = vsel %vm399, %v646, %v648
        %v652 = vrot.slane %v348, 2
        %v653 = vrot.slane %v349, 2
        %v654 = vsel %vm512, %v652, %v653
        %v655 = vrot.slane %v350, 2
        %v656 = vsel %vm512, %v653, %v655
        %v659 = vld [vmem:[#allocation6] sm:$0xff]
        %v660 = vld [vmem:[#allocation6 + $0x8] sm:$0xff]
        %v661 = vld [vmem:[#allocation6 + $0x10] sm:$0xff]
        %v662 = vld [vmem:[#allocation6 + $0x18] sm:$0xff]
        %v663 = vld [vmem:[#allocation6 + $0x20] sm:$0xff]
        %v664 = vld [vmem:[#allocation6 + $0x28] sm:$0xff]
        %v665 = vld [vmem:[#allocation6 + $0x30] sm:$0xff]
        %v666 = vld [vmem:[#allocation6 + $0x38] sm:$0xff]
        %v667 = vld [vmem:[#allocation6 + $0x40] sm:$0xff]
        %v668 = vld [vmem:[#allocation6 + $0x48] sm:$0xff]
        %v669 = vld [vmem:[#allocation6 + $0x50] sm:$0xff]
        %v670 = vld [vmem:[#allocation6 + $0x58] sm:$0xff]
        %v671 = vld [vmem:[#allocation6 + $0x60] sm:$0xff]
        %v672 = vld [vmem:[#allocation6 + $0x68] sm:$0xff]
        %v673 = vld [vmem:[#allocation6 + $0x70] sm:$0xff]
        %v674 = vld [vmem:[#allocation6 + $0x78] sm:$0xff]
        %v675 = vld [vmem:[#allocation6 + $0x80] sm:$0xff]
        %v676 = vld [vmem:[#allocation6 + $0x88] sm:$0xff]
        %v677 = vld [vmem:[#allocation6 + $0x90] sm:$0xff]
        %v678 = vld [vmem:[#allocation6 + $0x98] sm:$0xff]
        %v679 = vld [vmem:[#allocation6 + $0xa0] sm:$0xff]
        %v680 = vld [vmem:[#allocation6 + $0xa8] sm:$0xff]
        %v681 = vld [vmem:[#allocation6 + $0xb0] sm:$0xff]
        %v682 = vld [vmem:[#allocation6 + $0xb8] sm:$0xff]
        %v683 = vld [vmem:[#allocation6 + $0xc0] sm:$0xff]
        %v684 = vld [vmem:[#allocation6 + $0xc8] sm:$0xff]
        %v685 = vld [vmem:[#allocation6 + $0xd0] sm:$0xff]
        %v686 = vld [vmem:[#allocation6 + $0xd8] sm:$0xff]
        %v687 = vld [vmem:[#allocation6 + $0xe0] sm:$0xff]
        %v688 = vld [vmem:[#allocation6 + $0xe8] sm:$0xff]
        %v689 = vld [vmem:[#allocation6 + $0xf0] sm:$0xff]
        %v690 = vld [vmem:[#allocation6 + $0xf8] sm:$0xff]
        %v691 = vld [vmem:[#allocation6 + $0x100] sm:$0xff]
        %v692 = vld [vmem:[#allocation6 + $0x108] sm:$0xff]
        %v693 = vld [vmem:[#allocation6 + $0x110] sm:$0xff]
        %v694 = vld [vmem:[#allocation6 + $0x118] sm:$0xff]
        %v695 = vld [vmem:[#allocation6 + $0x120] sm:$0xff]
        %v696 = vld [vmem:[#allocation6 + $0x128] sm:$0xff]
        %v697 = vld [vmem:[#allocation6 + $0x130] sm:$0xff]
        %v698 = vld [vmem:[#allocation6 + $0x138] sm:$0xff]
        %v699 = vld [vmem:[#allocation6 + $0x140] sm:$0xff]
        %v700 = vld [vmem:[#allocation6 + $0x148] sm:$0xff]
        %v701 = vld [vmem:[#allocation6 + $0x150] sm:$0xff]
        %v702 = vld [vmem:[#allocation6 + $0x158] sm:$0xff]
        %v703 = vld [vmem:[#allocation6 + $0x160] sm:$0xff]
        %v704 = vld [vmem:[#allocation6 + $0x168] sm:$0xff]
        %v705 = vld [vmem:[#allocation6 + $0x170] sm:$0xff]
        %v706 = vld [vmem:[#allocation6 + $0x178] sm:$0xff]
        %v707 = vld [vmem:[#allocation6 + $0x180] sm:$0xff]
        %v708 = vld [vmem:[#allocation6 + $0x188] sm:$0xff]
        %v709 = vld [vmem:[#allocation6 + $0x190] sm:$0xff]
        %v710 = vld [vmem:[#allocation6 + $0x198] sm:$0xff]
        %v711 = vld [vmem:[#allocation6 + $0x1a0] sm:$0xff]
        %v712 = vld [vmem:[#allocation6 + $0x1a8] sm:$0xff]
        %v713 = vld [vmem:[#allocation6 + $0x1b0] sm:$0xff]
        %v714 = vld [vmem:[#allocation6 + $0x1b8] sm:$0xff]
        %v715 = vld [vmem:[#allocation6 + $0x1c0] sm:$0xff]
        %v716 = vld [vmem:[#allocation6 + $0x1c8] sm:$0xff]
        %v717 = vld [vmem:[#allocation6 + $0x1d0] sm:$0xff]
        %v718 = vld [vmem:[#allocation6 + $0x1d8] sm:$0xff]
        %v719 = vld [vmem:[#allocation6 + $0x1e0] sm:$0xff]
        %v720 = vld [vmem:[#allocation6 + $0x1e8] sm:$0xff]
        %v721 = vld [vmem:[#allocation6 + $0x1f0] sm:$0xff]
        %v722 = vld [vmem:[#allocation6 + $0x1f8] sm:$0xff]
        %v723 = vld [vmem:[#allocation6 + $0x200] sm:$0xff]
        %v724 = vld [vmem:[#allocation6 + $0x208] sm:$0xff]
        %v725 = vld [vmem:[#allocation6 + $0x210] sm:$0xff]
        %v726 = vld [vmem:[#allocation6 + $0x218] sm:$0xff]
        %v727 = vld [vmem:[#allocation6 + $0x220] sm:$0xff]
        %v728 = vld [vmem:[#allocation6 + $0x228] sm:$0xff]
        %v729 = vld [vmem:[#allocation6 + $0x230] sm:$0xff]
        %v730 = vld [vmem:[#allocation6 + $0x238] sm:$0xff]
        %v731 = vld [vmem:[#allocation6 + $0x240] sm:$0xff]
        %v732 = vld [vmem:[#allocation6 + $0x248] sm:$0xff]
        %v733 = vld [vmem:[#allocation6 + $0x250] sm:$0xff]
        %v734 = vld [vmem:[#allocation6 + $0x258] sm:$0xff]
        %v735 = vld [vmem:[#allocation6 + $0x260] sm:$0xff]
        %v736 = vld [vmem:[#allocation6 + $0x268] sm:$0xff]
        %v737 = vld [vmem:[#allocation6 + $0x270] sm:$0xff]
        %v738 = vld [vmem:[#allocation6 + $0x278] sm:$0xff]
        %v739 = vld [vmem:[#allocation6 + $0x280] sm:$0xff]
        %v740 = vld [vmem:[#allocation6 + $0x288] sm:$0xff]
        %v741 = vld [vmem:[#allocation6 + $0x290] sm:$0xff]
        %v742 = vld [vmem:[#allocation6 + $0x298] sm:$0xff]
        %v743 = vld [vmem:[#allocation6 + $0x2a0] sm:$0xff]
        %v744 = vld [vmem:[#allocation6 + $0x2a8] sm:$0xff]
        %v745 = vld [vmem:[#allocation6 + $0x2b0] sm:$0xff]
        %v746 = vld [vmem:[#allocation6 + $0x2b8] sm:$0xff]
        %v747 = vld [vmem:[#allocation6 + $0x2c0] sm:$0xff]
        %v748 = vld [vmem:[#allocation6 + $0x2c8] sm:$0xff]
        %v749 = vld [vmem:[#allocation6 + $0x2d0] sm:$0xff]
        %v750 = vld [vmem:[#allocation6 + $0x2d8] sm:$0xff]
        %v751 = vld [vmem:[#allocation6 + $0x2e0] sm:$0xff]
        %v752 = vld [vmem:[#allocation6 + $0x2e8] sm:$0xff]
        %v753 = vld [vmem:[#allocation6 + $0x2f0] sm:$0xff]
        %v754 = vld [vmem:[#allocation6 + $0x2f8] sm:$0xff]
        %v755 = vld [vmem:[#allocation6 + $0x300] sm:$0xff]
        %v756 = vld [vmem:[#allocation6 + $0x308] sm:$0xff]
        %v757 = vld [vmem:[#allocation6 + $0x310] sm:$0xff]
        %v758 = vld [vmem:[#allocation6 + $0x318] sm:$0xff]
        %v759 = vld [vmem:[#allocation6 + $0x320] sm:$0xff]
        %v760 = vld [vmem:[#allocation6 + $0x328] sm:$0xff]
        %v761 = vld [vmem:[#allocation6 + $0x330] sm:$0xff]
        %v762 = vld [vmem:[#allocation6 + $0x338] sm:$0xff]
        %v763 = vld [vmem:[#allocation6 + $0x340] sm:$0xff]
        %v764 = vld [vmem:[#allocation6 + $0x348] sm:$0xff]
        %v765 = vld [vmem:[#allocation6 + $0x350] sm:$0xff]
        %v766 = vld [vmem:[#allocation6 + $0x358] sm:$0xff]
        %v767 = vld [vmem:[#allocation6 + $0x360] sm:$0xff]
        %v768 = vld [vmem:[#allocation6 + $0x368] sm:$0xff]
        %v769 = vld [vmem:[#allocation6 + $0x370] sm:$0xff]
        %v770 = vld [vmem:[#allocation6 + $0x378] sm:$0xff]
        %v771 = vld [vmem:[#allocation6 + $0x380] sm:$0xff]
        %v772 = vld [vmem:[#allocation6 + $0x388] sm:$0xff]
        %v773 = vld [vmem:[#allocation6 + $0x390] sm:$0xff]
        %v774 = vld [vmem:[#allocation6 + $0x398] sm:$0xff]
        %v775 = vld [vmem:[#allocation6 + $0x3a0] sm:$0xff]
        %v776 = vld [vmem:[#allocation6 + $0x3a8] sm:$0xff]
        %v777 = vld [vmem:[#allocation6 + $0x3b0] sm:$0xff]
        %v778 = vld [vmem:[#allocation6 + $0x3b8] sm:$0xff]
        %v779 = vld [vmem:[#allocation6 + $0x3c0] sm:$0xff]
        %v780 = vld [vmem:[#allocation6 + $0x3c8] sm:$0xff]
        %v781 = vld [vmem:[#allocation6 + $0x3d0] sm:$0xff]
        %v782 = vld [vmem:[#allocation6 + $0x3d8] sm:$0xff]
        %v783 = vld [vmem:[#allocation6 + $0x3e0] sm:$0xff]
        %v784 = vld [vmem:[#allocation6 + $0x3e8] sm:$0xff]
        %v785 = vld [vmem:[#allocation6 + $0x3f0] sm:$0xff]
        %v786 = vld [vmem:[#allocation6 + $0x3f8] sm:$0xff]
        %v787 = vld [vmem:[#allocation6 + $0x400] sm:$0xff]
        %v788 = vld [vmem:[#allocation6 + $0x408] sm:$0xff]
        %v789 = vld [vmem:[#allocation6 + $0x410] sm:$0xff]
        %v790 = vld [vmem:[#allocation6 + $0x418] sm:$0xff]
        %v791 = vld [vmem:[#allocation6 + $0x420] sm:$0xff]
        %v792 = vld [vmem:[#allocation6 + $0x428] sm:$0xff]
        %v793 = vld [vmem:[#allocation6 + $0x430] sm:$0xff]
        %v794 = vld [vmem:[#allocation6 + $0x438] sm:$0xff]
        %v795 = vld [vmem:[#allocation6 + $0x440] sm:$0xff]
        %v796 = vld [vmem:[#allocation6 + $0x448] sm:$0xff]
        %v797 = vld [vmem:[#allocation6 + $0x450] sm:$0xff]
        %v798 = vld [vmem:[#allocation6 + $0x458] sm:$0xff]
        %v799 = vld [vmem:[#allocation6 + $0x460] sm:$0xff]
        %v800 = vld [vmem:[#allocation6 + $0x468] sm:$0xff]
        %v801 = vld [vmem:[#allocation6 + $0x470] sm:$0xff]
        %v802 = vld [vmem:[#allocation6 + $0x478] sm:$0xff]
        %v803 = vld [vmem:[#allocation8] sm:$0x1]
        %v805 = vlaneseq
        %v806 = vshrl.u32 %v805, 7
        %v807 = vsub.s32 0, %v806
        %v808 = vrot.slane %v803, %v807
        %810 = vmatprep.subr.mxu0 0.0
        %811 = vmatpush1.msra.mxu0 %v659
        %812 = vmatprep.subr.mxu0 0.0
        %813 = vmatpush1.msra.mxu0 %v660
        %814 = vmatprep.subr.mxu0 0.0
        %815 = vmatpush1.msra.mxu0 %v661
        %816 = vmatprep.subr.mxu0 0.0
        %817 = vmatpush1.msra.mxu0 %v662
        %818 = vmatprep.subr.mxu0 0.0
        %819 = vmatpush1.msra.mxu0 %v663
        %820 = vmatprep.subr.mxu0 0.0
        %821 = vmatpush1.msra.mxu0 %v664
        %822 = vmatprep.subr.mxu0 0.0
        %823 = vmatpush1.msra.mxu0 %v665
        %824 = vmatprep.subr.mxu0 0.0
        %825 = vmatpush1.msra.mxu0 %v666
        %826 = vmatprep.subr.mxu0 0.0
        %827 = vmatpush1.msra.mxu0 %v667
        %828 = vmatprep.subr.mxu0 0.0
        %829 = vmatpush1.msra.mxu0 %v668
        %830 = vmatprep.subr.mxu0 0.0
        %831 = vmatpush1.msra.mxu0 %v669
        %832 = vmatprep.subr.mxu0 0.0
        %833 = vmatpush1.msra.mxu0 %v670
        %834 = vmatprep.subr.mxu0 0.0
        %835 = vmatpush1.msra.mxu0 %v671
        %836 = vmatprep.subr.mxu0 0.0
        %837 = vmatpush1.msra.mxu0 %v672
        %838 = vmatprep.subr.mxu0 0.0
        %839 = vmatpush1.msra.mxu0 %v673
        %840 = vmatprep.subr.mxu0 0.0
        %841 = vmatpush1.msra.mxu0 %v674
        %842 = vmatprep.subr.mxu0 0.0
        %843 = vmatpush1.msra.mxu0 %v675
        %844 = vmatprep.subr.mxu0 0.0
        %845 = vmatpush1.msra.mxu0 %v676
        %846 = vmatprep.subr.mxu0 0.0
        %847 = vmatpush1.msra.mxu0 %v677
        %848 = vmatprep.subr.mxu0 0.0
        %849 = vmatpush1.msra.mxu0 %v678
        %850 = vmatprep.subr.mxu0 0.0
        %851 = vmatpush1.msra.mxu0 %v679
        %852 = vmatprep.subr.mxu0 0.0
        %853 = vmatpush1.msra.mxu0 %v680
        %854 = vmatprep.subr.mxu0 0.0
        %855 = vmatpush1.msra.mxu0 %v681
        %856 = vmatprep.subr.mxu0 0.0
        %857 = vmatpush1.msra.mxu0 %v682
        %858 = vmatprep.subr.mxu0 0.0
        %859 = vmatpush1.msra.mxu0 %v683
        %860 = vmatprep.subr.mxu0 0.0
        %861 = vmatpush1.msra.mxu0 %v684
        %862 = vmatprep.subr.mxu0 0.0
        %863 = vmatpush1.msra.mxu0 %v685
        %864 = vmatprep.subr.mxu0 0.0
        %865 = vmatpush1.msra.mxu0 %v686
        %866 = vmatprep.subr.mxu0 0.0
        %867 = vmatpush1.msra.mxu0 %v687
        %868 = vmatprep.subr.mxu0 0.0
        %869 = vmatpush1.msra.mxu0 %v688
        %870 = vmatprep.subr.mxu0 0.0
        %871 = vmatpush1.msra.mxu0 %v689
        %872 = vmatprep.subr.mxu0 0.0
        %873 = vmatpush1.msra.mxu0 %v690
        %874 = vmatprep.mubr.f32.mxu0 %v402
        %875 = vmatmul.mubr.f32.gmra.mrb[0].mxu0 %v297
        %v876 = vpop.f32.mrb[0].mxu0
        %v877 = vadd.f32 %v808, %v876
        %v878 = vpop.f32.mrb[0].mxu0
        %879 = vmatprep.mubr.f32.mxu0 %v404
        %880 = vmatmul.mubr.f32.gmra.mrb[0].mxu0 %v298
        %v881 = vpop.f32.mrb[0].mxu0
        %v882 = vadd.f32 %v808, %v881
        %v883 = vpop.f32.mrb[0].mxu0
        %884 = vmatprep.mubr.f32.mxu0 %v407
        %885 = vmatmul.mubr.f32.gmra.mrb[0].mxu0 %v300
        %v886 = vpop.f32.mrb[0].mxu0
        %v887 = vadd.f32 %v808, %v886
        %v888 = vpop.f32.mrb[0].mxu0
        %889 = vmatprep.mubr.f32.mxu0 %v409
        %890 = vmatmul.mubr.f32.gmra.mrb[0].mxu0 %v301
        %v891 = vpop.f32.mrb[0].mxu0
        %v892 = vadd.f32 %v808, %v891
        %v893 = vpop.f32.mrb[0].mxu0
        %894 = vmatprep.mubr.f32.mxu0 %v412
        %895 = vmatmul.mubr.f32.gmra.mrb[0].mxu0 %v303
        %v896 = vpop.f32.mrb[0].mxu0
        %v897 = vadd.f32 %v808, %v896
        %v898 = vpop.f32.mrb[0].mxu0
        %899 = vmatprep.mubr.f32.mxu0 %v414
        %900 = vmatmul.mubr.f32.gmra.mrb[0].mxu0 %v304
        %v901 = vpop.f32.mrb[0].mxu0
        %v902 = vadd.f32 %v808, %v901
        %v903 = vpop.f32.mrb[0].mxu0
        %904 = vmatprep.mubr.f32.mxu0 %v417
        %905 = vmatmul.mubr.f32.gmra.mrb[0].mxu0 %v306
        %v906 = vpop.f32.mrb[0].mxu0
        %v907 = vadd.f32 %v808, %v906
        %v908 = vpop.f32.mrb[0].mxu0
        %909 = vmatprep.mubr.f32.mxu0 %v419
        %910 = vmatmul.mubr.f32.gmra.mrb[0].mxu0 %v307
        %v911 = vpop.f32.mrb[0].mxu0
        %v912 = vadd.f32 %v808, %v911
        %v913 = vpop.f32.mrb[0].mxu0
        %914 = vmatprep.mubr.f32.mxu0 %v422
        %915 = vmatmul.mubr.f32.gmra.mrb[0].mxu0 %v309
        %v916 = vpop.f32.mrb[0].mxu0
        %v917 = vadd.f32 %v808, %v916
        %v918 = vpop.f32.mrb[0].mxu0
        %919 = vmatprep.mubr.f32.mxu0 %v424
        %920 = vmatmul.mubr.f32.gmra.mrb[0].mxu0 %v310
        %v921 = vpop.f32.mrb[0].mxu0
        %v922 = vadd.f32 %v808, %v921
        %v923 = vpop.f32.mrb[0].mxu0
        %924 = vmatprep.mubr.f32.mxu0 %v427
        %925 = vmatmul.mubr.f32.gmra.mrb[0].mxu0 %v312
        %v926 = vpop.f32.mrb[0].mxu0
        %v927 = vadd.f32 %v808, %v926
        %v928 = vpop.f32.mrb[0].mxu0
        %929 = vmatprep.mubr.f32.mxu0 %v429
        %930 = vmatmul.mubr.f32.gmra.mrb[0].mxu0 %v313
        %v931 = vpop.f32.mrb[0].mxu0
        %v932 = vadd.f32 %v808, %v931
        %v933 = vpop.f32.mrb[0].mxu0
        %934 = vmatprep.mubr.f32.mxu0 %v432
        %935 = vmatmul.mubr.f32.gmra.mrb[0].mxu0 %v315
        %v936 = vpop.f32.mrb[0].mxu0
        %v937 = vadd.f32 %v808, %v936
        %v938 = vpop.f32.mrb[0].mxu0
        %939 = vmatprep.mubr.f32.mxu0 %v434
        %940 = vmatmul.mubr.f32.gmra.mrb[0].mxu0 %v316
        %v941 = vpop.f32.mrb[0].mxu0
        %v942 = vadd.f32 %v808, %v941
        %v943 = vpop.f32.mrb[0].mxu0
        %944 = vmatprep.mubr.f32.mxu0 %v437
        %945 = vmatmul.mubr.f32.gmra.mrb[0].mxu0 %v318
        %v946 = vpop.f32.mrb[0].mxu0
        %v947 = vadd.f32 %v808, %v946
        %v948 = vpop.f32.mrb[0].mxu0
        %949 = vmatprep.mubr.f32.mxu0 %v439
        %950 = vmatmul.mubr.f32.gmra.mrb[0].mxu0 %v319
        %v951 = vpop.f32.mrb[0].mxu0
        %v952 = vadd.f32 %v808, %v951
        %v953 = vpop.f32.mrb[0].mxu0
        %954 = vmatprep.mubr.f32.mxu0 %v442
        %955 = vmatmul.mubr.f32.gmra.mrb[0].mxu0 %v321
        %v956 = vpop.f32.mrb[0].mxu0
        %v957 = vadd.f32 %v808, %v956
        %v958 = vpop.f32.mrb[0].mxu0
        %959 = vmatprep.mubr.f32.mxu0 %v444
        %960 = vmatmul.mubr.f32.gmra.mrb[0].mxu0 %v322
        %v961 = vpop.f32.mrb[0].mxu0
        %v962 = vadd.f32 %v808, %v961
        %v963 = vpop.f32.mrb[0].mxu0
        %964 = vmatprep.mubr.f32.mxu0 %v447
        %965 = vmatmul.mubr.f32.gmra.mrb[0].mxu0 %v324
        %v966 = vpop.f32.mrb[0].mxu0
        %v967 = vadd.f32 %v808, %v966
        %v968 = vpop.f32.mrb[0].mxu0
        %969 = vmatprep.mubr.f32.mxu0 %v449
        %970 = vmatmul.mubr.f32.gmra.mrb[0].mxu0 %v325
        %v971 = vpop.f32.mrb[0].mxu0
        %v972 = vadd.f32 %v808, %v971
        %v973 = vpop.f32.mrb[0].mxu0
        %974 = vmatprep.mubr.f32.mxu0 %v452
        %975 = vmatmul.mubr.f32.gmra.mrb[0].mxu0 %v327
        %v976 = vpop.f32.mrb[0].mxu0
        %v977 = vadd.f32 %v808, %v976
        %v978 = vpop.f32.mrb[0].mxu0
        %979 = vmatprep.mubr.f32.mxu0 %v454
        %980 = vmatmul.mubr.f32.gmra.mrb[0].mxu0 %v328
        %v981 = vpop.f32.mrb[0].mxu0
        %v982 = vadd.f32 %v808, %v981
        %v983 = vpop.f32.mrb[0].mxu0
        %984 = vmatprep.mubr.f32.mxu0 %v457
        %985 = vmatmul.mubr.f32.gmra.mrb[0].mxu0 %v330
        %v986 = vpop.f32.mrb[0].mxu0
        %v987 = vadd.f32 %v808, %v986
        %v988 = vpop.f32.mrb[0].mxu0
        %989 = vmatprep.mubr.f32.mxu0 %v459
        %990 = vmatmul.mubr.f32.gmra.mrb[0].mxu0 %v331
        %v991 = vpop.f32.mrb[0].mxu0
        %v992 = vadd.f32 %v808, %v991
        %v993 = vpop.f32.mrb[0].mxu0
        %994 = vmatprep.mubr.f32.mxu0 %v462
        %995 = vmatmul.mubr.f32.gmra.mrb[0].mxu0 %v333
        %v996 = vpop.f32.mrb[0].mxu0
        %v997 = vadd.f32 %v808, %v996
        %v998 = vpop.f32.mrb[0].mxu0
        %999 = vmatprep.mubr.f32.mxu0 %v464
        %1000 = vmatmul.mubr.f32.gmra.mrb[0].mxu0 %v334
        %v1001 = vpop.f32.mrb[0].mxu0
        %v1002 = vadd.f32 %v808, %v1001
        %v1003 = vpop.f32.mrb[0].mxu0
        %1004 = vmatprep.mubr.f32.mxu0 %v467
        %1005 = vmatmul.mubr.f32.gmra.mrb[0].mxu0 %v336
        %v1006 = vpop.f32.mrb[0].mxu0
        %v1007 = vadd.f32 %v808, %v1006
        %v1008 = vpop.f32.mrb[0].mxu0
        %1009 = vmatprep.mubr.f32.mxu0 %v469
        %1010 = vmatmul.mubr.f32.gmra.mrb[0].mxu0 %v337
        %v1011 = vpop.f32.mrb[0].mxu0
        %v1012 = vadd.f32 %v808, %v1011
        %v1013 = vpop.f32.mrb[0].mxu0
        %1014 = vmatprep.mubr.f32.mxu0 %v472
        %1015 = vmatmul.mubr.f32.gmra.mrb[0].mxu0 %v339
        %v1016 = vpop.f32.mrb[0].mxu0
        %v1017 = vadd.f32 %v808, %v1016
        %v1018 = vpop.f32.mrb[0].mxu0
        %1019 = vmatprep.mubr.f32.mxu0 %v474
        %1020 = vmatmul.mubr.f32.gmra.mrb[0].mxu0 %v340
        %v1021 = vpop.f32.mrb[0].mxu0
        %v1022 = vadd.f32 %v808, %v1021
        %v1023 = vpop.f32.mrb[0].mxu0
        %1024 = vmatprep.mubr.f32.mxu0 %v477
        %1025 = vmatmul.mubr.f32.gmra.mrb[0].mxu0 %v342
        %v1026 = vpop.f32.mrb[0].mxu0
        %v1027 = vadd.f32 %v808, %v1026
        %v1028 = vpop.f32.mrb[0].mxu0
        %1029 = vmatprep.mubr.f32.mxu0 %v479
        %1030 = vmatmul.mubr.f32.gmra.mrb[0].mxu0 %v343
        %v1031 = vpop.f32.mrb[0].mxu0
        %v1032 = vadd.f32 %v808, %v1031
        %v1033 = vpop.f32.mrb[0].mxu0
        %1034 = vdwg.mxu0
        %1035 = vmatprep.subr.mxu0 0.0
        %1036 = vmatpush1.msra.mxu0 %v691
        %1037 = vmatprep.subr.mxu0 0.0
        %1038 = vmatpush1.msra.mxu0 %v692
        %1039 = vmatprep.subr.mxu0 0.0
        %1040 = vmatpush1.msra.mxu0 %v693
        %1041 = vmatprep.subr.mxu0 0.0
        %1042 = vmatpush1.msra.mxu0 %v694
        %1043 = vmatprep.subr.mxu0 0.0
        %1044 = vmatpush1.msra.mxu0 %v695
        %1045 = vmatprep.subr.mxu0 0.0
        %1046 = vmatpush1.msra.mxu0 %v696
        %1047 = vmatprep.subr.mxu0 0.0
        %1048 = vmatpush1.msra.mxu0 %v697
        %1049 = vmatprep.subr.mxu0 0.0
        %1050 = vmatpush1.msra.mxu0 %v698
        %1051 = vmatprep.subr.mxu0 0.0
        %1052 = vmatpush1.msra.mxu0 %v699
        %1053 = vmatprep.subr.mxu0 0.0
        %1054 = vmatpush1.msra.mxu0 %v700
        %1055 = vmatprep.subr.mxu0 0.0
        %1056 = vmatpush1.msra.mxu0 %v701
        %1057 = vmatprep.subr.mxu0 0.0
        %1058 = vmatpush1.msra.mxu0 %v702
        %1059 = vmatprep.subr.mxu0 0.0
        %1060 = vmatpush1.msra.mxu0 %v703
        %1061 = vmatprep.subr.mxu0 0.0
        %1062 = vmatpush1.msra.mxu0 %v704
        %1063 = vmatprep.subr.mxu0 0.0
        %1064 = vmatpush1.msra.mxu0 %v705
        %1065 = vmatprep.subr.mxu0 0.0
        %1066 = vmatpush1.msra.mxu0 %v706
        %1067 = vmatprep.subr.mxu0 0.0
        %1068 = vmatpush1.msra.mxu0 %v707
        %1069 = vmatprep.subr.mxu0 0.0
        %1070 = vmatpush1.msra.mxu0 %v708
        %1071 = vmatprep.subr.mxu0 0.0
        %1072 = vmatpush1.msra.mxu0 %v709
        %1073 = vmatprep.subr.mxu0 0.0
        %1074 = vmatpush1.msra.mxu0 %v710
        %1075 = vmatprep.subr.mxu0 0.0
        %1076 = vmatpush1.msra.mxu0 %v711
        %1077 = vmatprep.subr.mxu0 0.0
        %1078 = vmatpush1.msra.mxu0 %v712
        %1079 = vmatprep.subr.mxu0 0.0
        %1080 = vmatpush1.msra.mxu0 %v713
        %1081 = vmatprep.subr.mxu0 0.0
        %1082 = vmatpush1.msra.mxu0 %v714
        %1083 = vmatprep.subr.mxu0 0.0
        %1084 = vmatpush1.msra.mxu0 %v715
        %1085 = vmatprep.subr.mxu0 0.0
        %1086 = vmatpush1.msra.mxu0 %v716
        %1087 = vmatprep.subr.mxu0 0.0
        %1088 = vmatpush1.msra.mxu0 %v717
        %1089 = vmatprep.subr.mxu0 0.0
        %1090 = vmatpush1.msra.mxu0 %v718
        %1091 = vmatprep.subr.mxu0 0.0
        %1092 = vmatpush1.msra.mxu0 %v719
        %1093 = vmatprep.subr.mxu0 0.0
        %1094 = vmatpush1.msra.mxu0 %v720
        %1095 = vmatprep.subr.mxu0 0.0
        %1096 = vmatpush1.msra.mxu0 %v721
        %1097 = vmatprep.subr.mxu0 0.0
        %1098 = vmatpush1.msra.mxu0 %v722
        %1099 = vmatprep.mubr.f32.mxu0 %v300
        %1100 = vmatmul.mubr.f32.gmra.mrb[0].mxu0 %v515
        %v1101 = vpop.f32.mrb[0].mxu0
        %v1102 = vadd.f32 %v877, %v1101
        %v1103 = vpop.f32.mrb[0].mxu0
        %1104 = vmatprep.mubr.f32.mxu0 %v301
        %1105 = vmatmul.mubr.f32.gmra.mrb[0].mxu0 %v517
        %v1106 = vpop.f32.mrb[0].mxu0
        %v1107 = vadd.f32 %v882, %v1106
        %v1108 = vpop.f32.mrb[0].mxu0
        %1109 = vmatprep.mubr.f32.mxu0 %v303
        %1110 = vmatmul.mubr.f32.gmra.mrb[0].mxu0 %v520
        %v1111 = vpop.f32.mrb[0].mxu0
        %v1112 = vadd.f32 %v887, %v1111
        %v1113 = vpop.f32.mrb[0].mxu0
        %1114 = vmatprep.mubr.f32.mxu0 %v304
        %1115 = vmatmul.mubr.f32.gmra.mrb[0].mxu0 %v522
        %v1116 = vpop.f32.mrb[0].mxu0
        %v1117 = vadd.f32 %v892, %v1116
        %v1118 = vpop.f32.mrb[0].mxu0
        %1119 = vmatprep.mubr.f32.mxu0 %v306
        %1120 = vmatmul.mubr.f32.gmra.mrb[0].mxu0 %v525
        %v1121 = vpop.f32.mrb[0].mxu0
        %v1122 = vadd.f32 %v897, %v1121
        %v1123 = vpop.f32.mrb[0].mxu0
        %1124 = vmatprep.mubr.f32.mxu0 %v307
        %1125 = vmatmul.mubr.f32.gmra.mrb[0].mxu0 %v527
        %v1126 = vpop.f32.mrb[0].mxu0
        %v1127 = vadd.f32 %v902, %v1126
        %v1128 = vpop.f32.mrb[0].mxu0
        %1129 = vmatprep.mubr.f32.mxu0 %v309
        %1130 = vmatmul.mubr.f32.gmra.mrb[0].mxu0 %v530
        %v1131 = vpop.f32.mrb[0].mxu0
        %v1132 = vadd.f32 %v907, %v1131
        %v1133 = vpop.f32.mrb[0].mxu0
        %1134 = vmatprep.mubr.f32.mxu0 %v310
        %1135 = vmatmul.mubr.f32.gmra.mrb[0].mxu0 %v532
        %v1136 = vpop.f32.mrb[0].mxu0
        %v1137 = vadd.f32 %v912, %v1136
        %v1138 = vpop.f32.mrb[0].mxu0
        %1139 = vmatprep.mubr.f32.mxu0 %v312
        %1140 = vmatmul.mubr.f32.gmra.mrb[0].mxu0 %v535
        %v1141 = vpop.f32.mrb[0].mxu0
        %v1142 = vadd.f32 %v917, %v1141
        %v1143 = vpop.f32.mrb[0].mxu0
        %1144 = vmatprep.mubr.f32.mxu0 %v313
        %1145 = vmatmul.mubr.f32.gmra.mrb[0].mxu0 %v537
        %v1146 = vpop.f32.mrb[0].mxu0
        %v1147 = vadd.f32 %v922, %v1146
        %v1148 = vpop.f32.mrb[0].mxu0
        %1149 = vmatprep.mubr.f32.mxu0 %v315
        %1150 = vmatmul.mubr.f32.gmra.mrb[0].mxu0 %v540
        %v1151 = vpop.f32.mrb[0].mxu0
        %v1152 = vadd.f32 %v927, %v1151
        %v1153 = vpop.f32.mrb[0].mxu0
        %1154 = vmatprep.mubr.f32.mxu0 %v316
        %1155 = vmatmul.mubr.f32.gmra.mrb[0].mxu0 %v542
        %v1156 = vpop.f32.mrb[0].mxu0
        %v1157 = vadd.f32 %v932, %v1156
        %v1158 = vpop.f32.mrb[0].mxu0
        %1159 = vmatprep.mubr.f32.mxu0 %v318
        %1160 = vmatmul.mubr.f32.gmra.mrb[0].mxu0 %v545
        %v1161 = vpop.f32.mrb[0].mxu0
        %v1162 = vadd.f32 %v937, %v1161
        %v1163 = vpop.f32.mrb[0].mxu0
        %1164 = vmatprep.mubr.f32.mxu0 %v319
        %1165 = vmatmul.mubr.f32.gmra.mrb[0].mxu0 %v547
        %v1166 = vpop.f32.mrb[0].mxu0
        %v1167 = vadd.f32 %v942, %v1166
        %v1168 = vpop.f32.mrb[0].mxu0
        %1169 = vmatprep.mubr.f32.mxu0 %v321
        %1170 = vmatmul.mubr.f32.gmra.mrb[0].mxu0 %v550
        %v1171 = vpop.f32.mrb[0].mxu0
        %v1172 = vadd.f32 %v947, %v1171
        %v1173 = vpop.f32.mrb[0].mxu0
        %1174 = vmatprep.mubr.f32.mxu0 %v322
        %1175 = vmatmul.mubr.f32.gmra.mrb[0].mxu0 %v552
        %v1176 = vpop.f32.mrb[0].mxu0
        %v1177 = vadd.f32 %v952, %v1176
        %v1178 = vpop.f32.mrb[0].mxu0
        %1179 = vmatprep.mubr.f32.mxu0 %v324
        %1180 = vmatmul.mubr.f32.gmra.mrb[0].mxu0 %v555
        %v1181 = vpop.f32.mrb[0].mxu0
        %v1182 = vadd.f32 %v957, %v1181
        %v1183 = vpop.f32.mrb[0].mxu0
        %1184 = vmatprep.mubr.f32.mxu0 %v325
        %1185 = vmatmul.mubr.f32.gmra.mrb[0].mxu0 %v557
        %v1186 = vpop.f32.mrb[0].mxu0
        %v1187 = vadd.f32 %v962, %v1186
        %v1188 = vpop.f32.mrb[0].mxu0
        %1189 = vmatprep.mubr.f32.mxu0 %v327
        %1190 = vmatmul.mubr.f32.gmra.mrb[0].mxu0 %v560
        %v1191 = vpop.f32.mrb[0].mxu0
        %v1192 = vadd.f32 %v967, %v1191
        %v1193 = vpop.f32.mrb[0].mxu0
        %1194 = vmatprep.mubr.f32.mxu0 %v328
        %1195 = vmatmul.mubr.f32.gmra.mrb[0].mxu0 %v562
        %v1196 = vpop.f32.mrb[0].mxu0
        %v1197 = vadd.f32 %v972, %v1196
        %v1198 = vpop.f32.mrb[0].mxu0
        %1199 = vmatprep.mubr.f32.mxu0 %v330
        %1200 = vmatmul.mubr.f32.gmra.mrb[0].mxu0 %v565
        %v1201 = vpop.f32.mrb[0].mxu0
        %v1202 = vadd.f32 %v977, %v1201
        %v1203 = vpop.f32.mrb[0].mxu0
        %1204 = vmatprep.mubr.f32.mxu0 %v331
        %1205 = vmatmul.mubr.f32.gmra.mrb[0].mxu0 %v567
        %v1206 = vpop.f32.mrb[0].mxu0
        %v1207 = vadd.f32 %v982, %v1206
        %v1208 = vpop.f32.mrb[0].mxu0
        %1209 = vmatprep.mubr.f32.mxu0 %v333
        %1210 = vmatmul.mubr.f32.gmra.mrb[0].mxu0 %v570
        %v1211 = vpop.f32.mrb[0].mxu0
        %v1212 = vadd.f32 %v987, %v1211
        %v1213 = vpop.f32.mrb[0].mxu0
        %1214 = vmatprep.mubr.f32.mxu0 %v334
        %1215 = vmatmul.mubr.f32.gmra.mrb[0].mxu0 %v572
        %v1216 = vpop.f32.mrb[0].mxu0
        %v1217 = vadd.f32 %v992, %v1216
        %v1218 = vpop.f32.mrb[0].mxu0
        %1219 = vmatprep.mubr.f32.mxu0 %v336
        %1220 = vmatmul.mubr.f32.gmra.mrb[0].mxu0 %v575
        %v1221 = vpop.f32.mrb[0].mxu0
        %v1222 = vadd.f32 %v997, %v1221
        %v1223 = vpop.f32.mrb[0].mxu0
        %1224 = vmatprep.mubr.f32.mxu0 %v337
        %1225 = vmatmul.mubr.f32.gmra.mrb[0].mxu0 %v577
        %v1226 = vpop.f32.mrb[0].mxu0
        %v1227 = vadd.f32 %v1002, %v1226
        %v1228 = vpop.f32.mrb[0].mxu0
        %1229 = vmatprep.mubr.f32.mxu0 %v339
        %1230 = vmatmul.mubr.f32.gmra.mrb[0].mxu0 %v580
        %v1231 = vpop.f32.mrb[0].mxu0
        %v1232 = vadd.f32 %v1007, %v1231
        %v1233 = vpop.f32.mrb[0].mxu0
        %1234 = vmatprep.mubr.f32.mxu0 %v340
        %1235 = vmatmul.mubr.f32.gmra.mrb[0].mxu0 %v582
        %v1236 = vpop.f32.mrb[0].mxu0
        %v1237 = vadd.f32 %v1012, %v1236
        %v1238 = vpop.f32.mrb[0].mxu0
        %1239 = vmatprep.mubr.f32.mxu0 %v342
        %1240 = vmatmul.mubr.f32.gmra.mrb[0].mxu0 %v585
        %v1241 = vpop.f32.mrb[0].mxu0
        %v1242 = vadd.f32 %v1017, %v1241
        %v1243 = vpop.f32.mrb[0].mxu0
        %1244 = vmatprep.mubr.f32.mxu0 %v343
        %1245 = vmatmul.mubr.f32.gmra.mrb[0].mxu0 %v587
        %v1246 = vpop.f32.mrb[0].mxu0
        %v1247 = vadd.f32 %v1022, %v1246
        %v1248 = vpop.f32.mrb[0].mxu0
        %1249 = vmatprep.mubr.f32.mxu0 %v345
        %1250 = vmatmul.mubr.f32.gmra.mrb[0].mxu0 %v590
        %v1251 = vpop.f32.mrb[0].mxu0
        %v1252 = vadd.f32 %v1027, %v1251
        %v1253 = vpop.f32.mrb[0].mxu0
        %1254 = vmatprep.mubr.f32.mxu0 %v346
        %1255 = vmatmul.mubr.f32.gmra.mrb[0].mxu0 %v592
        %v1256 = vpop.f32.mrb[0].mxu0
        %v1257 = vadd.f32 %v1032, %v1256
        %v1258 = vpop.f32.mrb[0].mxu0
        %1259 = vdwg.mxu0
        %1260 = vmatprep.subr.mxu0 0.0
        %1261 = vmatpush1.msra.mxu0 %v723
        %1262 = vmatprep.subr.mxu0 0.0
        %1263 = vmatpush1.msra.mxu0 %v724
        %1264 = vmatprep.subr.mxu0 0.0
        %1265 = vmatpush1.msra.mxu0 %v725
        %1266 = vmatprep.subr.mxu0 0.0
        %1267 = vmatpush1.msra.mxu0 %v726
        %1268 = vmatprep.subr.mxu0 0.0
        %1269 = vmatpush1.msra.mxu0 %v727
        %1270 = vmatprep.subr.mxu0 0.0
        %1271 = vmatpush1.msra.mxu0 %v728
        %1272 = vmatprep.subr.mxu0 0.0
        %1273 = vmatpush1.msra.mxu0 %v729
        %1274 = vmatprep.subr.mxu0 0.0
        %1275 = vmatpush1.msra.mxu0 %v730
        %1276 = vmatprep.subr.mxu0 0.0
        %1277 = vmatpush1.msra.mxu0 %v731
        %1278 = vmatprep.subr.mxu0 0.0
        %1279 = vmatpush1.msra.mxu0 %v732
        %1280 = vmatprep.subr.mxu0 0.0
        %1281 = vmatpush1.msra.mxu0 %v733
        %1282 = vmatprep.subr.mxu0 0.0
        %1283 = vmatpush1.msra.mxu0 %v734
        %1284 = vmatprep.subr.mxu0 0.0
        %1285 = vmatpush1.msra.mxu0 %v735
        %1286 = vmatprep.subr.mxu0 0.0
        %1287 = vmatpush1.msra.mxu0 %v736
        %1288 = vmatprep.subr.mxu0 0.0
        %1289 = vmatpush1.msra.mxu0 %v737
        %1290 = vmatprep.subr.mxu0 0.0
        %1291 = vmatpush1.msra.mxu0 %v738
        %1292 = vmatprep.subr.mxu0 0.0
        %1293 = vmatpush1.msra.mxu0 %v739
        %1294 = vmatprep.subr.mxu0 0.0
        %1295 = vmatpush1.msra.mxu0 %v740
        %1296 = vmatprep.subr.mxu0 0.0
        %1297 = vmatpush1.msra.mxu0 %v741
        %1298 = vmatprep.subr.mxu0 0.0
        %1299 = vmatpush1.msra.mxu0 %v742
        %1300 = vmatprep.subr.mxu0 0.0
        %1301 = vmatpush1.msra.mxu0 %v743
        %1302 = vmatprep.subr.mxu0 0.0
        %1303 = vmatpush1.msra.mxu0 %v744
        %1304 = vmatprep.subr.mxu0 0.0
        %1305 = vmatpush1.msra.mxu0 %v745
        %1306 = vmatprep.subr.mxu0 0.0
        %1307 = vmatpush1.msra.mxu0 %v746
        %1308 = vmatprep.subr.mxu0 0.0
        %1309 = vmatpush1.msra.mxu0 %v747
        %1310 = vmatprep.subr.mxu0 0.0
        %1311 = vmatpush1.msra.mxu0 %v748
        %1312 = vmatprep.subr.mxu0 0.0
        %1313 = vmatpush1.msra.mxu0 %v749
        %1314 = vmatprep.subr.mxu0 0.0
        %1315 = vmatpush1.msra.mxu0 %v750
        %1316 = vmatprep.subr.mxu0 0.0
        %1317 = vmatpush1.msra.mxu0 %v751
        %1318 = vmatprep.subr.mxu0 0.0
        %1319 = vmatpush1.msra.mxu0 %v752
        %1320 = vmatprep.subr.mxu0 0.0
        %1321 = vmatpush1.msra.mxu0 %v753
        %1322 = vmatprep.subr.mxu0 0.0
        %1323 = vmatpush1.msra.mxu0 %v754
        %1324 = vmatprep.mubr.f32.mxu0 %v520
        %1325 = vmatmul.mubr.f32.gmra.mrb[0].mxu0 %v407
        %v1326 = vpop.f32.mrb[0].mxu0
        %v1327 = vadd.f32 %v1102, %v1326
        %v1328 = vpop.f32.mrb[0].mxu0
        %1329 = vmatprep.mubr.f32.mxu0 %v522
        %1330 = vmatmul.mubr.f32.gmra.mrb[0].mxu0 %v409
        %v1331 = vpop.f32.mrb[0].mxu0
        %v1332 = vadd.f32 %v1107, %v1331
        %v1333 = vpop.f32.mrb[0].mxu0
        %1334 = vmatprep.mubr.f32.mxu0 %v525
        %1335 = vmatmul.mubr.f32.gmra.mrb[0].mxu0 %v412
        %v1336 = vpop.f32.mrb[0].mxu0
        %v1337 = vadd.f32 %v1112, %v1336
        %v1338 = vpop.f32.mrb[0].mxu0
        %1339 = vmatprep.mubr.f32.mxu0 %v527
        %1340 = vmatmul.mubr.f32.gmra.mrb[0].mxu0 %v414
        %v1341 = vpop.f32.mrb[0].mxu0
        %v1342 = vadd.f32 %v1117, %v1341
        %v1343 = vpop.f32.mrb[0].mxu0
        %1344 = vmatprep.mubr.f32.mxu0 %v530
        %1345 = vmatmul.mubr.f32.gmra.mrb[0].mxu0 %v417
        %v1346 = vpop.f32.mrb[0].mxu0
        %v1347 = vadd.f32 %v1122, %v1346
        %v1348 = vpop.f32.mrb[0].mxu0
        %1349 = vmatprep.mubr.f32.mxu0 %v532
        %1350 = vmatmul.mubr.f32.gmra.mrb[0].mxu0 %v419
        %v1351 = vpop.f32.mrb[0].mxu0
        %v1352 = vadd.f32 %v1127, %v1351
        %v1353 = vpop.f32.mrb[0].mxu0
        %1354 = vmatprep.mubr.f32.mxu0 %v535
        %1355 = vmatmul.mubr.f32.gmra.mrb[0].mxu0 %v422
        %v1356 = vpop.f32.mrb[0].mxu0
        %v1357 = vadd.f32 %v1132, %v1356
        %v1358 = vpop.f32.mrb[0].mxu0
        %1359 = vmatprep.mubr.f32.mxu0 %v537
        %1360 = vmatmul.mubr.f32.gmra.mrb[0].mxu0 %v424
        %v1361 = vpop.f32.mrb[0].mxu0
        %v1362 = vadd.f32 %v1137, %v1361
        %v1363 = vpop.f32.mrb[0].mxu0
        %1364 = vmatprep.mubr.f32.mxu0 %v540
        %1365 = vmatmul.mubr.f32.gmra.mrb[0].mxu0 %v427
        %v1366 = vpop.f32.mrb[0].mxu0
        %v1367 = vadd.f32 %v1142, %v1366
        %v1368 = vpop.f32.mrb[0].mxu0
        %1369 = vmatprep.mubr.f32.mxu0 %v542
        %1370 = vmatmul.mubr.f32.gmra.mrb[0].mxu0 %v429
        %v1371 = vpop.f32.mrb[0].mxu0
        %v1372 = vadd.f32 %v1147, %v1371
        %v1373 = vpop.f32.mrb[0].mxu0
        %1374 = vmatprep.mubr.f32.mxu0 %v545
        %1375 = vmatmul.mubr.f32.gmra.mrb[0].mxu0 %v432
        %v1376 = vpop.f32.mrb[0].mxu0
        %v1377 = vadd.f32 %v1152, %v1376
        %v1378 = vpop.f32.mrb[0].mxu0
        %1379 = vmatprep.mubr.f32.mxu0 %v547
        %1380 = vmatmul.mubr.f32.gmra.mrb[0].mxu0 %v434
        %v1381 = vpop.f32.mrb[0].mxu0
        %v1382 = vadd.f32 %v1157, %v1381
        %v1383 = vpop.f32.mrb[0].mxu0
        %1384 = vmatprep.mubr.f32.mxu0 %v550
        %1385 = vmatmul.mubr.f32.gmra.mrb[0].mxu0 %v437
        %v1386 = vpop.f32.mrb[0].mxu0
        %v1387 = vadd.f32 %v1162, %v1386
        %v1388 = vpop.f32.mrb[0].mxu0
        %1389 = vmatprep.mubr.f32.mxu0 %v552
        %1390 = vmatmul.mubr.f32.gmra.mrb[0].mxu0 %v439
        %v1391 = vpop.f32.mrb[0].mxu0
        %v1392 = vadd.f32 %v1167, %v1391
        %v1393 = vpop.f32.mrb[0].mxu0
        %1394 = vmatprep.mubr.f32.mxu0 %v555
        %1395 = vmatmul.mubr.f32.gmra.mrb[0].mxu0 %v442
        %v1396 = vpop.f32.mrb[0].mxu0
        %v1397 = vadd.f32 %v1172, %v1396
        %v1398 = vpop.f32.mrb[0].mxu0
        %1399 = vmatprep.mubr.f32.mxu0 %v557
        %1400 = vmatmul.mubr.f32.gmra.mrb[0].mxu0 %v444
        %v1401 = vpop.f32.mrb[0].mxu0
        %v1402 = vadd.f32 %v1177, %v1401
        %v1403 = vpop.f32.mrb[0].mxu0
        %1404 = vmatprep.mubr.f32.mxu0 %v560
        %1405 = vmatmul.mubr.f32.gmra.mrb[0].mxu0 %v447
        %v1406 = vpop.f32.mrb[0].mxu0
        %v1407 = vadd.f32 %v1182, %v1406
        %v1408 = vpop.f32.mrb[0].mxu0
        %1409 = vmatprep.mubr.f32.mxu0 %v562
        %1410 = vmatmul.mubr.f32.gmra.mrb[0].mxu0 %v449
        %v1411 = vpop.f32.mrb[0].mxu0
        %v1412 = vadd.f32 %v1187, %v1411
        %v1413 = vpop.f32.mrb[0].mxu0
        %1414 = vmatprep.mubr.f32.mxu0 %v565
        %1415 = vmatmul.mubr.f32.gmra.mrb[0].mxu0 %v452
        %v1416 = vpop.f32.mrb[0].mxu0
        %v1417 = vadd.f32 %v1192, %v1416
        %v1418 = vpop.f32.mrb[0].mxu0
        %1419 = vmatprep.mubr.f32.mxu0 %v567
        %1420 = vmatmul.mubr.f32.gmra.mrb[0].mxu0 %v454
        %v1421 = vpop.f32.mrb[0].mxu0
        %v1422 = vadd.f32 %v1197, %v1421
        %v1423 = vpop.f32.mrb[0].mxu0
        %1424 = vmatprep.mubr.f32.mxu0 %v570
        %1425 = vmatmul.mubr.f32.gmra.mrb[0].mxu0 %v457
        %v1426 = vpop.f32.mrb[0].mxu0
        %v1427 = vadd.f32 %v1202, %v1426
        %v1428 = vpop.f32.mrb[0].mxu0
        %1429 = vmatprep.mubr.f32.mxu0 %v572
        %1430 = vmatmul.mubr.f32.gmra.mrb[0].mxu0 %v459
        %v1431 = vpop.f32.mrb[0].mxu0
        %v1432 = vadd.f32 %v1207, %v1431
        %v1433 = vpop.f32.mrb[0].mxu0
        %1434 = vmatprep.mubr.f32.mxu0 %v575
        %1435 = vmatmul.mubr.f32.gmra.mrb[0].mxu0 %v462
        %v1436 = vpop.f32.mrb[0].mxu0
        %v1437 = vadd.f32 %v1212, %v1436
        %v1438 = vpop.f32.mrb[0].mxu0
        %1439 = vmatprep.mubr.f32.mxu0 %v577
        %1440 = vmatmul.mubr.f32.gmra.mrb[0].mxu0 %v464
        %v1441 = vpop.f32.mrb[0].mxu0
        %v1442 = vadd.f32 %v1217, %v1441
        %v1443 = vpop.f32.mrb[0].mxu0
        %1444 = vmatprep.mubr.f32.mxu0 %v580
        %1445 = vmatmul.mubr.f32.gmra.mrb[0].mxu0 %v467
        %v1446 = vpop.f32.mrb[0].mxu0
        %v1447 = vadd.f32 %v1222, %v1446
        %v1448 = vpop.f32.mrb[0].mxu0
        %1449 = vmatprep.mubr.f32.mxu0 %v582
        %1450 = vmatmul.mubr.f32.gmra.mrb[0].mxu0 %v469
        %v1451 = vpop.f32.mrb[0].mxu0
        %v1452 = vadd.f32 %v1227, %v1451
        %v1453 = vpop.f32.mrb[0].mxu0
        %1454 = vmatprep.mubr.f32.mxu0 %v585
        %1455 = vmatmul.mubr.f32.gmra.mrb[0].mxu0 %v472
        %v1456 = vpop.f32.mrb[0].mxu0
        %v1457 = vadd.f32 %v1232, %v1456
        %v1458 = vpop.f32.mrb[0].mxu0
        %1459 = vmatprep.mubr.f32.mxu0 %v587
        %1460 = vmatmul.mubr.f32.gmra.mrb[0].mxu0 %v474
        %v1461 = vpop.f32.mrb[0].mxu0
        %v1462 = vadd.f32 %v1237, %v1461
        %v1463 = vpop.f32.mrb[0].mxu0
        %1464 = vmatprep.mubr.f32.mxu0 %v590
        %1465 = vmatmul.mubr.f32.gmra.mrb[0].mxu0 %v477
        %v1466 = vpop.f32.mrb[0].mxu0
        %v1467 = vadd.f32 %v1242, %v1466
        %v1468 = vpop.f32.mrb[0].mxu0
        %1469 = vmatprep.mubr.f32.mxu0 %v592
        %1470 = vmatmul.mubr.f32.gmra.mrb[0].mxu0 %v479
        %v1471 = vpop.f32.mrb[0].mxu0
        %v1472 = vadd.f32 %v1247, %v1471
        %v1473 = vpop.f32.mrb[0].mxu0
        %1474 = vmatprep.mubr.f32.mxu0 %v637
        %1475 = vmatmul.mubr.f32.gmra.mrb[0].mxu0 %v630
        %v1476 = vpop.f32.mrb[0].mxu0
        %v1477 = vadd.f32 %v1252, %v1476
        %v1478 = vpop.f32.mrb[0].mxu0
        %1479 = vmatprep.mubr.f32.mxu0 %v639
        %1480 = vmatmul.mubr.f32.gmra.mrb[0].mxu0 %v632
        %v1481 = vpop.f32.mrb[0].mxu0
        %v1482 = vadd.f32 %v1257, %v1481
        %v1483 = vpop.f32.mrb[0].mxu0
        %1484 = vdwg.mxu0
        %1485 = vmatprep.subr.mxu0 0.0
        %1486 = vmatpush1.msra.mxu0 %v755
        %1487 = vmatprep.subr.mxu0 0.0
        %1488 = vmatpush1.msra.mxu0 %v756
        %1489 = vmatprep.subr.mxu0 0.0
        %1490 = vmatpush1.msra.mxu0 %v757
        %1491 = vmatprep.subr.mxu0 0.0
        %1492 = vmatpush1.msra.mxu0 %v758
        %1493 = vmatprep.subr.mxu0 0.0
        %1494 = vmatpush1.msra.mxu0 %v759
        %1495 = vmatprep.subr.mxu0 0.0
        %1496 = vmatpush1.msra.mxu0 %v760
        %1497 = vmatprep.subr.mxu0 0.0
        %1498 = vmatpush1.msra.mxu0 %v761
        %1499 = vmatprep.subr.mxu0 0.0
        %1500 = vmatpush1.msra.mxu0 %v762
        %1501 = vmatprep.subr.mxu0 0.0
        %1502 = vmatpush1.msra.mxu0 %v763
        %1503 = vmatprep.subr.mxu0 0.0
        %1504 = vmatpush1.msra.mxu0 %v764
        %1505 = vmatprep.subr.mxu0 0.0
        %1506 = vmatpush1.msra.mxu0 %v765
        %1507 = vmatprep.subr.mxu0 0.0
        %1508 = vmatpush1.msra.mxu0 %v766
        %1509 = vmatprep.subr.mxu0 0.0
        %1510 = vmatpush1.msra.mxu0 %v767
        %1511 = vmatprep.subr.mxu0 0.0
        %1512 = vmatpush1.msra.mxu0 %v768
        %1513 = vmatprep.subr.mxu0 0.0
        %1514 = vmatpush1.msra.mxu0 %v769
        %1515 = vmatprep.subr.mxu0 0.0
        %1516 = vmatpush1.msra.mxu0 %v770
        %1517 = vmatprep.subr.mxu0 0.0
        %1518 = vmatpush1.msra.mxu0 %v771
        %1519 = vmatprep.subr.mxu0 0.0
        %1520 = vmatpush1.msra.mxu0 %v772
        %1521 = vmatprep.subr.mxu0 0.0
        %1522 = vmatpush1.msra.mxu0 %v773
        %1523 = vmatprep.subr.mxu0 0.0
        %1524 = vmatpush1.msra.mxu0 %v774
        %1525 = vmatprep.subr.mxu0 0.0
        %1526 = vmatpush1.msra.mxu0 %v775
        %1527 = vmatprep.subr.mxu0 0.0
        %1528 = vmatpush1.msra.mxu0 %v776
        %1529 = vmatprep.subr.mxu0 0.0
        %1530 = vmatpush1.msra.mxu0 %v777
        %1531 = vmatprep.subr.mxu0 0.0
        %1532 = vmatpush1.msra.mxu0 %v778
        %1533 = vmatprep.subr.mxu0 0.0
        %1534 = vmatpush1.msra.mxu0 %v779
        %1535 = vmatprep.subr.mxu0 0.0
        %1536 = vmatpush1.msra.mxu0 %v780
        %1537 = vmatprep.subr.mxu0 0.0
        %1538 = vmatpush1.msra.mxu0 %v781
        %1539 = vmatprep.subr.mxu0 0.0
        %1540 = vmatpush1.msra.mxu0 %v782
        %1541 = vmatprep.subr.mxu0 0.0
        %1542 = vmatpush1.msra.mxu0 %v783
        %1543 = vmatprep.subr.mxu0 0.0
        %1544 = vmatpush1.msra.mxu0 %v784
        %1545 = vmatprep.subr.mxu0 0.0
        %1546 = vmatpush1.msra.mxu0 %v785
        %1547 = vmatprep.subr.mxu0 0.0
        %1548 = vmatpush1.msra.mxu0 %v786
        %1549 = vmatprep.mubr.f32.mxu0 %v412
        %1550 = vmatmul.mubr.f32.gmra.mrb[0].mxu0 %v303
        %v1551 = vpop.f32.mrb[0].mxu0
        %v1552 = vadd.f32 %v1327, %v1551
        %v1553 = vpop.f32.mrb[0].mxu0
        %1554 = vmatprep.mubr.f32.mxu0 %v414
        %1555 = vmatmul.mubr.f32.gmra.mrb[0].mxu0 %v304
        %v1556 = vpop.f32.mrb[0].mxu0
        %v1557 = vadd.f32 %v1332, %v1556
        %v1558 = vpop.f32.mrb[0].mxu0
        %1559 = vmatprep.mubr.f32.mxu0 %v417
        %1560 = vmatmul.mubr.f32.gmra.mrb[0].mxu0 %v306
        %v1561 = vpop.f32.mrb[0].mxu0
        %v1562 = vadd.f32 %v1337, %v1561
        %v1563 = vpop.f32.mrb[0].mxu0
        %1564 = vmatprep.mubr.f32.mxu0 %v419
        %1565 = vmatmul.mubr.f32.gmra.mrb[0].mxu0 %v307
        %v1566 = vpop.f32.mrb[0].mxu0
        %v1567 = vadd.f32 %v1342, %v1566
        %v1568 = vpop.f32.mrb[0].mxu0
        %1569 = vmatprep.mubr.f32.mxu0 %v422
        %1570 = vmatmul.mubr.f32.gmra.mrb[0].mxu0 %v309
        %v1571 = vpop.f32.mrb[0].mxu0
        %v1572 = vadd.f32 %v1347, %v1571
        %v1573 = vpop.f32.mrb[0].mxu0
        %1574 = vmatprep.mubr.f32.mxu0 %v424
        %1575 = vmatmul.mubr.f32.gmra.mrb[0].mxu0 %v310
        %v1576 = vpop.f32.mrb[0].mxu0
        %v1577 = vadd.f32 %v1352, %v1576
        %v1578 = vpop.f32.mrb[0].mxu0
        %1579 = vmatprep.mubr.f32.mxu0 %v427
        %1580 = vmatmul.mubr.f32.gmra.mrb[0].mxu0 %v312
        %v1581 = vpop.f32.mrb[0].mxu0
        %v1582 = vadd.f32 %v1357, %v1581
        %v1583 = vpop.f32.mrb[0].mxu0
        %1584 = vmatprep.mubr.f32.mxu0 %v429
        %1585 = vmatmul.mubr.f32.gmra.mrb[0].mxu0 %v313
        %v1586 = vpop.f32.mrb[0].mxu0
        %v1587 = vadd.f32 %v1362, %v1586
        %v1588 = vpop.f32.mrb[0].mxu0
        %1589 = vmatprep.mubr.f32.mxu0 %v432
        %1590 = vmatmul.mubr.f32.gmra.mrb[0].mxu0 %v315
        %v1591 = vpop.f32.mrb[0].mxu0
        %v1592 = vadd.f32 %v1367, %v1591
        %v1593 = vpop.f32.mrb[0].mxu0
        %1594 = vmatprep.mubr.f32.mxu0 %v434
        %1595 = vmatmul.mubr.f32.gmra.mrb[0].mxu0 %v316
        %v1596 = vpop.f32.mrb[0].mxu0
        %v1597 = vadd.f32 %v1372, %v1596
        %v1598 = vpop.f32.mrb[0].mxu0
        %1599 = vmatprep.mubr.f32.mxu0 %v437
        %1600 = vmatmul.mubr.f32.gmra.mrb[0].mxu0 %v318
        %v1601 = vpop.f32.mrb[0].mxu0
        %v1602 = vadd.f32 %v1377, %v1601
        %v1603 = vpop.f32.mrb[0].mxu0
        %1604 = vmatprep.mubr.f32.mxu0 %v439
        %1605 = vmatmul.mubr.f32.gmra.mrb[0].mxu0 %v319
        %v1606 = vpop.f32.mrb[0].mxu0
        %v1607 = vadd.f32 %v1382, %v1606
        %v1608 = vpop.f32.mrb[0].mxu0
        %1609 = vmatprep.mubr.f32.mxu0 %v442
        %1610 = vmatmul.mubr.f32.gmra.mrb[0].mxu0 %v321
        %v1611 = vpop.f32.mrb[0].mxu0
        %v1612 = vadd.f32 %v1387, %v1611
        %v1613 = vpop.f32.mrb[0].mxu0
        %1614 = vmatprep.mubr.f32.mxu0 %v444
        %1615 = vmatmul.mubr.f32.gmra.mrb[0].mxu0 %v322
        %v1616 = vpop.f32.mrb[0].mxu0
        %v1617 = vadd.f32 %v1392, %v1616
        %v1618 = vpop.f32.mrb[0].mxu0
        %1619 = vmatprep.mubr.f32.mxu0 %v447
        %1620 = vmatmul.mubr.f32.gmra.mrb[0].mxu0 %v324
        %v1621 = vpop.f32.mrb[0].mxu0
        %v1622 = vadd.f32 %v1397, %v1621
        %v1623 = vpop.f32.mrb[0].mxu0
        %1624 = vmatprep.mubr.f32.mxu0 %v449
        %1625 = vmatmul.mubr.f32.gmra.mrb[0].mxu0 %v325
        %v1626 = vpop.f32.mrb[0].mxu0
        %v1627 = vadd.f32 %v1402, %v1626
        %v1628 = vpop.f32.mrb[0].mxu0
        %1629 = vmatprep.mubr.f32.mxu0 %v452
        %1630 = vmatmul.mubr.f32.gmra.mrb[0].mxu0 %v327
        %v1631 = vpop.f32.mrb[0].mxu0
        %v1632 = vadd.f32 %v1407, %v1631
        %v1633 = vpop.f32.mrb[0].mxu0
        %1634 = vmatprep.mubr.f32.mxu0 %v454
        %1635 = vmatmul.mubr.f32.gmra.mrb[0].mxu0 %v328
        %v1636 = vpop.f32.mrb[0].mxu0
        %v1637 = vadd.f32 %v1412, %v1636
        %v1638 = vpop.f32.mrb[0].mxu0
        %1639 = vmatprep.mubr.f32.mxu0 %v457
        %1640 = vmatmul.mubr.f32.gmra.mrb[0].mxu0 %v330
        %v1641 = vpop.f32.mrb[0].mxu0
        %v1642 = vadd.f32 %v1417, %v1641
        %v1643 = vpop.f32.mrb[0].mxu0
        %1644 = vmatprep.mubr.f32.mxu0 %v459
        %1645 = vmatmul.mubr.f32.gmra.mrb[0].mxu0 %v331
        %v1646 = vpop.f32.mrb[0].mxu0
        %v1647 = vadd.f32 %v1422, %v1646
        %v1648 = vpop.f32.mrb[0].mxu0
        %1649 = vmatprep.mubr.f32.mxu0 %v462
        %1650 = vmatmul.mubr.f32.gmra.mrb[0].mxu0 %v333
        %v1651 = vpop.f32.mrb[0].mxu0
        %v1652 = vadd.f32 %v1427, %v1651
        %v1653 = vpop.f32.mrb[0].mxu0
        %1654 = vmatprep.mubr.f32.mxu0 %v464
        %1655 = vmatmul.mubr.f32.gmra.mrb[0].mxu0 %v334
        %v1656 = vpop.f32.mrb[0].mxu0
        %v1657 = vadd.f32 %v1432, %v1656
        %v1658 = vpop.f32.mrb[0].mxu0
        %1659 = vmatprep.mubr.f32.mxu0 %v467
        %1660 = vmatmul.mubr.f32.gmra.mrb[0].mxu0 %v336
        %v1661 = vpop.f32.mrb[0].mxu0
        %v1662 = vadd.f32 %v1437, %v1661
        %v1663 = vpop.f32.mrb[0].mxu0
        %1664 = vmatprep.mubr.f32.mxu0 %v469
        %1665 = vmatmul.mubr.f32.gmra.mrb[0].mxu0 %v337
        %v1666 = vpop.f32.mrb[0].mxu0
        %v1667 = vadd.f32 %v1442, %v1666
        %v1668 = vpop.f32.mrb[0].mxu0
        %1669 = vmatprep.mubr.f32.mxu0 %v472
        %1670 = vmatmul.mubr.f32.gmra.mrb[0].mxu0 %v339
        %v1671 = vpop.f32.mrb[0].mxu0
        %v1672 = vadd.f32 %v1447, %v1671
        %v1673 = vpop.f32.mrb[0].mxu0
        %1674 = vmatprep.mubr.f32.mxu0 %v474
        %1675 = vmatmul.mubr.f32.gmra.mrb[0].mxu0 %v340
        %v1676 = vpop.f32.mrb[0].mxu0
        %v1677 = vadd.f32 %v1452, %v1676
        %v1678 = vpop.f32.mrb[0].mxu0
        %1679 = vmatprep.mubr.f32.mxu0 %v477
        %1680 = vmatmul.mubr.f32.gmra.mrb[0].mxu0 %v342
        %v1681 = vpop.f32.mrb[0].mxu0
        %v1682 = vadd.f32 %v1457, %v1681
        %v1683 = vpop.f32.mrb[0].mxu0
        %1684 = vmatprep.mubr.f32.mxu0 %v479
        %1685 = vmatmul.mubr.f32.gmra.mrb[0].mxu0 %v343
        %v1686 = vpop.f32.mrb[0].mxu0
        %v1687 = vadd.f32 %v1462, %v1686
        %v1688 = vpop.f32.mrb[0].mxu0
        %1689 = vmatprep.mubr.f32.mxu0 %v630
        %1690 = vmatmul.mubr.f32.gmra.mrb[0].mxu0 %v345
        %v1691 = vpop.f32.mrb[0].mxu0
        %v1692 = vadd.f32 %v1467, %v1691
        %v1693 = vpop.f32.mrb[0].mxu0
        %1694 = vmatprep.mubr.f32.mxu0 %v632
        %1695 = vmatmul.mubr.f32.gmra.mrb[0].mxu0 %v346
        %v1696 = vpop.f32.mrb[0].mxu0
        %v1697 = vadd.f32 %v1472, %v1696
        %v1698 = vpop.f32.mrb[0].mxu0
        %1699 = vmatprep.mubr.f32.mxu0 %v647
        %1700 = vmatmul.mubr.f32.gmra.mrb[0].mxu0 %v348
        %v1701 = vpop.f32.mrb[0].mxu0
        %v1702 = vadd.f32 %v1477, %v1701
        %v1703 = vpop.f32.mrb[0].mxu0
        %1704 = vmatprep.mubr.f32.mxu0 %v649
        %1705 = vmatmul.mubr.f32.gmra.mrb[0].mxu0 %v349
        %v1706 = vpop.f32.mrb[0].mxu0
        %v1707 = vadd.f32 %v1482, %v1706
        %v1708 = vpop.f32.mrb[0].mxu0
        %1709 = vdwg.mxu0
        %1710 = vmatprep.subr.mxu0 0.0
        %1711 = vmatpush1.msra.mxu0 %v787
        %1712 = vmatprep.subr.mxu0 0.0
        %1713 = vmatpush1.msra.mxu0 %v788
        %1714 = vmatprep.subr.mxu0 0.0
        %1715 = vmatpush1.msra.mxu0 %v789
        %1716 = vmatprep.subr.mxu0 0.0
        %1717 = vmatpush1.msra.mxu0 %v790
        %1718 = vmatprep.subr.mxu0 0.0
        %1719 = vmatpush1.msra.mxu0 %v791
        %1720 = vmatprep.subr.mxu0 0.0
        %1721 = vmatpush1.msra.mxu0 %v792
        %1722 = vmatprep.subr.mxu0 0.0
        %1723 = vmatpush1.msra.mxu0 %v793
        %1724 = vmatprep.subr.mxu0 0.0
        %1725 = vmatpush1.msra.mxu0 %v794
        %1726 = vmatprep.subr.mxu0 0.0
        %1727 = vmatpush1.msra.mxu0 %v795
        %1728 = vmatprep.subr.mxu0 0.0
        %1729 = vmatpush1.msra.mxu0 %v796
        %1730 = vmatprep.subr.mxu0 0.0
        %1731 = vmatpush1.msra.mxu0 %v797
        %1732 = vmatprep.subr.mxu0 0.0
        %1733 = vmatpush1.msra.mxu0 %v798
        %1734 = vmatprep.subr.mxu0 0.0
        %1735 = vmatpush1.msra.mxu0 %v799
        %1736 = vmatprep.subr.mxu0 0.0
        %1737 = vmatpush1.msra.mxu0 %v800
        %1738 = vmatprep.subr.mxu0 0.0
        %1739 = vmatpush1.msra.mxu0 %v801
        %1740 = vmatprep.subr.mxu0 0.0
        %1741 = vmatpush1.msra.mxu0 %v802
        %1742 = vmatprep.subr.mxu0 0.0
        %1743 = vmatpush1.msra.mxu0 0.0
        %1744 = vmatprep.subr.mxu0 0.0
        %1745 = vmatpush1.msra.mxu0 0.0
        %1746 = vmatprep.subr.mxu0 0.0
        %1747 = vmatpush1.msra.mxu0 0.0
        %1748 = vmatprep.subr.mxu0 0.0
        %1749 = vmatpush1.msra.mxu0 0.0
        %1750 = vmatprep.subr.mxu0 0.0
        %1751 = vmatpush1.msra.mxu0 0.0
        %1752 = vmatprep.subr.mxu0 0.0
        %1753 = vmatpush1.msra.mxu0 0.0
        %1754 = vmatprep.subr.mxu0 0.0
        %1755 = vmatpush1.msra.mxu0 0.0
        %1756 = vmatprep.subr.mxu0 0.0
        %1757 = vmatpush1.msra.mxu0 0.0
        %1758 = vmatprep.subr.mxu0 0.0
        %1759 = vmatpush1.msra.mxu0 0.0
        %1760 = vmatprep.subr.mxu0 0.0
        %1761 = vmatpush1.msra.mxu0 0.0
        %1762 = vmatprep.subr.mxu0 0.0
        %1763 = vmatpush1.msra.mxu0 0.0
        %1764 = vmatprep.subr.mxu0 0.0
        %1765 = vmatpush1.msra.mxu0 0.0
        %1766 = vmatprep.subr.mxu0 0.0
        %1767 = vmatpush1.msra.mxu0 0.0
        %1768 = vmatprep.subr.mxu0 0.0
        %1769 = vmatpush1.msra.mxu0 0.0
        %1770 = vmatprep.subr.mxu0 0.0
        %1771 = vmatpush1.msra.mxu0 0.0
        %1772 = vmatprep.subr.mxu0 0.0
        %1773 = vmatpush1.msra.mxu0 0.0
        %1774 = vmatprep.mubr.f32.mxu0 0.0
        %1775 = vmatmul.mubr.f32.gmra.mrb[0].mxu0 %v525
        %v1776 = vpop.f32.mrb[0].mxu0
        %v1777 = vadd.f32 %v1552, %v1776
        %v1778 = vpop.f32.mrb[0].mxu0
        %1779 = vmatprep.mubr.f32.mxu0 0.0
        %1780 = vmatmul.mubr.f32.gmra.mrb[0].mxu0 %v527
        %v1781 = vpop.f32.mrb[0].mxu0
        %v1782 = vadd.f32 %v1557, %v1781
        %v1783 = vpop.f32.mrb[0].mxu0
        %1784 = vmatprep.mubr.f32.mxu0 0.0
        %1785 = vmatmul.mubr.f32.gmra.mrb[0].mxu0 %v530
        %v1786 = vpop.f32.mrb[0].mxu0
        %v1787 = vadd.f32 %v1562, %v1786
        %v1788 = vpop.f32.mrb[0].mxu0
        %1789 = vmatprep.mubr.f32.mxu0 0.0
        %1790 = vmatmul.mubr.f32.gmra.mrb[0].mxu0 %v532
        %v1791 = vpop.f32.mrb[0].mxu0
        %v1792 = vadd.f32 %v1567, %v1791
        %v1793 = vpop.f32.mrb[0].mxu0
        %1794 = vmatprep.mubr.f32.mxu0 0.0
        %1795 = vmatmul.mubr.f32.gmra.mrb[0].mxu0 %v535
        %v1796 = vpop.f32.mrb[0].mxu0
        %v1797 = vadd.f32 %v1572, %v1796
        %v1798 = vpop.f32.mrb[0].mxu0
        %1799 = vmatprep.mubr.f32.mxu0 0.0
        %1800 = vmatmul.mubr.f32.gmra.mrb[0].mxu0 %v537
        %v1801 = vpop.f32.mrb[0].mxu0
        %v1802 = vadd.f32 %v1577, %v1801
        %v1803 = vpop.f32.mrb[0].mxu0
        %1804 = vmatprep.mubr.f32.mxu0 0.0
        %1805 = vmatmul.mubr.f32.gmra.mrb[0].mxu0 %v540
        %v1806 = vpop.f32.mrb[0].mxu0
        %v1807 = vadd.f32 %v1582, %v1806
        %v1808 = vpop.f32.mrb[0].mxu0
        %1809 = vmatprep.mubr.f32.mxu0 0.0
        %1810 = vmatmul.mubr.f32.gmra.mrb[0].mxu0 %v542
        %v1811 = vpop.f32.mrb[0].mxu0
        %v1812 = vadd.f32 %v1587, %v1811
        %v1813 = vpop.f32.mrb[0].mxu0
        %1814 = vmatprep.mubr.f32.mxu0 0.0
        %1815 = vmatmul.mubr.f32.gmra.mrb[0].mxu0 %v545
        %v1816 = vpop.f32.mrb[0].mxu0
        %v1817 = vadd.f32 %v1592, %v1816
        %v1818 = vpop.f32.mrb[0].mxu0
        %1819 = vmatprep.mubr.f32.mxu0 0.0
        %1820 = vmatmul.mubr.f32.gmra.mrb[0].mxu0 %v547
        %v1821 = vpop.f32.mrb[0].mxu0
        %v1822 = vadd.f32 %v1597, %v1821
        %v1823 = vpop.f32.mrb[0].mxu0
        %1824 = vmatprep.mubr.f32.mxu0 0.0
        %1825 = vmatmul.mubr.f32.gmra.mrb[0].mxu0 %v550
        %v1826 = vpop.f32.mrb[0].mxu0
        %v1827 = vadd.f32 %v1602, %v1826
        %v1828 = vpop.f32.mrb[0].mxu0
        %1829 = vmatprep.mubr.f32.mxu0 0.0
        %1830 = vmatmul.mubr.f32.gmra.mrb[0].mxu0 %v552
        %v1831 = vpop.f32.mrb[0].mxu0
        %v1832 = vadd.f32 %v1607, %v1831
        %v1833 = vpop.f32.mrb[0].mxu0
        %1834 = vmatprep.mubr.f32.mxu0 0.0
        %1835 = vmatmul.mubr.f32.gmra.mrb[0].mxu0 %v555
        %v1836 = vpop.f32.mrb[0].mxu0
        %v1837 = vadd.f32 %v1612, %v1836
        %v1838 = vpop.f32.mrb[0].mxu0
        %1839 = vmatprep.mubr.f32.mxu0 0.0
        %1840 = vmatmul.mubr.f32.gmra.mrb[0].mxu0 %v557
        %v1841 = vpop.f32.mrb[0].mxu0
        %v1842 = vadd.f32 %v1617, %v1841
        %v1843 = vpop.f32.mrb[0].mxu0
        %1844 = vmatprep.mubr.f32.mxu0 0.0
        %1845 = vmatmul.mubr.f32.gmra.mrb[0].mxu0 %v560
        %v1846 = vpop.f32.mrb[0].mxu0
        %v1847 = vadd.f32 %v1622, %v1846
        %v1848 = vpop.f32.mrb[0].mxu0
        %1849 = vmatprep.mubr.f32.mxu0 0.0
        %1850 = vmatmul.mubr.f32.gmra.mrb[0].mxu0 %v562
        %v1851 = vpop.f32.mrb[0].mxu0
        %v1852 = vadd.f32 %v1627, %v1851
        %v1853 = vpop.f32.mrb[0].mxu0
        %1854 = vmatprep.mubr.f32.mxu0 0.0
        %1855 = vmatmul.mubr.f32.gmra.mrb[0].mxu0 %v565
        %v1856 = vpop.f32.mrb[0].mxu0
        %v1857 = vadd.f32 %v1632, %v1856
        %v1858 = vpop.f32.mrb[0].mxu0
        %1859 = vmatprep.mubr.f32.mxu0 0.0
        %1860 = vmatmul.mubr.f32.gmra.mrb[0].mxu0 %v567
        %v1861 = vpop.f32.mrb[0].mxu0
        %v1862 = vadd.f32 %v1637, %v1861
        %v1863 = vpop.f32.mrb[0].mxu0
        %1864 = vmatprep.mubr.f32.mxu0 0.0
        %1865 = vmatmul.mubr.f32.gmra.mrb[0].mxu0 %v570
        %v1866 = vpop.f32.mrb[0].mxu0
        %v1867 = vadd.f32 %v1642, %v1866
        %v1868 = vpop.f32.mrb[0].mxu0
        %1869 = vmatprep.mubr.f32.mxu0 0.0
        %1870 = vmatmul.mubr.f32.gmra.mrb[0].mxu0 %v572
        %v1871 = vpop.f32.mrb[0].mxu0
        %v1872 = vadd.f32 %v1647, %v1871
        %v1873 = vpop.f32.mrb[0].mxu0
        %1874 = vmatprep.mubr.f32.mxu0 0.0
        %1875 = vmatmul.mubr.f32.gmra.mrb[0].mxu0 %v575
        %v1876 = vpop.f32.mrb[0].mxu0
        %v1877 = vadd.f32 %v1652, %v1876
        %v1878 = vpop.f32.mrb[0].mxu0
        %1879 = vmatprep.mubr.f32.mxu0 0.0
        %1880 = vmatmul.mubr.f32.gmra.mrb[0].mxu0 %v577
        %v1881 = vpop.f32.mrb[0].mxu0
        %v1882 = vadd.f32 %v1657, %v1881
        %v1883 = vpop.f32.mrb[0].mxu0
        %1884 = vmatprep.mubr.f32.mxu0 0.0
        %1885 = vmatmul.mubr.f32.gmra.mrb[0].mxu0 %v580
        %v1886 = vpop.f32.mrb[0].mxu0
        %v1887 = vadd.f32 %v1662, %v1886
        %v1888 = vpop.f32.mrb[0].mxu0
        %1889 = vmatprep.mubr.f32.mxu0 0.0
        %1890 = vmatmul.mubr.f32.gmra.mrb[0].mxu0 %v582
        %v1891 = vpop.f32.mrb[0].mxu0
        %v1892 = vadd.f32 %v1667, %v1891
        %v1893 = vpop.f32.mrb[0].mxu0
        %1894 = vmatprep.mubr.f32.mxu0 0.0
        %1895 = vmatmul.mubr.f32.gmra.mrb[0].mxu0 %v585
        %v1896 = vpop.f32.mrb[0].mxu0
        %v1897 = vadd.f32 %v1672, %v1896
        %v1898 = vpop.f32.mrb[0].mxu0
        %1899 = vmatprep.mubr.f32.mxu0 0.0
        %1900 = vmatmul.mubr.f32.gmra.mrb[0].mxu0 %v587
        %v1901 = vpop.f32.mrb[0].mxu0
        %v1902 = vadd.f32 %v1677, %v1901
        %v1903 = vpop.f32.mrb[0].mxu0
        %1904 = vmatprep.mubr.f32.mxu0 0.0
        %1905 = vmatmul.mubr.f32.gmra.mrb[0].mxu0 %v590
        %v1906 = vpop.f32.mrb[0].mxu0
        %v1907 = vadd.f32 %v1682, %v1906
        %v1908 = vpop.f32.mrb[0].mxu0
        %1909 = vmatprep.mubr.f32.mxu0 0.0
        %1910 = vmatmul.mubr.f32.gmra.mrb[0].mxu0 %v592
        %v1911 = vpop.f32.mrb[0].mxu0
        %v1912 = vadd.f32 %v1687, %v1911
        %v1913 = vpop.f32.mrb[0].mxu0
        %1914 = vmatprep.mubr.f32.mxu0 0.0
        %1915 = vmatmul.mubr.f32.gmra.mrb[0].mxu0 %v637
        %v1916 = vpop.f32.mrb[0].mxu0
        %v1917 = vadd.f32 %v1692, %v1916
        %v1918 = vpop.f32.mrb[0].mxu0
        %1919 = vmatprep.mubr.f32.mxu0 0.0
        %1920 = vmatmul.mubr.f32.gmra.mrb[0].mxu0 %v639
        %v1921 = vpop.f32.mrb[0].mxu0
        %v1922 = vadd.f32 %v1697, %v1921
        %v1923 = vpop.f32.mrb[0].mxu0
        %1924 = vmatprep.mubr.f32.mxu0 0.0
        %1925 = vmatmul.mubr.f32.gmra.mrb[0].mxu0 %v654
        %v1926 = vpop.f32.mrb[0].mxu0
        %v1927 = vadd.f32 %v1702, %v1926
        %v1928 = vpop.f32.mrb[0].mxu0
        %1929 = vmatprep.mubr.f32.mxu0 0.0
        %1930 = vmatmul.mubr.f32.gmra.mrb[0].mxu0 %v656
        %v1931 = vpop.f32.mrb[0].mxu0
        %v1932 = vadd.f32 %v1707, %v1931
        %v1933 = vpop.f32.mrb[0].mxu0
        %1934 = vdwg.mxu0
        %v1935 = vmax.f32 %v1777, 0.0
        %v1936 = vmax.f32 %v1782, 0.0
        %v1937 = vmax.f32 %v1787, 0.0
        %v1938 = vmax.f32 %v1792, 0.0
        %v1939 = vmax.f32 %v1797, 0.0
        %v1940 = vmax.f32 %v1802, 0.0
        %v1941 = vmax.f32 %v1807, 0.0
        %v1942 = vmax.f32 %v1812, 0.0
        %v1943 = vmax.f32 %v1817, 0.0
        %v1944 = vmax.f32 %v1822, 0.0
        %v1945 = vmax.f32 %v1827, 0.0
        %v1946 = vmax.f32 %v1832, 0.0
        %v1947 = vmax.f32 %v1837, 0.0
        %v1948 = vmax.f32 %v1842, 0.0
        %v1949 = vmax.f32 %v1847, 0.0
        %v1950 = vmax.f32 %v1852, 0.0
        %v1951 = vmax.f32 %v1857, 0.0
        %v1952 = vmax.f32 %v1862, 0.0
        %v1953 = vmax.f32 %v1867, 0.0
        %v1954 = vmax.f32 %v1872, 0.0
        %v1955 = vmax.f32 %v1877, 0.0
        %v1956 = vmax.f32 %v1882, 0.0
        %v1957 = vmax.f32 %v1887, 0.0
        %v1958 = vmax.f32 %v1892, 0.0
        %v1959 = vmax.f32 %v1897, 0.0
        %v1960 = vmax.f32 %v1902, 0.0
        %v1961 = vmax.f32 %v1907, 0.0
        %v1962 = vmax.f32 %v1912, 0.0
        %v1963 = vmax.f32 %v1917, 0.0
        %v1964 = vmax.f32 %v1922, 0.0
        %v1965 = vmax.f32 %v1927, 0.0
        %v1966 = vmax.f32 %v1932, 0.0
        %1967 = vst [vmem:[#allocation2] sm:$0xff] 0.0
        %1968 = vst [vmem:[#allocation2 + $0x8] sm:$0xff] 0.0
        %1969 = vst [vmem:[#allocation2 + $0x10] sm:$0x3] 0.0
        %s1970 = scalar_lea.vmem [#allocation2], 408
        %1971 = vst [vmem:[%s1970] sm:$0xff] 0.0
        %1972 = vst [vmem:[%s1970 + $0x8] sm:$0xff] 0.0
        %1973 = vst [vmem:[%s1970 + $0x10] sm:$0x3] 0.0
        %s1974 = scalar_lea.vmem [#allocation2], 24
        %1975 = vst [vmem:[%s1974] sm:$0x1] 0.0
        %1976 = vst [vmem:[%s1974 + $0x18] sm:$0x1] 0.0
        %1977 = vst [vmem:[%s1974 + $0x30] sm:$0x1] 0.0
        %1978 = vst [vmem:[%s1974 + $0x48] sm:$0x1] 0.0
        %1979 = vst [vmem:[%s1974 + $0x60] sm:$0x1] 0.0
        %1980 = vst [vmem:[%s1974 + $0x78] sm:$0x1] 0.0
        %1981 = vst [vmem:[%s1974 + $0x90] sm:$0x1] 0.0
        %1982 = vst [vmem:[%s1974 + $0xa8] sm:$0x1] 0.0
        %1983 = vst [vmem:[%s1974 + $0xc0] sm:$0x1] 0.0
        %1984 = vst [vmem:[%s1974 + $0xd8] sm:$0x1] 0.0
        %1985 = vst [vmem:[%s1974 + $0xf0] sm:$0x1] 0.0
        %1986 = vst [vmem:[%s1974 + $0x108] sm:$0x1] 0.0
        %1987 = vst [vmem:[%s1974 + $0x120] sm:$0x1] 0.0
        %1988 = vst [vmem:[%s1974 + $0x138] sm:$0x1] 0.0
        %1989 = vst [vmem:[%s1974 + $0x150] sm:$0x1] 0.0
        %1990 = vst [vmem:[%s1974 + $0x168] sm:$0x1] 0.0
        %1991 = vst [vmem:[%s1974 + $0x11] sm:$0x1] 0.0
        %1992 = vst [vmem:[%s1974 + $0x29] sm:$0x1] 0.0
        %1993 = vst [vmem:[%s1974 + $0x41] sm:$0x1] 0.0
        %1994 = vst [vmem:[%s1974 + $0x59] sm:$0x1] 0.0
        %1995 = vst [vmem:[%s1974 + $0x71] sm:$0x1] 0.0
        %1996 = vst [vmem:[%s1974 + $0x89] sm:$0x1] 0.0
        %1997 = vst [vmem:[%s1974 + $0xa1] sm:$0x1] 0.0
        %1998 = vst [vmem:[%s1974 + $0xb9] sm:$0x1] 0.0
        %1999 = vst [vmem:[%s1974 + $0xd1] sm:$0x1] 0.0
        %2000 = vst [vmem:[%s1974 + $0xe9] sm:$0x1] 0.0
        %2001 = vst [vmem:[%s1974 + $0x101] sm:$0x1] 0.0
        %2002 = vst [vmem:[%s1974 + $0x119] sm:$0x1] 0.0
        %2003 = vst [vmem:[%s1974 + $0x131] sm:$0x1] 0.0
        %2004 = vst [vmem:[%s1974 + $0x149] sm:$0x1] 0.0
        %2005 = vst [vmem:[%s1974 + $0x161] sm:$0x1] 0.0
        %2006 = vst [vmem:[%s1974 + $0x179] sm:$0x1] 0.0
        %2007 = vst [vmem:[%s1974 + $0x1] sm:$0xff] %v1935
        %2008 = vst [vmem:[%s1974 + $0x9] sm:$0xff] %v1936
        %2009 = vst [vmem:[%s1974 + $0x19] sm:$0xff] %v1937
        %2010 = vst [vmem:[%s1974 + $0x21] sm:$0xff] %v1938
        %2011 = vst [vmem:[%s1974 + $0x31] sm:$0xff] %v1939
        %2012 = vst [vmem:[%s1974 + $0x39] sm:$0xff] %v1940
        %2013 = vst [vmem:[%s1974 + $0x49] sm:$0xff] %v1941
        %2014 = vst [vmem:[%s1974 + $0x51] sm:$0xff] %v1942
        %2015 = vst [vmem:[%s1974 + $0x61] sm:$0xff] %v1943
        %2016 = vst [vmem:[%s1974 + $0x69] sm:$0xff] %v1944
        %2017 = vst [vmem:[%s1974 + $0x79] sm:$0xff] %v1945
        %2018 = vst [vmem:[%s1974 + $0x81] sm:$0xff] %v1946
        %2019 = vst [vmem:[%s1974 + $0x91] sm:$0xff] %v1947
        %2020 = vst [vmem:[%s1974 + $0x99] sm:$0xff] %v1948
        %2021 = vst [vmem:[%s1974 + $0xa9] sm:$0xff] %v1949
        %2022 = vst [vmem:[%s1974 + $0xb1] sm:$0xff] %v1950
        %2023 = vst [vmem:[%s1974 + $0xc1] sm:$0xff] %v1951
        %2024 = vst [vmem:[%s1974 + $0xc9] sm:$0xff] %v1952
        %2025 = vst [vmem:[%s1974 + $0xd9] sm:$0xff] %v1953
        %2026 = vst [vmem:[%s1974 + $0xe1] sm:$0xff] %v1954
        %2027 = vst [vmem:[%s1974 + $0xf1] sm:$0xff] %v1955
        %2028 = vst [vmem:[%s1974 + $0xf9] sm:$0xff] %v1956
        %2029 = vst [vmem:[%s1974 + $0x109] sm:$0xff] %v1957
        %2030 = vst [vmem:[%s1974 + $0x111] sm:$0xff] %v1958
        %2031 = vst [vmem:[%s1974 + $0x121] sm:$0xff] %v1959
        %2032 = vst [vmem:[%s1974 + $0x129] sm:$0xff] %v1960
        %2033 = vst [vmem:[%s1974 + $0x139] sm:$0xff] %v1961
        %2034 = vst [vmem:[%s1974 + $0x141] sm:$0xff] %v1962
        %2035 = vst [vmem:[%s1974 + $0x151] sm:$0xff] %v1963
        %2036 = vst [vmem:[%s1974 + $0x159] sm:$0xff] %v1964
        %2037 = vst [vmem:[%s1974 + $0x169] sm:$0xff] %v1965
        %2038 = vst [vmem:[%s1974 + $0x171] sm:$0xff] %v1966
        %v2039 = vld [vmem:[#allocation2] sm:$0xff]
        %v2040 = vld [vmem:[#allocation2 + $0x8] sm:$0xff]
        %v2041 = vld [vmem:[#allocation2 + $0x10] sm:$0x3]
        %v2042 = vld [vmem:[#allocation2 + $0x18] sm:$0xff]
        %v2043 = vld [vmem:[#allocation2 + $0x20] sm:$0xff]
        %v2044 = vld [vmem:[#allocation2 + $0x28] sm:$0x3]
        %v2045 = vld [vmem:[#allocation2 + $0x30] sm:$0xff]
        %v2046 = vld [vmem:[#allocation2 + $0x38] sm:$0xff]
        %v2047 = vld [vmem:[#allocation2 + $0x40] sm:$0x3]
        %v2048 = vld [vmem:[#allocation2 + $0x48] sm:$0xff]
        %v2049 = vld [vmem:[#allocation2 + $0x50] sm:$0xff]
        %v2050 = vld [vmem:[#allocation2 + $0x58] sm:$0x3]
        %v2051 = vld [vmem:[#allocation2 + $0x60] sm:$0xff]
        %v2052 = vld [vmem:[#allocation2 + $0x68] sm:$0xff]
        %v2053 = vld [vmem:[#allocation2 + $0x70] sm:$0x3]
        %v2054 = vld [vmem:[#allocation2 + $0x78] sm:$0xff]
        %v2055 = vld [vmem:[#allocation2 + $0x80] sm:$0xff]
        %v2056 = vld [vmem:[#allocation2 + $0x88] sm:$0x3]
        %v2057 = vld [vmem:[#allocation2 + $0x90] sm:$0xff]
        %v2058 = vld [vmem:[#allocation2 + $0x98] sm:$0xff]
        %v2059 = vld [vmem:[#allocation2 + $0xa0] sm:$0x3]
        %v2060 = vld [vmem:[#allocation2 + $0xa8] sm:$0xff]
        %v2061 = vld [vmem:[#allocation2 + $0xb0] sm:$0xff]
        %v2062 = vld [vmem:[#allocation2 + $0xb8] sm:$0x3]
        %v2063 = vld [vmem:[#allocation2 + $0xc0] sm:$0xff]
        %v2064 = vld [vmem:[#allocation2 + $0xc8] sm:$0xff]
        %v2065 = vld [vmem:[#allocation2 + $0xd0] sm:$0x3]
        %v2066 = vld [vmem:[#allocation2 + $0xd8] sm:$0xff]
        %v2067 = vld [vmem:[#allocation2 + $0xe0] sm:$0xff]
        %v2068 = vld [vmem:[#allocation2 + $0xe8] sm:$0x3]
        %v2069 = vld [vmem:[#allocation2 + $0xf0] sm:$0xff]
        %v2070 = vld [vmem:[#allocation2 + $0xf8] sm:$0xff]
        %v2071 = vld [vmem:[#allocation2 + $0x100] sm:$0x3]
        %v2072 = vld [vmem:[#allocation2 + $0x108] sm:$0xff]
        %v2073 = vld [vmem:[#allocation2 + $0x110] sm:$0xff]
        %v2074 = vld [vmem:[#allocation2 + $0x118] sm:$0x3]
        %v2075 = vld [vmem:[#allocation2 + $0x120] sm:$0xff]
        %v2076 = vld [vmem:[#allocation2 + $0x128] sm:$0xff]
        %v2077 = vld [vmem:[#allocation2 + $0x130] sm:$0x3]
        %v2078 = vld [vmem:[#allocation2 + $0x138] sm:$0xff]
        %v2079 = vld [vmem:[#allocation2 + $0x140] sm:$0xff]
        %v2080 = vld [vmem:[#allocation2 + $0x148] sm:$0x3]
        %v2081 = vld [vmem:[#allocation2 + $0x150] sm:$0xff]
        %v2082 = vld [vmem:[#allocation2 + $0x158] sm:$0xff]
        %v2083 = vld [vmem:[#allocation2 + $0x160] sm:$0x3]
        %v2084 = vld [vmem:[#allocation2 + $0x168] sm:$0xff]
        %v2085 = vld [vmem:[#allocation2 + $0x170] sm:$0xff]
        %v2086 = vld [vmem:[#allocation2 + $0x178] sm:$0x3]
        %v2087 = vld [vmem:[#allocation2 + $0x180] sm:$0xff]
        %v2088 = vld [vmem:[#allocation2 + $0x188] sm:$0xff]
        %v2089 = vld [vmem:[#allocation2 + $0x190] sm:$0x3]
        %v2090 = vld [vmem:[#allocation2 + $0x198] sm:$0xff]
        %v2091 = vld [vmem:[#allocation2 + $0x1a0] sm:$0xff]
        %v2092 = vld [vmem:[#allocation2 + $0x1a8] sm:$0x3]
        %v2141 = vrot.slane %v2039, 1
        %v2142 = vrot.slane %v2040, 1
        %v2143 = vsel %vm399, %v2141, %v2142
        %v2144 = vrot.slane %v2041, 1
        %v2145 = vsel %vm399, %v2142, %v2144
        %v2146 = vrot.slane %v2042, 1
        %v2147 = vrot.slane %v2043, 1
        %v2148 = vsel %vm399, %v2146, %v2147
        %v2149 = vrot.slane %v2044, 1
        %v2150 = vsel %vm399, %v2147, %v2149
        %v2151 = vrot.slane %v2045, 1
        %v2152 = vrot.slane %v2046, 1
        %v2153 = vsel %vm399, %v2151, %v2152
        %v2154 = vrot.slane %v2047, 1
        %v2155 = vsel %vm399, %v2152, %v2154
        %v2156 = vrot.slane %v2048, 1
        %v2157 = vrot.slane %v2049, 1
        %v2158 = vsel %vm399, %v2156, %v2157
        %v2159 = vrot.slane %v2050, 1
        %v2160 = vsel %vm399, %v2157, %v2159
        %v2161 = vrot.slane %v2051, 1
        %v2162 = vrot.slane %v2052, 1
        %v2163 = vsel %vm399, %v2161, %v2162
        %v2164 = vrot.slane %v2053, 1
        %v2165 = vsel %vm399, %v2162, %v2164
        %v2166 = vrot.slane %v2054, 1
        %v2167 = vrot.slane %v2055, 1
        %v2168 = vsel %vm399, %v2166, %v2167
        %v2169 = vrot.slane %v2056, 1
        %v2170 = vsel %vm399, %v2167, %v2169
        %v2171 = vrot.slane %v2057, 1
        %v2172 = vrot.slane %v2058, 1
        %v2173 = vsel %vm399, %v2171, %v2172
        %v2174 = vrot.slane %v2059, 1
        %v2175 = vsel %vm399, %v2172, %v2174
        %v2176 = vrot.slane %v2060, 1
        %v2177 = vrot.slane %v2061, 1
        %v2178 = vsel %vm399, %v2176, %v2177
        %v2179 = vrot.slane %v2062, 1
        %v2180 = vsel %vm399, %v2177, %v2179
        %v2181 = vrot.slane %v2063, 1
        %v2182 = vrot.slane %v2064, 1
        %v2183 = vsel %vm399, %v2181, %v2182
        %v2184 = vrot.slane %v2065, 1
        %v2185 = vsel %vm399, %v2182, %v2184
        %v2186 = vrot.slane %v2066, 1
        %v2187 = vrot.slane %v2067, 1
        %v2188 = vsel %vm399, %v2186, %v2187
        %v2189 = vrot.slane %v2068, 1
        %v2190 = vsel %vm399, %v2187, %v2189
        %v2191 = vrot.slane %v2069, 1
        %v2192 = vrot.slane %v2070, 1
        %v2193 = vsel %vm399, %v2191, %v2192
        %v2194 = vrot.slane %v2071, 1
        %v2195 = vsel %vm399, %v2192, %v2194
        %v2196 = vrot.slane %v2072, 1
        %v2197 = vrot.slane %v2073, 1
        %v2198 = vsel %vm399, %v2196, %v2197
        %v2199 = vrot.slane %v2074, 1
        %v2200 = vsel %vm399, %v2197, %v2199
        %v2201 = vrot.slane %v2075, 1
        %v2202 = vrot.slane %v2076, 1
        %v2203 = vsel %vm399, %v2201, %v2202
        %v2204 = vrot.slane %v2077, 1
        %v2205 = vsel %vm399, %v2202, %v2204
        %v2206 = vrot.slane %v2078, 1
        %v2207 = vrot.slane %v2079, 1
        %v2208 = vsel %vm399, %v2206, %v2207
        %v2209 = vrot.slane %v2080, 1
        %v2210 = vsel %vm399, %v2207, %v2209
        %v2211 = vrot.slane %v2081, 1
        %v2212 = vrot.slane %v2082, 1
        %v2213 = vsel %vm399, %v2211, %v2212
        %v2214 = vrot.slane %v2083, 1
        %v2215 = vsel %vm399, %v2212, %v2214
        %v2216 = vrot.slane %v2084, 1
        %v2217 = vrot.slane %v2085, 1
        %v2218 = vsel %vm399, %v2216, %v2217
        %v2219 = vrot.slane %v2086, 1
        %v2220 = vsel %vm399, %v2217, %v2219
        %v2253 = vrot.slane %v2039, 2
        %v2254 = vrot.slane %v2040, 2
        %v2255 = vsel %vm512, %v2253, %v2254
        %v2256 = vrot.slane %v2041, 2
        %v2257 = vsel %vm512, %v2254, %v2256
        %v2258 = vrot.slane %v2042, 2
        %v2259 = vrot.slane %v2043, 2
        %v2260 = vsel %vm512, %v2258, %v2259
        %v2261 = vrot.slane %v2044, 2
        %v2262 = vsel %vm512, %v2259, %v2261
        %v2263 = vrot.slane %v2045, 2
        %v2264 = vrot.slane %v2046, 2
        %v2265 = vsel %vm512, %v2263, %v2264
        %v2266 = vrot.slane %v2047, 2
        %v2267 = vsel %vm512, %v2264, %v2266
        %v2268 = vrot.slane %v2048, 2
        %v2269 = vrot.slane %v2049, 2
        %v2270 = vsel %vm512, %v2268, %v2269
        %v2271 = vrot.slane %v2050, 2
        %v2272 = vsel %vm512, %v2269, %v2271
        %v2273 = vrot.slane %v2051, 2
        %v2274 = vrot.slane %v2052, 2
        %v2275 = vsel %vm512, %v2273, %v2274
        %v2276 = vrot.slane %v2053, 2
        %v2277 = vsel %vm512, %v2274, %v2276
        %v2278 = vrot.slane %v2054, 2
        %v2279 = vrot.slane %v2055, 2
        %v2280 = vsel %vm512, %v2278, %v2279
        %v2281 = vrot.slane %v2056, 2
        %v2282 = vsel %vm512, %v2279, %v2281
        %v2283 = vrot.slane %v2057, 2
        %v2284 = vrot.slane %v2058, 2
        %v2285 = vsel %vm512, %v2283, %v2284
        %v2286 = vrot.slane %v2059, 2
        %v2287 = vsel %vm512, %v2284, %v2286
        %v2288 = vrot.slane %v2060, 2
        %v2289 = vrot.slane %v2061, 2
        %v2290 = vsel %vm512, %v2288, %v2289
        %v2291 = vrot.slane %v2062, 2
        %v2292 = vsel %vm512, %v2289, %v2291
        %v2293 = vrot.slane %v2063, 2
        %v2294 = vrot.slane %v2064, 2
        %v2295 = vsel %vm512, %v2293, %v2294
        %v2296 = vrot.slane %v2065, 2
        %v2297 = vsel %vm512, %v2294, %v2296
        %v2298 = vrot.slane %v2066, 2
        %v2299 = vrot.slane %v2067, 2
        %v2300 = vsel %vm512, %v2298, %v2299
        %v2301 = vrot.slane %v2068, 2
        %v2302 = vsel %vm512, %v2299, %v2301
        %v2303 = vrot.slane %v2069, 2
        %v2304 = vrot.slane %v2070, 2
        %v2305 = vsel %vm512, %v2303, %v2304
        %v2306 = vrot.slane %v2071, 2
        %v2307 = vsel %vm512, %v2304, %v2306
        %v2308 = vrot.slane %v2072, 2
        %v2309 = vrot.slane %v2073, 2
        %v2310 = vsel %vm512, %v2308, %v2309
        %v2311 = vrot.slane %v2074, 2
        %v2312 = vsel %vm512, %v2309, %v2311
        %v2313 = vrot.slane %v2075, 2
        %v2314 = vrot.slane %v2076, 2
        %v2315 = vsel %vm512, %v2313, %v2314
        %v2316 = vrot.slane %v2077, 2
        %v2317 = vsel %vm512, %v2314, %v2316
        %v2318 = vrot.slane %v2078, 2
        %v2319 = vrot.slane %v2079, 2
        %v2320 = vsel %vm512, %v2318, %v2319
        %v2321 = vrot.slane %v2080, 2
        %v2322 = vsel %vm512, %v2319, %v2321
        %v2323 = vrot.slane %v2081, 2
        %v2324 = vrot.slane %v2082, 2
        %v2325 = vsel %vm512, %v2323, %v2324
        %v2326 = vrot.slane %v2083, 2
        %v2327 = vsel %vm512, %v2324, %v2326
        %v2328 = vrot.slane %v2084, 2
        %v2329 = vrot.slane %v2085, 2
        %v2330 = vsel %vm512, %v2328, %v2329
        %v2331 = vrot.slane %v2086, 2
        %v2332 = vsel %vm512, %v2329, %v2331
        %v2368 = vrot.slane %v2087, 1
        %v2369 = vrot.slane %v2088, 1
        %v2370 = vsel %vm399, %v2368, %v2369
        %v2371 = vrot.slane %v2089, 1
        %v2372 = vsel %vm399, %v2369, %v2371
        %v2375 = vrot.slane %v2087, 2
        %v2376 = vrot.slane %v2088, 2
        %v2377 = vsel %vm512, %v2375, %v2376
        %v2378 = vrot.slane %v2089, 2
        %v2379 = vsel %vm512, %v2376, %v2378
        %v2385 = vrot.slane %v2090, 1
        %v2386 = vrot.slane %v2091, 1
        %v2387 = vsel %vm399, %v2385, %v2386
        %v2388 = vrot.slane %v2092, 1
        %v2389 = vsel %vm399, %v2386, %v2388
        %v2392 = vrot.slane %v2090, 2
        %v2393 = vrot.slane %v2091, 2
        %v2394 = vsel %vm512, %v2392, %v2393
        %v2395 = vrot.slane %v2092, 2
        %v2396 = vsel %vm512, %v2393, %v2395
        %v2399 = vld [vmem:[#allocation9] sm:$0xff]
        %v2400 = vld [vmem:[#allocation9 + $0x8] sm:$0xff]
        %v2401 = vld [vmem:[#allocation9 + $0x10] sm:$0xff]
        %v2402 = vld [vmem:[#allocation9 + $0x18] sm:$0xff]
        %v2403 = vld [vmem:[#allocation9 + $0x20] sm:$0xff]
        %v2404 = vld [vmem:[#allocation9 + $0x28] sm:$0xff]
        %v2405 = vld [vmem:[#allocation9 + $0x30] sm:$0xff]
        %v2406 = vld [vmem:[#allocation9 + $0x38] sm:$0xff]
        %v2407 = vld [vmem:[#allocation9 + $0x40] sm:$0xff]
        %v2408 = vld [vmem:[#allocation9 + $0x48] sm:$0xff]
        %v2409 = vld [vmem:[#allocation9 + $0x50] sm:$0xff]
        %v2410 = vld [vmem:[#allocation9 + $0x58] sm:$0xff]
        %v2411 = vld [vmem:[#allocation9 + $0x60] sm:$0xff]
        %v2412 = vld [vmem:[#allocation9 + $0x68] sm:$0xff]
        %v2413 = vld [vmem:[#allocation9 + $0x70] sm:$0xff]
        %v2414 = vld [vmem:[#allocation9 + $0x78] sm:$0xff]
        %v2415 = vld [vmem:[#allocation9 + $0x80] sm:$0xff]
        %v2416 = vld [vmem:[#allocation9 + $0x88] sm:$0xff]
        %v2417 = vld [vmem:[#allocation9 + $0x90] sm:$0xff]
        %v2418 = vld [vmem:[#allocation9 + $0x98] sm:$0xff]
        %v2419 = vld [vmem:[#allocation9 + $0xa0] sm:$0xff]
        %v2420 = vld [vmem:[#allocation9 + $0xa8] sm:$0xff]
        %v2421 = vld [vmem:[#allocation9 + $0xb0] sm:$0xff]
        %v2422 = vld [vmem:[#allocation9 + $0xb8] sm:$0xff]
        %v2423 = vld [vmem:[#allocation9 + $0xc0] sm:$0xff]
        %v2424 = vld [vmem:[#allocation9 + $0xc8] sm:$0xff]
        %v2425 = vld [vmem:[#allocation9 + $0xd0] sm:$0xff]
        %v2426 = vld [vmem:[#allocation9 + $0xd8] sm:$0xff]
        %v2427 = vld [vmem:[#allocation9 + $0xe0] sm:$0xff]
        %v2428 = vld [vmem:[#allocation9 + $0xe8] sm:$0xff]
        %v2429 = vld [vmem:[#allocation9 + $0xf0] sm:$0xff]
        %v2430 = vld [vmem:[#allocation9 + $0xf8] sm:$0xff]
        %v2431 = vld [vmem:[#allocation9 + $0x100] sm:$0xff]
        %v2432 = vld [vmem:[#allocation9 + $0x108] sm:$0xff]
        %v2433 = vld [vmem:[#allocation9 + $0x110] sm:$0xff]
        %v2434 = vld [vmem:[#allocation9 + $0x118] sm:$0xff]
        %v2435 = vld [vmem:[#allocation9 + $0x120] sm:$0xff]
        %v2436 = vld [vmem:[#allocation9 + $0x128] sm:$0xff]
        %v2437 = vld [vmem:[#allocation9 + $0x130] sm:$0xff]
        %v2438 = vld [vmem:[#allocation9 + $0x138] sm:$0xff]
        %v2439 = vld [vmem:[#allocation9 + $0x140] sm:$0xff]
        %v2440 = vld [vmem:[#allocation9 + $0x148] sm:$0xff]
        %v2441 = vld [vmem:[#allocation9 + $0x150] sm:$0xff]
        %v2442 = vld [vmem:[#allocation9 + $0x158] sm:$0xff]
        %v2443 = vld [vmem:[#allocation9 + $0x160] sm:$0xff]
        %v2444 = vld [vmem:[#allocation9 + $0x168] sm:$0xff]
        %v2445 = vld [vmem:[#allocation9 + $0x170] sm:$0xff]
        %v2446 = vld [vmem:[#allocation9 + $0x178] sm:$0xff]
        %v2447 = vld [vmem:[#allocation9 + $0x180] sm:$0xff]
        %v2448 = vld [vmem:[#allocation9 + $0x188] sm:$0xff]
        %v2449 = vld [vmem:[#allocation9 + $0x190] sm:$0xff]
        %v2450 = vld [vmem:[#allocation9 + $0x198] sm:$0xff]
        %v2451 = vld [vmem:[#allocation9 + $0x1a0] sm:$0xff]
        %v2452 = vld [vmem:[#allocation9 + $0x1a8] sm:$0xff]
        %v2453 = vld [vmem:[#allocation9 + $0x1b0] sm:$0xff]
        %v2454 = vld [vmem:[#allocation9 + $0x1b8] sm:$0xff]
        %v2455 = vld [vmem:[#allocation9 + $0x1c0] sm:$0xff]
        %v2456 = vld [vmem:[#allocation9 + $0x1c8] sm:$0xff]
        %v2457 = vld [vmem:[#allocation9 + $0x1d0] sm:$0xff]
        %v2458 = vld [vmem:[#allocation9 + $0x1d8] sm:$0xff]
        %v2459 = vld [vmem:[#allocation9 + $0x1e0] sm:$0xff]
        %v2460 = vld [vmem:[#allocation9 + $0x1e8] sm:$0xff]
        %v2461 = vld [vmem:[#allocation9 + $0x1f0] sm:$0xff]
        %v2462 = vld [vmem:[#allocation9 + $0x1f8] sm:$0xff]
        %v2463 = vld [vmem:[#allocation9 + $0x200] sm:$0xff]
        %v2464 = vld [vmem:[#allocation9 + $0x208] sm:$0xff]
        %v2465 = vld [vmem:[#allocation9 + $0x210] sm:$0xff]
        %v2466 = vld [vmem:[#allocation9 + $0x218] sm:$0xff]
        %v2467 = vld [vmem:[#allocation9 + $0x220] sm:$0xff]
        %v2468 = vld [vmem:[#allocation9 + $0x228] sm:$0xff]
        %v2469 = vld [vmem:[#allocation9 + $0x230] sm:$0xff]
        %v2470 = vld [vmem:[#allocation9 + $0x238] sm:$0xff]
        %v2471 = vld [vmem:[#allocation9 + $0x240] sm:$0xff]
        %v2472 = vld [vmem:[#allocation9 + $0x248] sm:$0xff]
        %v2473 = vld [vmem:[#allocation9 + $0x250] sm:$0xff]
        %v2474 = vld [vmem:[#allocation9 + $0x258] sm:$0xff]
        %v2475 = vld [vmem:[#allocation9 + $0x260] sm:$0xff]
        %v2476 = vld [vmem:[#allocation9 + $0x268] sm:$0xff]
        %v2477 = vld [vmem:[#allocation9 + $0x270] sm:$0xff]
        %v2478 = vld [vmem:[#allocation9 + $0x278] sm:$0xff]
        %v2479 = vld [vmem:[#allocation9 + $0x280] sm:$0xff]
        %v2480 = vld [vmem:[#allocation9 + $0x288] sm:$0xff]
        %v2481 = vld [vmem:[#allocation9 + $0x290] sm:$0xff]
        %v2482 = vld [vmem:[#allocation9 + $0x298] sm:$0xff]
        %v2483 = vld [vmem:[#allocation9 + $0x2a0] sm:$0xff]
        %v2484 = vld [vmem:[#allocation9 + $0x2a8] sm:$0xff]
        %v2485 = vld [vmem:[#allocation9 + $0x2b0] sm:$0xff]
        %v2486 = vld [vmem:[#allocation9 + $0x2b8] sm:$0xff]
        %v2487 = vld [vmem:[#allocation9 + $0x2c0] sm:$0xff]
        %v2488 = vld [vmem:[#allocation9 + $0x2c8] sm:$0xff]
        %v2489 = vld [vmem:[#allocation9 + $0x2d0] sm:$0xff]
        %v2490 = vld [vmem:[#allocation9 + $0x2d8] sm:$0xff]
        %v2491 = vld [vmem:[#allocation9 + $0x2e0] sm:$0xff]
        %v2492 = vld [vmem:[#allocation9 + $0x2e8] sm:$0xff]
        %v2493 = vld [vmem:[#allocation9 + $0x2f0] sm:$0xff]
        %v2494 = vld [vmem:[#allocation9 + $0x2f8] sm:$0xff]
        %v2495 = vld [vmem:[#allocation9 + $0x300] sm:$0xff]
        %v2496 = vld [vmem:[#allocation9 + $0x308] sm:$0xff]
        %v2497 = vld [vmem:[#allocation9 + $0x310] sm:$0xff]
        %v2498 = vld [vmem:[#allocation9 + $0x318] sm:$0xff]
        %v2499 = vld [vmem:[#allocation9 + $0x320] sm:$0xff]
        %v2500 = vld [vmem:[#allocation9 + $0x328] sm:$0xff]
        %v2501 = vld [vmem:[#allocation9 + $0x330] sm:$0xff]
        %v2502 = vld [vmem:[#allocation9 + $0x338] sm:$0xff]
        %v2503 = vld [vmem:[#allocation9 + $0x340] sm:$0xff]
        %v2504 = vld [vmem:[#allocation9 + $0x348] sm:$0xff]
        %v2505 = vld [vmem:[#allocation9 + $0x350] sm:$0xff]
        %v2506 = vld [vmem:[#allocation9 + $0x358] sm:$0xff]
        %v2507 = vld [vmem:[#allocation9 + $0x360] sm:$0xff]
        %v2508 = vld [vmem:[#allocation9 + $0x368] sm:$0xff]
        %v2509 = vld [vmem:[#allocation9 + $0x370] sm:$0xff]
        %v2510 = vld [vmem:[#allocation9 + $0x378] sm:$0xff]
        %v2511 = vld [vmem:[#allocation9 + $0x380] sm:$0xff]
        %v2512 = vld [vmem:[#allocation9 + $0x388] sm:$0xff]
        %v2513 = vld [vmem:[#allocation9 + $0x390] sm:$0xff]
        %v2514 = vld [vmem:[#allocation9 + $0x398] sm:$0xff]
        %v2515 = vld [vmem:[#allocation9 + $0x3a0] sm:$0xff]
        %v2516 = vld [vmem:[#allocation9 + $0x3a8] sm:$0xff]
        %v2517 = vld [vmem:[#allocation9 + $0x3b0] sm:$0xff]
        %v2518 = vld [vmem:[#allocation9 + $0x3b8] sm:$0xff]
        %v2519 = vld [vmem:[#allocation9 + $0x3c0] sm:$0xff]
        %v2520 = vld [vmem:[#allocation9 + $0x3c8] sm:$0xff]
        %v2521 = vld [vmem:[#allocation9 + $0x3d0] sm:$0xff]
        %v2522 = vld [vmem:[#allocation9 + $0x3d8] sm:$0xff]
        %v2523 = vld [vmem:[#allocation9 + $0x3e0] sm:$0xff]
        %v2524 = vld [vmem:[#allocation9 + $0x3e8] sm:$0xff]
        %v2525 = vld [vmem:[#allocation9 + $0x3f0] sm:$0xff]
        %v2526 = vld [vmem:[#allocation9 + $0x3f8] sm:$0xff]
        %v2527 = vld [vmem:[#allocation9 + $0x400] sm:$0xff]
        %v2528 = vld [vmem:[#allocation9 + $0x408] sm:$0xff]
        %v2529 = vld [vmem:[#allocation9 + $0x410] sm:$0xff]
        %v2530 = vld [vmem:[#allocation9 + $0x418] sm:$0xff]
        %v2531 = vld [vmem:[#allocation9 + $0x420] sm:$0xff]
        %v2532 = vld [vmem:[#allocation9 + $0x428] sm:$0xff]
        %v2533 = vld [vmem:[#allocation9 + $0x430] sm:$0xff]
        %v2534 = vld [vmem:[#allocation9 + $0x438] sm:$0xff]
        %v2535 = vld [vmem:[#allocation9 + $0x440] sm:$0xff]
        %v2536 = vld [vmem:[#allocation9 + $0x448] sm:$0xff]
        %v2537 = vld [vmem:[#allocation9 + $0x450] sm:$0xff]
        %v2538 = vld [vmem:[#allocation9 + $0x458] sm:$0xff]
        %v2539 = vld [vmem:[#allocation9 + $0x460] sm:$0xff]
        %v2540 = vld [vmem:[#allocation9 + $0x468] sm:$0xff]
        %v2541 = vld [vmem:[#allocation9 + $0x470] sm:$0xff]
        %v2542 = vld [vmem:[#allocation9 + $0x478] sm:$0xff]
        %v2543 = vld [vmem:[#allocation11] sm:$0x1]
        %v2545 = vlaneseq
        %v2546 = vshrl.u32 %v2545, 7
        %v2547 = vsub.s32 0, %v2546
        %v2548 = vrot.slane %v2543, %v2547
        %2550 = vmatprep.subr.mxu0 0.0
        %2551 = vmatpush1.msra.mxu0 %v2399
        %2552 = vmatprep.subr.mxu0 0.0
        %2553 = vmatpush1.msra.mxu0 %v2400
        %2554 = vmatprep.subr.mxu0 0.0
        %2555 = vmatpush1.msra.mxu0 %v2401
        %2556 = vmatprep.subr.mxu0 0.0
        %2557 = vmatpush1.msra.mxu0 %v2402
        %2558 = vmatprep.subr.mxu0 0.0
        %2559 = vmatpush1.msra.mxu0 %v2403
        %2560 = vmatprep.subr.mxu0 0.0
        %2561 = vmatpush1.msra.mxu0 %v2404
        %2562 = vmatprep.subr.mxu0 0.0
        %2563 = vmatpush1.msra.mxu0 %v2405
        %2564 = vmatprep.subr.mxu0 0.0
        %2565 = vmatpush1.msra.mxu0 %v2406
        %2566 = vmatprep.subr.mxu0 0.0
        %2567 = vmatpush1.msra.mxu0 %v2407
        %2568 = vmatprep.subr.mxu0 0.0
        %2569 = vmatpush1.msra.mxu0 %v2408
        %2570 = vmatprep.subr.mxu0 0.0
        %2571 = vmatpush1.msra.mxu0 %v2409
        %2572 = vmatprep.subr.mxu0 0.0
        %2573 = vmatpush1.msra.mxu0 %v2410
        %2574 = vmatprep.subr.mxu0 0.0
        %2575 = vmatpush1.msra.mxu0 %v2411
        %2576 = vmatprep.subr.mxu0 0.0
        %2577 = vmatpush1.msra.mxu0 %v2412
        %2578 = vmatprep.subr.mxu0 0.0
        %2579 = vmatpush1.msra.mxu0 %v2413
        %2580 = vmatprep.subr.mxu0 0.0
        %2581 = vmatpush1.msra.mxu0 %v2414
        %2582 = vmatprep.subr.mxu0 0.0
        %2583 = vmatpush1.msra.mxu0 %v2415
        %2584 = vmatprep.subr.mxu0 0.0
        %2585 = vmatpush1.msra.mxu0 %v2416
        %2586 = vmatprep.subr.mxu0 0.0
        %2587 = vmatpush1.msra.mxu0 %v2417
        %2588 = vmatprep.subr.mxu0 0.0
        %2589 = vmatpush1.msra.mxu0 %v2418
        %2590 = vmatprep.subr.mxu0 0.0
        %2591 = vmatpush1.msra.mxu0 %v2419
        %2592 = vmatprep.subr.mxu0 0.0
        %2593 = vmatpush1.msra.mxu0 %v2420
        %2594 = vmatprep.subr.mxu0 0.0
        %2595 = vmatpush1.msra.mxu0 %v2421
        %2596 = vmatprep.subr.mxu0 0.0
        %2597 = vmatpush1.msra.mxu0 %v2422
        %2598 = vmatprep.subr.mxu0 0.0
        %2599 = vmatpush1.msra.mxu0 %v2423
        %2600 = vmatprep.subr.mxu0 0.0
        %2601 = vmatpush1.msra.mxu0 %v2424
        %2602 = vmatprep.subr.mxu0 0.0
        %2603 = vmatpush1.msra.mxu0 %v2425
        %2604 = vmatprep.subr.mxu0 0.0
        %2605 = vmatpush1.msra.mxu0 %v2426
        %2606 = vmatprep.subr.mxu0 0.0
        %2607 = vmatpush1.msra.mxu0 %v2427
        %2608 = vmatprep.subr.mxu0 0.0
        %2609 = vmatpush1.msra.mxu0 %v2428
        %2610 = vmatprep.subr.mxu0 0.0
        %2611 = vmatpush1.msra.mxu0 %v2429
        %2612 = vmatprep.subr.mxu0 0.0
        %2613 = vmatpush1.msra.mxu0 %v2430
        %2614 = vmatprep.mubr.f32.mxu0 %v2143
        %2615 = vmatmul.mubr.f32.gmra.mrb[0].mxu0 %v2039
        %v2616 = vpop.f32.mrb[0].mxu0
        %v2617 = vadd.f32 %v2548, %v2616
        %v2618 = vpop.f32.mrb[0].mxu0
        %2619 = vmatprep.mubr.f32.mxu0 %v2145
        %2620 = vmatmul.mubr.f32.gmra.mrb[0].mxu0 %v2040
        %v2621 = vpop.f32.mrb[0].mxu0
        %v2622 = vadd.f32 %v2548, %v2621
        %v2623 = vpop.f32.mrb[0].mxu0
        %2624 = vmatprep.mubr.f32.mxu0 %v2148
        %2625 = vmatmul.mubr.f32.gmra.mrb[0].mxu0 %v2042
        %v2626 = vpop.f32.mrb[0].mxu0
        %v2627 = vadd.f32 %v2548, %v2626
        %v2628 = vpop.f32.mrb[0].mxu0
        %2629 = vmatprep.mubr.f32.mxu0 %v2150
        %2630 = vmatmul.mubr.f32.gmra.mrb[0].mxu0 %v2043
        %v2631 = vpop.f32.mrb[0].mxu0
        %v2632 = vadd.f32 %v2548, %v2631
        %v2633 = vpop.f32.mrb[0].mxu0
        %2634 = vmatprep.mubr.f32.mxu0 %v2153
        %2635 = vmatmul.mubr.f32.gmra.mrb[0].mxu0 %v2045
        %v2636 = vpop.f32.mrb[0].mxu0
        %v2637 = vadd.f32 %v2548, %v2636
        %v2638 = vpop.f32.mrb[0].mxu0
        %2639 = vmatprep.mubr.f32.mxu0 %v2155
        %2640 = vmatmul.mubr.f32.gmra.mrb[0].mxu0 %v2046
        %v2641 = vpop.f32.mrb[0].mxu0
        %v2642 = vadd.f32 %v2548, %v2641
        %v2643 = vpop.f32.mrb[0].mxu0
        %2644 = vmatprep.mubr.f32.mxu0 %v2158
        %2645 = vmatmul.mubr.f32.gmra.mrb[0].mxu0 %v2048
        %v2646 = vpop.f32.mrb[0].mxu0
        %v2647 = vadd.f32 %v2548, %v2646
        %v2648 = vpop.f32.mrb[0].mxu0
        %2649 = vmatprep.mubr.f32.mxu0 %v2160
        %2650 = vmatmul.mubr.f32.gmra.mrb[0].mxu0 %v2049
        %v2651 = vpop.f32.mrb[0].mxu0
        %v2652 = vadd.f32 %v2548, %v2651
        %v2653 = vpop.f32.mrb[0].mxu0
        %2654 = vmatprep.mubr.f32.mxu0 %v2163
        %2655 = vmatmul.mubr.f32.gmra.mrb[0].mxu0 %v2051
        %v2656 = vpop.f32.mrb[0].mxu0
        %v2657 = vadd.f32 %v2548, %v2656
        %v2658 = vpop.f32.mrb[0].mxu0
        %2659 = vmatprep.mubr.f32.mxu0 %v2165
        %2660 = vmatmul.mubr.f32.gmra.mrb[0].mxu0 %v2052
        %v2661 = vpop.f32.mrb[0].mxu0
        %v2662 = vadd.f32 %v2548, %v2661
        %v2663 = vpop.f32.mrb[0].mxu0
        %2664 = vmatprep.mubr.f32.mxu0 %v2168
        %2665 = vmatmul.mubr.f32.gmra.mrb[0].mxu0 %v2054
        %v2666 = vpop.f32.mrb[0].mxu0
        %v2667 = vadd.f32 %v2548, %v2666
        %v2668 = vpop.f32.mrb[0].mxu0
        %2669 = vmatprep.mubr.f32.mxu0 %v2170
        %2670 = vmatmul.mubr.f32.gmra.mrb[0].mxu0 %v2055
        %v2671 = vpop.f32.mrb[0].mxu0
        %v2672 = vadd.f32 %v2548, %v2671
        %v2673 = vpop.f32.mrb[0].mxu0
        %2674 = vmatprep.mubr.f32.mxu0 %v2173
        %2675 = vmatmul.mubr.f32.gmra.mrb[0].mxu0 %v2057
        %v2676 = vpop.f32.mrb[0].mxu0
        %v2677 = vadd.f32 %v2548, %v2676
        %v2678 = vpop.f32.mrb[0].mxu0
        %2679 = vmatprep.mubr.f32.mxu0 %v2175
        %2680 = vmatmul.mubr.f32.gmra.mrb[0].mxu0 %v2058
        %v2681 = vpop.f32.mrb[0].mxu0
        %v2682 = vadd.f32 %v2548, %v2681
        %v2683 = vpop.f32.mrb[0].mxu0
        %2684 = vmatprep.mubr.f32.mxu0 %v2178
        %2685 = vmatmul.mubr.f32.gmra.mrb[0].mxu0 %v2060
        %v2686 = vpop.f32.mrb[0].mxu0
        %v2687 = vadd.f32 %v2548, %v2686
        %v2688 = vpop.f32.mrb[0].mxu0
        %2689 = vmatprep.mubr.f32.mxu0 %v2180
        %2690 = vmatmul.mubr.f32.gmra.mrb[0].mxu0 %v2061
        %v2691 = vpop.f32.mrb[0].mxu0
        %v2692 = vadd.f32 %v2548, %v2691
        %v2693 = vpop.f32.mrb[0].mxu0
        %2694 = vmatprep.mubr.f32.mxu0 %v2183
        %2695 = vmatmul.mubr.f32.gmra.mrb[0].mxu0 %v2063
        %v2696 = vpop.f32.mrb[0].mxu0
        %v2697 = vadd.f32 %v2548, %v2696
        %v2698 = vpop.f32.mrb[0].mxu0
        %2699 = vmatprep.mubr.f32.mxu0 %v2185
        %2700 = vmatmul.mubr.f32.gmra.mrb[0].mxu0 %v2064
        %v2701 = vpop.f32.mrb[0].mxu0
        %v2702 = vadd.f32 %v2548, %v2701
        %v2703 = vpop.f32.mrb[0].mxu0
        %2704 = vmatprep.mubr.f32.mxu0 %v2188
        %2705 = vmatmul.mubr.f32.gmra.mrb[0].mxu0 %v2066
        %v2706 = vpop.f32.mrb[0].mxu0
        %v2707 = vadd.f32 %v2548, %v2706
        %v2708 = vpop.f32.mrb[0].mxu0
        %2709 = vmatprep.mubr.f32.mxu0 %v2190
        %2710 = vmatmul.mubr.f32.gmra.mrb[0].mxu0 %v2067
        %v2711 = vpop.f32.mrb[0].mxu0
        %v2712 = vadd.f32 %v2548, %v2711
        %v2713 = vpop.f32.mrb[0].mxu0
        %2714 = vmatprep.mubr.f32.mxu0 %v2193
        %2715 = vmatmul.mubr.f32.gmra.mrb[0].mxu0 %v2069
        %v2716 = vpop.f32.mrb[0].mxu0
        %v2717 = vadd.f32 %v2548, %v2716
        %v2718 = vpop.f32.mrb[0].mxu0
        %2719 = vmatprep.mubr.f32.mxu0 %v2195
        %2720 = vmatmul.mubr.f32.gmra.mrb[0].mxu0 %v2070
        %v2721 = vpop.f32.mrb[0].mxu0
        %v2722 = vadd.f32 %v2548, %v2721
        %v2723 = vpop.f32.mrb[0].mxu0
        %2724 = vmatprep.mubr.f32.mxu0 %v2198
        %2725 = vmatmul.mubr.f32.gmra.mrb[0].mxu0 %v2072
        %v2726 = vpop.f32.mrb[0].mxu0
        %v2727 = vadd.f32 %v2548, %v2726
        %v2728 = vpop.f32.mrb[0].mxu0
        %2729 = vmatprep.mubr.f32.mxu0 %v2200
        %2730 = vmatmul.mubr.f32.gmra.mrb[0].mxu0 %v2073
        %v2731 = vpop.f32.mrb[0].mxu0
        %v2732 = vadd.f32 %v2548, %v2731
        %v2733 = vpop.f32.mrb[0].mxu0
        %2734 = vmatprep.mubr.f32.mxu0 %v2203
        %2735 = vmatmul.mubr.f32.gmra.mrb[0].mxu0 %v2075
        %v2736 = vpop.f32.mrb[0].mxu0
        %v2737 = vadd.f32 %v2548, %v2736
        %v2738 = vpop.f32.mrb[0].mxu0
        %2739 = vmatprep.mubr.f32.mxu0 %v2205
        %2740 = vmatmul.mubr.f32.gmra.mrb[0].mxu0 %v2076
        %v2741 = vpop.f32.mrb[0].mxu0
        %v2742 = vadd.f32 %v2548, %v2741
        %v2743 = vpop.f32.mrb[0].mxu0
        %2744 = vmatprep.mubr.f32.mxu0 %v2208
        %2745 = vmatmul.mubr.f32.gmra.mrb[0].mxu0 %v2078
        %v2746 = vpop.f32.mrb[0].mxu0
        %v2747 = vadd.f32 %v2548, %v2746
        %v2748 = vpop.f32.mrb[0].mxu0
        %2749 = vmatprep.mubr.f32.mxu0 %v2210
        %2750 = vmatmul.mubr.f32.gmra.mrb[0].mxu0 %v2079
        %v2751 = vpop.f32.mrb[0].mxu0
        %v2752 = vadd.f32 %v2548, %v2751
        %v2753 = vpop.f32.mrb[0].mxu0
        %2754 = vmatprep.mubr.f32.mxu0 %v2213
        %2755 = vmatmul.mubr.f32.gmra.mrb[0].mxu0 %v2081
        %v2756 = vpop.f32.mrb[0].mxu0
        %v2757 = vadd.f32 %v2548, %v2756
        %v2758 = vpop.f32.mrb[0].mxu0
        %2759 = vmatprep.mubr.f32.mxu0 %v2215
        %2760 = vmatmul.mubr.f32.gmra.mrb[0].mxu0 %v2082
        %v2761 = vpop.f32.mrb[0].mxu0
        %v2762 = vadd.f32 %v2548, %v2761
        %v2763 = vpop.f32.mrb[0].mxu0
        %2764 = vmatprep.mubr.f32.mxu0 %v2218
        %2765 = vmatmul.mubr.f32.gmra.mrb[0].mxu0 %v2084
        %v2766 = vpop.f32.mrb[0].mxu0
        %v2767 = vadd.f32 %v2548, %v2766
        %v2768 = vpop.f32.mrb[0].mxu0
        %2769 = vmatprep.mubr.f32.mxu0 %v2220
        %2770 = vmatmul.mubr.f32.gmra.mrb[0].mxu0 %v2085
        %v2771 = vpop.f32.mrb[0].mxu0
        %v2772 = vadd.f32 %v2548, %v2771
        %v2773 = vpop.f32.mrb[0].mxu0
        %2774 = vdwg.mxu0
        %2775 = vmatprep.subr.mxu0 0.0
        %2776 = vmatpush1.msra.mxu0 %v2431
        %2777 = vmatprep.subr.mxu0 0.0
        %2778 = vmatpush1.msra.mxu0 %v2432
        %2779 = vmatprep.subr.mxu0 0.0
        %2780 = vmatpush1.msra.mxu0 %v2433
        %2781 = vmatprep.subr.mxu0 0.0
        %2782 = vmatpush1.msra.mxu0 %v2434
        %2783 = vmatprep.subr.mxu0 0.0
        %2784 = vmatpush1.msra.mxu0 %v2435
        %2785 = vmatprep.subr.mxu0 0.0
        %2786 = vmatpush1.msra.mxu0 %v2436
        %2787 = vmatprep.subr.mxu0 0.0
        %2788 = vmatpush1.msra.mxu0 %v2437
        %2789 = vmatprep.subr.mxu0 0.0
        %2790 = vmatpush1.msra.mxu0 %v2438
        %2791 = vmatprep.subr.mxu0 0.0
        %2792 = vmatpush1.msra.mxu0 %v2439
        %2793 = vmatprep.subr.mxu0 0.0
        %2794 = vmatpush1.msra.mxu0 %v2440
        %2795 = vmatprep.subr.mxu0 0.0
        %2796 = vmatpush1.msra.mxu0 %v2441
        %2797 = vmatprep.subr.mxu0 0.0
        %2798 = vmatpush1.msra.mxu0 %v2442
        %2799 = vmatprep.subr.mxu0 0.0
        %2800 = vmatpush1.msra.mxu0 %v2443
        %2801 = vmatprep.subr.mxu0 0.0
        %2802 = vmatpush1.msra.mxu0 %v2444
        %2803 = vmatprep.subr.mxu0 0.0
        %2804 = vmatpush1.msra.mxu0 %v2445
        %2805 = vmatprep.subr.mxu0 0.0
        %2806 = vmatpush1.msra.mxu0 %v2446
        %2807 = vmatprep.subr.mxu0 0.0
        %2808 = vmatpush1.msra.mxu0 %v2447
        %2809 = vmatprep.subr.mxu0 0.0
        %2810 = vmatpush1.msra.mxu0 %v2448
        %2811 = vmatprep.subr.mxu0 0.0
        %2812 = vmatpush1.msra.mxu0 %v2449
        %2813 = vmatprep.subr.mxu0 0.0
        %2814 = vmatpush1.msra.mxu0 %v2450
        %2815 = vmatprep.subr.mxu0 0.0
        %2816 = vmatpush1.msra.mxu0 %v2451
        %2817 = vmatprep.subr.mxu0 0.0
        %2818 = vmatpush1.msra.mxu0 %v2452
        %2819 = vmatprep.subr.mxu0 0.0
        %2820 = vmatpush1.msra.mxu0 %v2453
        %2821 = vmatprep.subr.mxu0 0.0
        %2822 = vmatpush1.msra.mxu0 %v2454
        %2823 = vmatprep.subr.mxu0 0.0
        %2824 = vmatpush1.msra.mxu0 %v2455
        %2825 = vmatprep.subr.mxu0 0.0
        %2826 = vmatpush1.msra.mxu0 %v2456
        %2827 = vmatprep.subr.mxu0 0.0
        %2828 = vmatpush1.msra.mxu0 %v2457
        %2829 = vmatprep.subr.mxu0 0.0
        %2830 = vmatpush1.msra.mxu0 %v2458
        %2831 = vmatprep.subr.mxu0 0.0
        %2832 = vmatpush1.msra.mxu0 %v2459
        %2833 = vmatprep.subr.mxu0 0.0
        %2834 = vmatpush1.msra.mxu0 %v2460
        %2835 = vmatprep.subr.mxu0 0.0
        %2836 = vmatpush1.msra.mxu0 %v2461
        %2837 = vmatprep.subr.mxu0 0.0
        %2838 = vmatpush1.msra.mxu0 %v2462
        %2839 = vmatprep.mubr.f32.mxu0 %v2042
        %2840 = vmatmul.mubr.f32.gmra.mrb[0].mxu0 %v2255
        %v2841 = vpop.f32.mrb[0].mxu0
        %v2842 = vadd.f32 %v2617, %v2841
        %v2843 = vpop.f32.mrb[0].mxu0
        %2844 = vmatprep.mubr.f32.mxu0 %v2043
        %2845 = vmatmul.mubr.f32.gmra.mrb[0].mxu0 %v2257
        %v2846 = vpop.f32.mrb[0].mxu0
        %v2847 = vadd.f32 %v2622, %v2846
        %v2848 = vpop.f32.mrb[0].mxu0
        %2849 = vmatprep.mubr.f32.mxu0 %v2045
        %2850 = vmatmul.mubr.f32.gmra.mrb[0].mxu0 %v2260
        %v2851 = vpop.f32.mrb[0].mxu0
        %v2852 = vadd.f32 %v2627, %v2851
        %v2853 = vpop.f32.mrb[0].mxu0
        %2854 = vmatprep.mubr.f32.mxu0 %v2046
        %2855 = vmatmul.mubr.f32.gmra.mrb[0].mxu0 %v2262
        %v2856 = vpop.f32.mrb[0].mxu0
        %v2857 = vadd.f32 %v2632, %v2856
        %v2858 = vpop.f32.mrb[0].mxu0
        %2859 = vmatprep.mubr.f32.mxu0 %v2048
        %2860 = vmatmul.mubr.f32.gmra.mrb[0].mxu0 %v2265
        %v2861 = vpop.f32.mrb[0].mxu0
        %v2862 = vadd.f32 %v2637, %v2861
        %v2863 = vpop.f32.mrb[0].mxu0
        %2864 = vmatprep.mubr.f32.mxu0 %v2049
        %2865 = vmatmul.mubr.f32.gmra.mrb[0].mxu0 %v2267
        %v2866 = vpop.f32.mrb[0].mxu0
        %v2867 = vadd.f32 %v2642, %v2866
        %v2868 = vpop.f32.mrb[0].mxu0
        %2869 = vmatprep.mubr.f32.mxu0 %v2051
        %2870 = vmatmul.mubr.f32.gmra.mrb[0].mxu0 %v2270
        %v2871 = vpop.f32.mrb[0].mxu0
        %v2872 = vadd.f32 %v2647, %v2871
        %v2873 = vpop.f32.mrb[0].mxu0
        %2874 = vmatprep.mubr.f32.mxu0 %v2052
        %2875 = vmatmul.mubr.f32.gmra.mrb[0].mxu0 %v2272
        %v2876 = vpop.f32.mrb[0].mxu0
        %v2877 = vadd.f32 %v2652, %v2876
        %v2878 = vpop.f32.mrb[0].mxu0
        %2879 = vmatprep.mubr.f32.mxu0 %v2054
        %2880 = vmatmul.mubr.f32.gmra.mrb[0].mxu0 %v2275
        %v2881 = vpop.f32.mrb[0].mxu0
        %v2882 = vadd.f32 %v2657, %v2881
        %v2883 = vpop.f32.mrb[0].mxu0
        %2884 = vmatprep.mubr.f32.mxu0 %v2055
        %2885 = vmatmul.mubr.f32.gmra.mrb[0].mxu0 %v2277
        %v2886 = vpop.f32.mrb[0].mxu0
        %v2887 = vadd.f32 %v2662, %v2886
        %v2888 = vpop.f32.mrb[0].mxu0
        %2889 = vmatprep.mubr.f32.mxu0 %v2057
        %2890 = vmatmul.mubr.f32.gmra.mrb[0].mxu0 %v2280
        %v2891 = vpop.f32.mrb[0].mxu0
        %v2892 = vadd.f32 %v2667, %v2891
        %v2893 = vpop.f32.mrb[0].mxu0
        %2894 = vmatprep.mubr.f32.mxu0 %v2058
        %2895 = vmatmul.mubr.f32.gmra.mrb[0].mxu0 %v2282
        %v2896 = vpop.f32.mrb[0].mxu0
        %v2897 = vadd.f32 %v2672, %v2896
        %v2898 = vpop.f32.mrb[0].mxu0
        %2899 = vmatprep.mubr.f32.mxu0 %v2060
        %2900 = vmatmul.mubr.f32.gmra.mrb[0].mxu0 %v2285
        %v2901 = vpop.f32.mrb[0].mxu0
        %v2902 = vadd.f32 %v2677, %v2901
        %v2903 = vpop.f32.mrb[0].mxu0
        %2904 = vmatprep.mubr.f32.mxu0 %v2061
        %2905 = vmatmul.mubr.f32.gmra.mrb[0].mxu0 %v2287
        %v2906 = vpop.f32.mrb[0].mxu0
        %v2907 = vadd.f32 %v2682, %v2906
        %v2908 = vpop.f32.mrb[0].mxu0
        %2909 = vmatprep.mubr.f32.mxu0 %v2063
        %2910 = vmatmul.mubr.f32.gmra.mrb[0].mxu0 %v2290
        %v2911 = vpop.f32.mrb[0].mxu0
        %v2912 = vadd.f32 %v2687, %v2911
        %v2913 = vpop.f32.mrb[0].mxu0
        %2914 = vmatprep.mubr.f32.mxu0 %v2064
        %2915 = vmatmul.mubr.f32.gmra.mrb[0].mxu0 %v2292
        %v2916 = vpop.f32.mrb[0].mxu0
        %v2917 = vadd.f32 %v2692, %v2916
        %v2918 = vpop.f32.mrb[0].mxu0
        %2919 = vmatprep.mubr.f32.mxu0 %v2066
        %2920 = vmatmul.mubr.f32.gmra.mrb[0].mxu0 %v2295
        %v2921 = vpop.f32.mrb[0].mxu0
        %v2922 = vadd.f32 %v2697, %v2921
        %v2923 = vpop.f32.mrb[0].mxu0
        %2924 = vmatprep.mubr.f32.mxu0 %v2067
        %2925 = vmatmul.mubr.f32.gmra.mrb[0].mxu0 %v2297
        %v2926 = vpop.f32.mrb[0].mxu0
        %v2927 = vadd.f32 %v2702, %v2926
        %v2928 = vpop.f32.mrb[0].mxu0
        %2929 = vmatprep.mubr.f32.mxu0 %v2069
        %2930 = vmatmul.mubr.f32.gmra.mrb[0].mxu0 %v2300
        %v2931 = vpop.f32.mrb[0].mxu0
        %v2932 = vadd.f32 %v2707, %v2931
        %v2933 = vpop.f32.mrb[0].mxu0
        %2934 = vmatprep.mubr.f32.mxu0 %v2070
        %2935 = vmatmul.mubr.f32.gmra.mrb[0].mxu0 %v2302
        %v2936 = vpop.f32.mrb[0].mxu0
        %v2937 = vadd.f32 %v2712, %v2936
        %v2938 = vpop.f32.mrb[0].mxu0
        %2939 = vmatprep.mubr.f32.mxu0 %v2072
        %2940 = vmatmul.mubr.f32.gmra.mrb[0].mxu0 %v2305
        %v2941 = vpop.f32.mrb[0].mxu0
        %v2942 = vadd.f32 %v2717, %v2941
        %v2943 = vpop.f32.mrb[0].mxu0
        %2944 = vmatprep.mubr.f32.mxu0 %v2073
        %2945 = vmatmul.mubr.f32.gmra.mrb[0].mxu0 %v2307
        %v2946 = vpop.f32.mrb[0].mxu0
        %v2947 = vadd.f32 %v2722, %v2946
        %v2948 = vpop.f32.mrb[0].mxu0
        %2949 = vmatprep.mubr.f32.mxu0 %v2075
        %2950 = vmatmul.mubr.f32.gmra.mrb[0].mxu0 %v2310
        %v2951 = vpop.f32.mrb[0].mxu0
        %v2952 = vadd.f32 %v2727, %v2951
        %v2953 = vpop.f32.mrb[0].mxu0
        %2954 = vmatprep.mubr.f32.mxu0 %v2076
        %2955 = vmatmul.mubr.f32.gmra.mrb[0].mxu0 %v2312
        %v2956 = vpop.f32.mrb[0].mxu0
        %v2957 = vadd.f32 %v2732, %v2956
        %v2958 = vpop.f32.mrb[0].mxu0
        %2959 = vmatprep.mubr.f32.mxu0 %v2078
        %2960 = vmatmul.mubr.f32.gmra.mrb[0].mxu0 %v2315
        %v2961 = vpop.f32.mrb[0].mxu0
        %v2962 = vadd.f32 %v2737, %v2961
        %v2963 = vpop.f32.mrb[0].mxu0
        %2964 = vmatprep.mubr.f32.mxu0 %v2079
        %2965 = vmatmul.mubr.f32.gmra.mrb[0].mxu0 %v2317
        %v2966 = vpop.f32.mrb[0].mxu0
        %v2967 = vadd.f32 %v2742, %v2966
        %v2968 = vpop.f32.mrb[0].mxu0
        %2969 = vmatprep.mubr.f32.mxu0 %v2081
        %2970 = vmatmul.mubr.f32.gmra.mrb[0].mxu0 %v2320
        %v2971 = vpop.f32.mrb[0].mxu0
        %v2972 = vadd.f32 %v2747, %v2971
        %v2973 = vpop.f32.mrb[0].mxu0
        %2974 = vmatprep.mubr.f32.mxu0 %v2082
        %2975 = vmatmul.mubr.f32.gmra.mrb[0].mxu0 %v2322
        %v2976 = vpop.f32.mrb[0].mxu0
        %v2977 = vadd.f32 %v2752, %v2976
        %v2978 = vpop.f32.mrb[0].mxu0
        %2979 = vmatprep.mubr.f32.mxu0 %v2084
        %2980 = vmatmul.mubr.f32.gmra.mrb[0].mxu0 %v2325
        %v2981 = vpop.f32.mrb[0].mxu0
        %v2982 = vadd.f32 %v2757, %v2981
        %v2983 = vpop.f32.mrb[0].mxu0
        %2984 = vmatprep.mubr.f32.mxu0 %v2085
        %2985 = vmatmul.mubr.f32.gmra.mrb[0].mxu0 %v2327
        %v2986 = vpop.f32.mrb[0].mxu0
        %v2987 = vadd.f32 %v2762, %v2986
        %v2988 = vpop.f32.mrb[0].mxu0
        %2989 = vmatprep.mubr.f32.mxu0 %v2087
        %2990 = vmatmul.mubr.f32.gmra.mrb[0].mxu0 %v2330
        %v2991 = vpop.f32.mrb[0].mxu0
        %v2992 = vadd.f32 %v2767, %v2991
        %v2993 = vpop.f32.mrb[0].mxu0
        %2994 = vmatprep.mubr.f32.mxu0 %v2088
        %2995 = vmatmul.mubr.f32.gmra.mrb[0].mxu0 %v2332
        %v2996 = vpop.f32.mrb[0].mxu0
        %v2997 = vadd.f32 %v2772, %v2996
        %v2998 = vpop.f32.mrb[0].mxu0
        %2999 = vdwg.mxu0
        %3000 = vmatprep.subr.mxu0 0.0
        %3001 = vmatpush1.msra.mxu0 %v2463
        %3002 = vmatprep.subr.mxu0 0.0
        %3003 = vmatpush1.msra.mxu0 %v2464
        %3004 = vmatprep.subr.mxu0 0.0
        %3005 = vmatpush1.msra.mxu0 %v2465
        %3006 = vmatprep.subr.mxu0 0.0
        %3007 = vmatpush1.msra.mxu0 %v2466
        %3008 = vmatprep.subr.mxu0 0.0
        %3009 = vmatpush1.msra.mxu0 %v2467
        %3010 = vmatprep.subr.mxu0 0.0
        %3011 = vmatpush1.msra.mxu0 %v2468
        %3012 = vmatprep.subr.mxu0 0.0
        %3013 = vmatpush1.msra.mxu0 %v2469
        %3014 = vmatprep.subr.mxu0 0.0
        %3015 = vmatpush1.msra.mxu0 %v2470
        %3016 = vmatprep.subr.mxu0 0.0
        %3017 = vmatpush1.msra.mxu0 %v2471
        %3018 = vmatprep.subr.mxu0 0.0
        %3019 = vmatpush1.msra.mxu0 %v2472
        %3020 = vmatprep.subr.mxu0 0.0
        %3021 = vmatpush1.msra.mxu0 %v2473
        %3022 = vmatprep.subr.mxu0 0.0
        %3023 = vmatpush1.msra.mxu0 %v2474
        %3024 = vmatprep.subr.mxu0 0.0
        %3025 = vmatpush1.msra.mxu0 %v2475
        %3026 = vmatprep.subr.mxu0 0.0
        %3027 = vmatpush1.msra.mxu0 %v2476
        %3028 = vmatprep.subr.mxu0 0.0
        %3029 = vmatpush1.msra.mxu0 %v2477
        %3030 = vmatprep.subr.mxu0 0.0
        %3031 = vmatpush1.msra.mxu0 %v2478
        %3032 = vmatprep.subr.mxu0 0.0
        %3033 = vmatpush1.msra.mxu0 %v2479
        %3034 = vmatprep.subr.mxu0 0.0
        %3035 = vmatpush1.msra.mxu0 %v2480
        %3036 = vmatprep.subr.mxu0 0.0
        %3037 = vmatpush1.msra.mxu0 %v2481
        %3038 = vmatprep.subr.mxu0 0.0
        %3039 = vmatpush1.msra.mxu0 %v2482
        %3040 = vmatprep.subr.mxu0 0.0
        %3041 = vmatpush1.msra.mxu0 %v2483
        %3042 = vmatprep.subr.mxu0 0.0
        %3043 = vmatpush1.msra.mxu0 %v2484
        %3044 = vmatprep.subr.mxu0 0.0
        %3045 = vmatpush1.msra.mxu0 %v2485
        %3046 = vmatprep.subr.mxu0 0.0
        %3047 = vmatpush1.msra.mxu0 %v2486
        %3048 = vmatprep.subr.mxu0 0.0
        %3049 = vmatpush1.msra.mxu0 %v2487
        %3050 = vmatprep.subr.mxu0 0.0
        %3051 = vmatpush1.msra.mxu0 %v2488
        %3052 = vmatprep.subr.mxu0 0.0
        %3053 = vmatpush1.msra.mxu0 %v2489
        %3054 = vmatprep.subr.mxu0 0.0
        %3055 = vmatpush1.msra.mxu0 %v2490
        %3056 = vmatprep.subr.mxu0 0.0
        %3057 = vmatpush1.msra.mxu0 %v2491
        %3058 = vmatprep.subr.mxu0 0.0
        %3059 = vmatpush1.msra.mxu0 %v2492
        %3060 = vmatprep.subr.mxu0 0.0
        %3061 = vmatpush1.msra.mxu0 %v2493
        %3062 = vmatprep.subr.mxu0 0.0
        %3063 = vmatpush1.msra.mxu0 %v2494
        %3064 = vmatprep.mubr.f32.mxu0 %v2260
        %3065 = vmatmul.mubr.f32.gmra.mrb[0].mxu0 %v2148
        %v3066 = vpop.f32.mrb[0].mxu0
        %v3067 = vadd.f32 %v2842, %v3066
        %v3068 = vpop.f32.mrb[0].mxu0
        %3069 = vmatprep.mubr.f32.mxu0 %v2262
        %3070 = vmatmul.mubr.f32.gmra.mrb[0].mxu0 %v2150
        %v3071 = vpop.f32.mrb[0].mxu0
        %v3072 = vadd.f32 %v2847, %v3071
        %v3073 = vpop.f32.mrb[0].mxu0
        %3074 = vmatprep.mubr.f32.mxu0 %v2265
        %3075 = vmatmul.mubr.f32.gmra.mrb[0].mxu0 %v2153
        %v3076 = vpop.f32.mrb[0].mxu0
        %v3077 = vadd.f32 %v2852, %v3076
        %v3078 = vpop.f32.mrb[0].mxu0
        %3079 = vmatprep.mubr.f32.mxu0 %v2267
        %3080 = vmatmul.mubr.f32.gmra.mrb[0].mxu0 %v2155
        %v3081 = vpop.f32.mrb[0].mxu0
        %v3082 = vadd.f32 %v2857, %v3081
        %v3083 = vpop.f32.mrb[0].mxu0
        %3084 = vmatprep.mubr.f32.mxu0 %v2270
        %3085 = vmatmul.mubr.f32.gmra.mrb[0].mxu0 %v2158
        %v3086 = vpop.f32.mrb[0].mxu0
        %v3087 = vadd.f32 %v2862, %v3086
        %v3088 = vpop.f32.mrb[0].mxu0
        %3089 = vmatprep.mubr.f32.mxu0 %v2272
        %3090 = vmatmul.mubr.f32.gmra.mrb[0].mxu0 %v2160
        %v3091 = vpop.f32.mrb[0].mxu0
        %v3092 = vadd.f32 %v2867, %v3091
        %v3093 = vpop.f32.mrb[0].mxu0
        %3094 = vmatprep.mubr.f32.mxu0 %v2275
        %3095 = vmatmul.mubr.f32.gmra.mrb[0].mxu0 %v2163
        %v3096 = vpop.f32.mrb[0].mxu0
        %v3097 = vadd.f32 %v2872, %v3096
        %v3098 = vpop.f32.mrb[0].mxu0
        %3099 = vmatprep.mubr.f32.mxu0 %v2277
        %3100 = vmatmul.mubr.f32.gmra.mrb[0].mxu0 %v2165
        %v3101 = vpop.f32.mrb[0].mxu0
        %v3102 = vadd.f32 %v2877, %v3101
        %v3103 = vpop.f32.mrb[0].mxu0
        %3104 = vmatprep.mubr.f32.mxu0 %v2280
        %3105 = vmatmul.mubr.f32.gmra.mrb[0].mxu0 %v2168
        %v3106 = vpop.f32.mrb[0].mxu0
        %v3107 = vadd.f32 %v2882, %v3106
        %v3108 = vpop.f32.mrb[0].mxu0
        %3109 = vmatprep.mubr.f32.mxu0 %v2282
        %3110 = vmatmul.mubr.f32.gmra.mrb[0].mxu0 %v2170
        %v3111 = vpop.f32.mrb[0].mxu0
        %v3112 = vadd.f32 %v2887, %v3111
        %v3113 = vpop.f32.mrb[0].mxu0
        %3114 = vmatprep.mubr.f32.mxu0 %v2285
        %3115 = vmatmul.mubr.f32.gmra.mrb[0].mxu0 %v2173
        %v3116 = vpop.f32.mrb[0].mxu0
        %v3117 = vadd.f32 %v2892, %v3116
        %v3118 = vpop.f32.mrb[0].mxu0
        %3119 = vmatprep.mubr.f32.mxu0 %v2287
        %3120 = vmatmul.mubr.f32.gmra.mrb[0].mxu0 %v2175
        %v3121 = vpop.f32.mrb[0].mxu0
        %v3122 = vadd.f32 %v2897, %v3121
        %v3123 = vpop.f32.mrb[0].mxu0
        %3124 = vmatprep.mubr.f32.mxu0 %v2290
        %3125 = vmatmul.mubr.f32.gmra.mrb[0].mxu0 %v2178
        %v3126 = vpop.f32.mrb[0].mxu0
        %v3127 = vadd.f32 %v2902, %v3126
        %v3128 = vpop.f32.mrb[0].mxu0
        %3129 = vmatprep.mubr.f32.mxu0 %v2292
        %3130 = vmatmul.mubr.f32.gmra.mrb[0].mxu0 %v2180
        %v3131 = vpop.f32.mrb[0].mxu0
        %v3132 = vadd.f32 %v2907, %v3131
        %v3133 = vpop.f32.mrb[0].mxu0
        %3134 = vmatprep.mubr.f32.mxu0 %v2295
        %3135 = vmatmul.mubr.f32.gmra.mrb[0].mxu0 %v2183
        %v3136 = vpop.f32.mrb[0].mxu0
        %v3137 = vadd.f32 %v2912, %v3136
        %v3138 = vpop.f32.mrb[0].mxu0
        %3139 = vmatprep.mubr.f32.mxu0 %v2297
        %3140 = vmatmul.mubr.f32.gmra.mrb[0].mxu0 %v2185
        %v3141 = vpop.f32.mrb[0].mxu0
        %v3142 = vadd.f32 %v2917, %v3141
        %v3143 = vpop.f32.mrb[0].mxu0
        %3144 = vmatprep.mubr.f32.mxu0 %v2300
        %3145 = vmatmul.mubr.f32.gmra.mrb[0].mxu0 %v2188
        %v3146 = vpop.f32.mrb[0].mxu0
        %v3147 = vadd.f32 %v2922, %v3146
        %v3148 = vpop.f32.mrb[0].mxu0
        %3149 = vmatprep.mubr.f32.mxu0 %v2302
        %3150 = vmatmul.mubr.f32.gmra.mrb[0].mxu0 %v2190
        %v3151 = vpop.f32.mrb[0].mxu0
        %v3152 = vadd.f32 %v2927, %v3151
        %v3153 = vpop.f32.mrb[0].mxu0
        %3154 = vmatprep.mubr.f32.mxu0 %v2305
        %3155 = vmatmul.mubr.f32.gmra.mrb[0].mxu0 %v2193
        %v3156 = vpop.f32.mrb[0].mxu0
        %v3157 = vadd.f32 %v2932, %v3156
        %v3158 = vpop.f32.mrb[0].mxu0
        %3159 = vmatprep.mubr.f32.mxu0 %v2307
        %3160 = vmatmul.mubr.f32.gmra.mrb[0].mxu0 %v2195
        %v3161 = vpop.f32.mrb[0].mxu0
        %v3162 = vadd.f32 %v2937, %v3161
        %v3163 = vpop.f32.mrb[0].mxu0
        %3164 = vmatprep.mubr.f32.mxu0 %v2310
        %3165 = vmatmul.mubr.f32.gmra.mrb[0].mxu0 %v2198
        %v3166 = vpop.f32.mrb[0].mxu0
        %v3167 = vadd.f32 %v2942, %v3166
        %v3168 = vpop.f32.mrb[0].mxu0
        %3169 = vmatprep.mubr.f32.mxu0 %v2312
        %3170 = vmatmul.mubr.f32.gmra.mrb[0].mxu0 %v2200
        %v3171 = vpop.f32.mrb[0].mxu0
        %v3172 = vadd.f32 %v2947, %v3171
        %v3173 = vpop.f32.mrb[0].mxu0
        %3174 = vmatprep.mubr.f32.mxu0 %v2315
        %3175 = vmatmul.mubr.f32.gmra.mrb[0].mxu0 %v2203
        %v3176 = vpop.f32.mrb[0].mxu0
        %v3177 = vadd.f32 %v2952, %v3176
        %v3178 = vpop.f32.mrb[0].mxu0
        %3179 = vmatprep.mubr.f32.mxu0 %v2317
        %3180 = vmatmul.mubr.f32.gmra.mrb[0].mxu0 %v2205
        %v3181 = vpop.f32.mrb[0].mxu0
        %v3182 = vadd.f32 %v2957, %v3181
        %v3183 = vpop.f32.mrb[0].mxu0
        %3184 = vmatprep.mubr.f32.mxu0 %v2320
        %3185 = vmatmul.mubr.f32.gmra.mrb[0].mxu0 %v2208
        %v3186 = vpop.f32.mrb[0].mxu0
        %v3187 = vadd.f32 %v2962, %v3186
        %v3188 = vpop.f32.mrb[0].mxu0
        %3189 = vmatprep.mubr.f32.mxu0 %v2322
        %3190 = vmatmul.mubr.f32.gmra.mrb[0].mxu0 %v2210
        %v3191 = vpop.f32.mrb[0].mxu0
        %v3192 = vadd.f32 %v2967, %v3191
        %v3193 = vpop.f32.mrb[0].mxu0
        %3194 = vmatprep.mubr.f32.mxu0 %v2325
        %3195 = vmatmul.mubr.f32.gmra.mrb[0].mxu0 %v2213
        %v3196 = vpop.f32.mrb[0].mxu0
        %v3197 = vadd.f32 %v2972, %v3196
        %v3198 = vpop.f32.mrb[0].mxu0
        %3199 = vmatprep.mubr.f32.mxu0 %v2327
        %3200 = vmatmul.mubr.f32.gmra.mrb[0].mxu0 %v2215
        %v3201 = vpop.f32.mrb[0].mxu0
        %v3202 = vadd.f32 %v2977, %v3201
        %v3203 = vpop.f32.mrb[0].mxu0
        %3204 = vmatprep.mubr.f32.mxu0 %v2330
        %3205 = vmatmul.mubr.f32.gmra.mrb[0].mxu0 %v2218
        %v3206 = vpop.f32.mrb[0].mxu0
        %v3207 = vadd.f32 %v2982, %v3206
        %v3208 = vpop.f32.mrb[0].mxu0
        %3209 = vmatprep.mubr.f32.mxu0 %v2332
        %3210 = vmatmul.mubr.f32.gmra.mrb[0].mxu0 %v2220
        %v3211 = vpop.f32.mrb[0].mxu0
        %v3212 = vadd.f32 %v2987, %v3211
        %v3213 = vpop.f32.mrb[0].mxu0
        %3214 = vmatprep.mubr.f32.mxu0 %v2377
        %3215 = vmatmul.mubr.f32.gmra.mrb[0].mxu0 %v2370
        %v3216 = vpop.f32.mrb[0].mxu0
        %v3217 = vadd.f32 %v2992, %v3216
        %v3218 = vpop.f32.mrb[0].mxu0
        %3219 = vmatprep.mubr.f32.mxu0 %v2379
        %3220 = vmatmul.mubr.f32.gmra.mrb[0].mxu0 %v2372
        %v3221 = vpop.f32.mrb[0].mxu0
        %v3222 = vadd.f32 %v2997, %v3221
        %v3223 = vpop.f32.mrb[0].mxu0
        %3224 = vdwg.mxu0
        %3225 = vmatprep.subr.mxu0 0.0
        %3226 = vmatpush1.msra.mxu0 %v2495
        %3227 = vmatprep.subr.mxu0 0.0
        %3228 = vmatpush1.msra.mxu0 %v2496
        %3229 = vmatprep.subr.mxu0 0.0
        %3230 = vmatpush1.msra.mxu0 %v2497
        %3231 = vmatprep.subr.mxu0 0.0
        %3232 = vmatpush1.msra.mxu0 %v2498
        %3233 = vmatprep.subr.mxu0 0.0
        %3234 = vmatpush1.msra.mxu0 %v2499
        %3235 = vmatprep.subr.mxu0 0.0
        %3236 = vmatpush1.msra.mxu0 %v2500
        %3237 = vmatprep.subr.mxu0 0.0
        %3238 = vmatpush1.msra.mxu0 %v2501
        %3239 = vmatprep.subr.mxu0 0.0
        %3240 = vmatpush1.msra.mxu0 %v2502
        %3241 = vmatprep.subr.mxu0 0.0
        %3242 = vmatpush1.msra.mxu0 %v2503
        %3243 = vmatprep.subr.mxu0 0.0
        %3244 = vmatpush1.msra.mxu0 %v2504
        %3245 = vmatprep.subr.mxu0 0.0
        %3246 = vmatpush1.msra.mxu0 %v2505
        %3247 = vmatprep.subr.mxu0 0.0
        %3248 = vmatpush1.msra.mxu0 %v2506
        %3249 = vmatprep.subr.mxu0 0.0
        %3250 = vmatpush1.msra.mxu0 %v2507
        %3251 = vmatprep.subr.mxu0 0.0
        %3252 = vmatpush1.msra.mxu0 %v2508
        %3253 = vmatprep.subr.mxu0 0.0
        %3254 = vmatpush1.msra.mxu0 %v2509
        %3255 = vmatprep.subr.mxu0 0.0
        %3256 = vmatpush1.msra.mxu0 %v2510
        %3257 = vmatprep.subr.mxu0 0.0
        %3258 = vmatpush1.msra.mxu0 %v2511
        %3259 = vmatprep.subr.mxu0 0.0
        %3260 = vmatpush1.msra.mxu0 %v2512
        %3261 = vmatprep.subr.mxu0 0.0
        %3262 = vmatpush1.msra.mxu0 %v2513
        %3263 = vmatprep.subr.mxu0 0.0
        %3264 = vmatpush1.msra.mxu0 %v2514
        %3265 = vmatprep.subr.mxu0 0.0
        %3266 = vmatpush1.msra.mxu0 %v2515
        %3267 = vmatprep.subr.mxu0 0.0
        %3268 = vmatpush1.msra.mxu0 %v2516
        %3269 = vmatprep.subr.mxu0 0.0
        %3270 = vmatpush1.msra.mxu0 %v2517
        %3271 = vmatprep.subr.mxu0 0.0
        %3272 = vmatpush1.msra.mxu0 %v2518
        %3273 = vmatprep.subr.mxu0 0.0
        %3274 = vmatpush1.msra.mxu0 %v2519
        %3275 = vmatprep.subr.mxu0 0.0
        %3276 = vmatpush1.msra.mxu0 %v2520
        %3277 = vmatprep.subr.mxu0 0.0
        %3278 = vmatpush1.msra.mxu0 %v2521
        %3279 = vmatprep.subr.mxu0 0.0
        %3280 = vmatpush1.msra.mxu0 %v2522
        %3281 = vmatprep.subr.mxu0 0.0
        %3282 = vmatpush1.msra.mxu0 %v2523
        %3283 = vmatprep.subr.mxu0 0.0
        %3284 = vmatpush1.msra.mxu0 %v2524
        %3285 = vmatprep.subr.mxu0 0.0
        %3286 = vmatpush1.msra.mxu0 %v2525
        %3287 = vmatprep.subr.mxu0 0.0
        %3288 = vmatpush1.msra.mxu0 %v2526
        %3289 = vmatprep.mubr.f32.mxu0 %v2153
        %3290 = vmatmul.mubr.f32.gmra.mrb[0].mxu0 %v2045
        %v3291 = vpop.f32.mrb[0].mxu0
        %v3292 = vadd.f32 %v3067, %v3291
        %v3293 = vpop.f32.mrb[0].mxu0
        %3294 = vmatprep.mubr.f32.mxu0 %v2155
        %3295 = vmatmul.mubr.f32.gmra.mrb[0].mxu0 %v2046
        %v3296 = vpop.f32.mrb[0].mxu0
        %v3297 = vadd.f32 %v3072, %v3296
        %v3298 = vpop.f32.mrb[0].mxu0
        %3299 = vmatprep.mubr.f32.mxu0 %v2158
        %3300 = vmatmul.mubr.f32.gmra.mrb[0].mxu0 %v2048
        %v3301 = vpop.f32.mrb[0].mxu0
        %v3302 = vadd.f32 %v3077, %v3301
        %v3303 = vpop.f32.mrb[0].mxu0
        %3304 = vmatprep.mubr.f32.mxu0 %v2160
        %3305 = vmatmul.mubr.f32.gmra.mrb[0].mxu0 %v2049
        %v3306 = vpop.f32.mrb[0].mxu0
        %v3307 = vadd.f32 %v3082, %v3306
        %v3308 = vpop.f32.mrb[0].mxu0
        %3309 = vmatprep.mubr.f32.mxu0 %v2163
        %3310 = vmatmul.mubr.f32.gmra.mrb[0].mxu0 %v2051
        %v3311 = vpop.f32.mrb[0].mxu0
        %v3312 = vadd.f32 %v3087, %v3311
        %v3313 = vpop.f32.mrb[0].mxu0
        %3314 = vmatprep.mubr.f32.mxu0 %v2165
        %3315 = vmatmul.mubr.f32.gmra.mrb[0].mxu0 %v2052
        %v3316 = vpop.f32.mrb[0].mxu0
        %v3317 = vadd.f32 %v3092, %v3316
        %v3318 = vpop.f32.mrb[0].mxu0
        %3319 = vmatprep.mubr.f32.mxu0 %v2168
        %3320 = vmatmul.mubr.f32.gmra.mrb[0].mxu0 %v2054
        %v3321 = vpop.f32.mrb[0].mxu0
        %v3322 = vadd.f32 %v3097, %v3321
        %v3323 = vpop.f32.mrb[0].mxu0
        %3324 = vmatprep.mubr.f32.mxu0 %v2170
        %3325 = vmatmul.mubr.f32.gmra.mrb[0].mxu0 %v2055
        %v3326 = vpop.f32.mrb[0].mxu0
        %v3327 = vadd.f32 %v3102, %v3326
        %v3328 = vpop.f32.mrb[0].mxu0
        %3329 = vmatprep.mubr.f32.mxu0 %v2173
        %3330 = vmatmul.mubr.f32.gmra.mrb[0].mxu0 %v2057
        %v3331 = vpop.f32.mrb[0].mxu0
        %v3332 = vadd.f32 %v3107, %v3331
        %v3333 = vpop.f32.mrb[0].mxu0
        %3334 = vmatprep.mubr.f32.mxu0 %v2175
        %3335 = vmatmul.mubr.f32.gmra.mrb[0].mxu0 %v2058
        %v3336 = vpop.f32.mrb[0].mxu0
        %v3337 = vadd.f32 %v3112, %v3336
        %v3338 = vpop.f32.mrb[0].mxu0
        %3339 = vmatprep.mubr.f32.mxu0 %v2178
        %3340 = vmatmul.mubr.f32.gmra.mrb[0].mxu0 %v2060
        %v3341 = vpop.f32.mrb[0].mxu0
        %v3342 = vadd.f32 %v3117, %v3341
        %v3343 = vpop.f32.mrb[0].mxu0
        %3344 = vmatprep.mubr.f32.mxu0 %v2180
        %3345 = vmatmul.mubr.f32.gmra.mrb[0].mxu0 %v2061
        %v3346 = vpop.f32.mrb[0].mxu0
        %v3347 = vadd.f32 %v3122, %v3346
        %v3348 = vpop.f32.mrb[0].mxu0
        %3349 = vmatprep.mubr.f32.mxu0 %v2183
        %3350 = vmatmul.mubr.f32.gmra.mrb[0].mxu0 %v2063
        %v3351 = vpop.f32.mrb[0].mxu0
        %v3352 = vadd.f32 %v3127, %v3351
        %v3353 = vpop.f32.mrb[0].mxu0
        %3354 = vmatprep.mubr.f32.mxu0 %v2185
        %3355 = vmatmul.mubr.f32.gmra.mrb[0].mxu0 %v2064
        %v3356 = vpop.f32.mrb[0].mxu0
        %v3357 = vadd.f32 %v3132, %v3356
        %v3358 = vpop.f32.mrb[0].mxu0
        %3359 = vmatprep.mubr.f32.mxu0 %v2188
        %3360 = vmatmul.mubr.f32.gmra.mrb[0].mxu0 %v2066
        %v3361 = vpop.f32.mrb[0].mxu0
        %v3362 = vadd.f32 %v3137, %v3361
        %v3363 = vpop.f32.mrb[0].mxu0
        %3364 = vmatprep.mubr.f32.mxu0 %v2190
        %3365 = vmatmul.mubr.f32.gmra.mrb[0].mxu0 %v2067
        %v3366 = vpop.f32.mrb[0].mxu0
        %v3367 = vadd.f32 %v3142, %v3366
        %v3368 = vpop.f32.mrb[0].mxu0
        %3369 = vmatprep.mubr.f32.mxu0 %v2193
        %3370 = vmatmul.mubr.f32.gmra.mrb[0].mxu0 %v2069
        %v3371 = vpop.f32.mrb[0].mxu0
        %v3372 = vadd.f32 %v3147, %v3371
        %v3373 = vpop.f32.mrb[0].mxu0
        %3374 = vmatprep.mubr.f32.mxu0 %v2195
        %3375 = vmatmul.mubr.f32.gmra.mrb[0].mxu0 %v2070
        %v3376 = vpop.f32.mrb[0].mxu0
        %v3377 = vadd.f32 %v3152, %v3376
        %v3378 = vpop.f32.mrb[0].mxu0
        %3379 = vmatprep.mubr.f32.mxu0 %v2198
        %3380 = vmatmul.mubr.f32.gmra.mrb[0].mxu0 %v2072
        %v3381 = vpop.f32.mrb[0].mxu0
        %v3382 = vadd.f32 %v3157, %v3381
        %v3383 = vpop.f32.mrb[0].mxu0
        %3384 = vmatprep.mubr.f32.mxu0 %v2200
        %3385 = vmatmul.mubr.f32.gmra.mrb[0].mxu0 %v2073
        %v3386 = vpop.f32.mrb[0].mxu0
        %v3387 = vadd.f32 %v3162, %v3386
        %v3388 = vpop.f32.mrb[0].mxu0
        %3389 = vmatprep.mubr.f32.mxu0 %v2203
        %3390 = vmatmul.mubr.f32.gmra.mrb[0].mxu0 %v2075
        %v3391 = vpop.f32.mrb[0].mxu0
        %v3392 = vadd.f32 %v3167, %v3391
        %v3393 = vpop.f32.mrb[0].mxu0
        %3394 = vmatprep.mubr.f32.mxu0 %v2205
        %3395 = vmatmul.mubr.f32.gmra.mrb[0].mxu0 %v2076
        %v3396 = vpop.f32.mrb[0].mxu0
        %v3397 = vadd.f32 %v3172, %v3396
        %v3398 = vpop.f32.mrb[0].mxu0
        %3399 = vmatprep.mubr.f32.mxu0 %v2208
        %3400 = vmatmul.mubr.f32.gmra.mrb[0].mxu0 %v2078
        %v3401 = vpop.f32.mrb[0].mxu0
        %v3402 = vadd.f32 %v3177, %v3401
        %v3403 = vpop.f32.mrb[0].mxu0
        %3404 = vmatprep.mubr.f32.mxu0 %v2210
        %3405 = vmatmul.mubr.f32.gmra.mrb[0].mxu0 %v2079
        %v3406 = vpop.f32.mrb[0].mxu0
        %v3407 = vadd.f32 %v3182, %v3406
        %v3408 = vpop.f32.mrb[0].mxu0
        %3409 = vmatprep.mubr.f32.mxu0 %v2213
        %3410 = vmatmul.mubr.f32.gmra.mrb[0].mxu0 %v2081
        %v3411 = vpop.f32.mrb[0].mxu0
        %v3412 = vadd.f32 %v3187, %v3411
        %v3413 = vpop.f32.mrb[0].mxu0
        %3414 = vmatprep.mubr.f32.mxu0 %v2215
        %3415 = vmatmul.mubr.f32.gmra.mrb[0].mxu0 %v2082
        %v3416 = vpop.f32.mrb[0].mxu0
        %v3417 = vadd.f32 %v3192, %v3416
        %v3418 = vpop.f32.mrb[0].mxu0
        %3419 = vmatprep.mubr.f32.mxu0 %v2218
        %3420 = vmatmul.mubr.f32.gmra.mrb[0].mxu0 %v2084
        %v3421 = vpop.f32.mrb[0].mxu0
        %v3422 = vadd.f32 %v3197, %v3421
        %v3423 = vpop.f32.mrb[0].mxu0
        %3424 = vmatprep.mubr.f32.mxu0 %v2220
        %3425 = vmatmul.mubr.f32.gmra.mrb[0].mxu0 %v2085
        %v3426 = vpop.f32.mrb[0].mxu0
        %v3427 = vadd.f32 %v3202, %v3426
        %v3428 = vpop.f32.mrb[0].mxu0
        %3429 = vmatprep.mubr.f32.mxu0 %v2370
        %3430 = vmatmul.mubr.f32.gmra.mrb[0].mxu0 %v2087
        %v3431 = vpop.f32.mrb[0].mxu0
        %v3432 = vadd.f32 %v3207, %v3431
        %v3433 = vpop.f32.mrb[0].mxu0
        %3434 = vmatprep.mubr.f32.mxu0 %v2372
        %3435 = vmatmul.mubr.f32.gmra.mrb[0].mxu0 %v2088
        %v3436 = vpop.f32.mrb[0].mxu0
        %v3437 = vadd.f32 %v3212, %v3436
        %v3438 = vpop.f32.mrb[0].mxu0
        %3439 = vmatprep.mubr.f32.mxu0 %v2387
        %3440 = vmatmul.mubr.f32.gmra.mrb[0].mxu0 %v2090
        %v3441 = vpop.f32.mrb[0].mxu0
        %v3442 = vadd.f32 %v3217, %v3441
        %v3443 = vpop.f32.mrb[0].mxu0
        %3444 = vmatprep.mubr.f32.mxu0 %v2389
        %3445 = vmatmul.mubr.f32.gmra.mrb[0].mxu0 %v2091
        %v3446 = vpop.f32.mrb[0].mxu0
        %v3447 = vadd.f32 %v3222, %v3446
        %v3448 = vpop.f32.mrb[0].mxu0
        %3449 = vdwg.mxu0
        %3450 = vmatprep.subr.mxu0 0.0
        %3451 = vmatpush1.msra.mxu0 %v2527
        %3452 = vmatprep.subr.mxu0 0.0
        %3453 = vmatpush1.msra.mxu0 %v2528
        %3454 = vmatprep.subr.mxu0 0.0
        %3455 = vmatpush1.msra.mxu0 %v2529
        %3456 = vmatprep.subr.mxu0 0.0
        %3457 = vmatpush1.msra.mxu0 %v2530
        %3458 = vmatprep.subr.mxu0 0.0
        %3459 = vmatpush1.msra.mxu0 %v2531
        %3460 = vmatprep.subr.mxu0 0.0
        %3461 = vmatpush1.msra.mxu0 %v2532
        %3462 = vmatprep.subr.mxu0 0.0
        %3463 = vmatpush1.msra.mxu0 %v2533
        %3464 = vmatprep.subr.mxu0 0.0
        %3465 = vmatpush1.msra.mxu0 %v2534
        %3466 = vmatprep.subr.mxu0 0.0
        %3467 = vmatpush1.msra.mxu0 %v2535
        %3468 = vmatprep.subr.mxu0 0.0
        %3469 = vmatpush1.msra.mxu0 %v2536
        %3470 = vmatprep.subr.mxu0 0.0
        %3471 = vmatpush1.msra.mxu0 %v2537
        %3472 = vmatprep.subr.mxu0 0.0
        %3473 = vmatpush1.msra.mxu0 %v2538
        %3474 = vmatprep.subr.mxu0 0.0
        %3475 = vmatpush1.msra.mxu0 %v2539
        %3476 = vmatprep.subr.mxu0 0.0
        %3477 = vmatpush1.msra.mxu0 %v2540
        %3478 = vmatprep.subr.mxu0 0.0
        %3479 = vmatpush1.msra.mxu0 %v2541
        %3480 = vmatprep.subr.mxu0 0.0
        %3481 = vmatpush1.msra.mxu0 %v2542
        %3482 = vmatprep.subr.mxu0 0.0
        %3483 = vmatpush1.msra.mxu0 0.0
        %3484 = vmatprep.subr.mxu0 0.0
        %3485 = vmatpush1.msra.mxu0 0.0
        %3486 = vmatprep.subr.mxu0 0.0
        %3487 = vmatpush1.msra.mxu0 0.0
        %3488 = vmatprep.subr.mxu0 0.0
        %3489 = vmatpush1.msra.mxu0 0.0
        %3490 = vmatprep.subr.mxu0 0.0
        %3491 = vmatpush1.msra.mxu0 0.0
        %3492 = vmatprep.subr.mxu0 0.0
        %3493 = vmatpush1.msra.mxu0 0.0
        %3494 = vmatprep.subr.mxu0 0.0
        %3495 = vmatpush1.msra.mxu0 0.0
        %3496 = vmatprep.subr.mxu0 0.0
        %3497 = vmatpush1.msra.mxu0 0.0
        %3498 = vmatprep.subr.mxu0 0.0
        %3499 = vmatpush1.msra.mxu0 0.0
        %3500 = vmatprep.subr.mxu0 0.0
        %3501 = vmatpush1.msra.mxu0 0.0
        %3502 = vmatprep.subr.mxu0 0.0
        %3503 = vmatpush1.msra.mxu0 0.0
        %3504 = vmatprep.subr.mxu0 0.0
        %3505 = vmatpush1.msra.mxu0 0.0
        %3506 = vmatprep.subr.mxu0 0.0
        %3507 = vmatpush1.msra.mxu0 0.0
        %3508 = vmatprep.subr.mxu0 0.0
        %3509 = vmatpush1.msra.mxu0 0.0
        %3510 = vmatprep.subr.mxu0 0.0
        %3511 = vmatpush1.msra.mxu0 0.0
        %3512 = vmatprep.subr.mxu0 0.0
        %3513 = vmatpush1.msra.mxu0 0.0
        %3514 = vmatprep.mubr.f32.mxu0 0.0
        %3515 = vmatmul.mubr.f32.gmra.mrb[0].mxu0 %v2265
        %v3516 = vpop.f32.mrb[0].mxu0
        %v3517 = vadd.f32 %v3292, %v3516
        %v3518 = vpop.f32.mrb[0].mxu0
        %3519 = vmatprep.mubr.f32.mxu0 0.0
        %3520 = vmatmul.mubr.f32.gmra.mrb[0].mxu0 %v2267
        %v3521 = vpop.f32.mrb[0].mxu0
        %v3522 = vadd.f32 %v3297, %v3521
        %v3523 = vpop.f32.mrb[0].mxu0
        %3524 = vmatprep.mubr.f32.mxu0 0.0
        %3525 = vmatmul.mubr.f32.gmra.mrb[0].mxu0 %v2270
        %v3526 = vpop.f32.mrb[0].mxu0
        %v3527 = vadd.f32 %v3302, %v3526
        %v3528 = vpop.f32.mrb[0].mxu0
        %3529 = vmatprep.mubr.f32.mxu0 0.0
        %3530 = vmatmul.mubr.f32.gmra.mrb[0].mxu0 %v2272
        %v3531 = vpop.f32.mrb[0].mxu0
        %v3532 = vadd.f32 %v3307, %v3531
        %v3533 = vpop.f32.mrb[0].mxu0
        %3534 = vmatprep.mubr.f32.mxu0 0.0
        %3535 = vmatmul.mubr.f32.gmra.mrb[0].mxu0 %v2275
        %v3536 = vpop.f32.mrb[0].mxu0
        %v3537 = vadd.f32 %v3312, %v3536
        %v3538 = vpop.f32.mrb[0].mxu0
        %3539 = vmatprep.mubr.f32.mxu0 0.0
        %3540 = vmatmul.mubr.f32.gmra.mrb[0].mxu0 %v2277
        %v3541 = vpop.f32.mrb[0].mxu0
        %v3542 = vadd.f32 %v3317, %v3541
        %v3543 = vpop.f32.mrb[0].mxu0
        %3544 = vmatprep.mubr.f32.mxu0 0.0
        %3545 = vmatmul.mubr.f32.gmra.mrb[0].mxu0 %v2280
        %v3546 = vpop.f32.mrb[0].mxu0
        %v3547 = vadd.f32 %v3322, %v3546
        %v3548 = vpop.f32.mrb[0].mxu0
        %3549 = vmatprep.mubr.f32.mxu0 0.0
        %3550 = vmatmul.mubr.f32.gmra.mrb[0].mxu0 %v2282
        %v3551 = vpop.f32.mrb[0].mxu0
        %v3552 = vadd.f32 %v3327, %v3551
        %v3553 = vpop.f32.mrb[0].mxu0
        %3554 = vmatprep.mubr.f32.mxu0 0.0
        %3555 = vmatmul.mubr.f32.gmra.mrb[0].mxu0 %v2285
        %v3556 = vpop.f32.mrb[0].mxu0
        %v3557 = vadd.f32 %v3332, %v3556
        %v3558 = vpop.f32.mrb[0].mxu0
        %3559 = vmatprep.mubr.f32.mxu0 0.0
        %3560 = vmatmul.mubr.f32.gmra.mrb[0].mxu0 %v2287
        %v3561 = vpop.f32.mrb[0].mxu0
        %v3562 = vadd.f32 %v3337, %v3561
        %v3563 = vpop.f32.mrb[0].mxu0
        %3564 = vmatprep.mubr.f32.mxu0 0.0
        %3565 = vmatmul.mubr.f32.gmra.mrb[0].mxu0 %v2290
        %v3566 = vpop.f32.mrb[0].mxu0
        %v3567 = vadd.f32 %v3342, %v3566
        %v3568 = vpop.f32.mrb[0].mxu0
        %3569 = vmatprep.mubr.f32.mxu0 0.0
        %3570 = vmatmul.mubr.f32.gmra.mrb[0].mxu0 %v2292
        %v3571 = vpop.f32.mrb[0].mxu0
        %v3572 = vadd.f32 %v3347, %v3571
        %v3573 = vpop.f32.mrb[0].mxu0
        %3574 = vmatprep.mubr.f32.mxu0 0.0
        %3575 = vmatmul.mubr.f32.gmra.mrb[0].mxu0 %v2295
        %v3576 = vpop.f32.mrb[0].mxu0
        %v3577 = vadd.f32 %v3352, %v3576
        %v3578 = vpop.f32.mrb[0].mxu0
        %3579 = vmatprep.mubr.f32.mxu0 0.0
        %3580 = vmatmul.mubr.f32.gmra.mrb[0].mxu0 %v2297
        %v3581 = vpop.f32.mrb[0].mxu0
        %v3582 = vadd.f32 %v3357, %v3581
        %v3583 = vpop.f32.mrb[0].mxu0
        %3584 = vmatprep.mubr.f32.mxu0 0.0
        %3585 = vmatmul.mubr.f32.gmra.mrb[0].mxu0 %v2300
        %v3586 = vpop.f32.mrb[0].mxu0
        %v3587 = vadd.f32 %v3362, %v3586
        %v3588 = vpop.f32.mrb[0].mxu0
        %3589 = vmatprep.mubr.f32.mxu0 0.0
        %3590 = vmatmul.mubr.f32.gmra.mrb[0].mxu0 %v2302
        %v3591 = vpop.f32.mrb[0].mxu0
        %v3592 = vadd.f32 %v3367, %v3591
        %v3593 = vpop.f32.mrb[0].mxu0
        %3594 = vmatprep.mubr.f32.mxu0 0.0
        %3595 = vmatmul.mubr.f32.gmra.mrb[0].mxu0 %v2305
        %v3596 = vpop.f32.mrb[0].mxu0
        %v3597 = vadd.f32 %v3372, %v3596
        %v3598 = vpop.f32.mrb[0].mxu0
        %3599 = vmatprep.mubr.f32.mxu0 0.0
        %3600 = vmatmul.mubr.f32.gmra.mrb[0].mxu0 %v2307
        %v3601 = vpop.f32.mrb[0].mxu0
        %v3602 = vadd.f32 %v3377, %v3601
        %v3603 = vpop.f32.mrb[0].mxu0
        %3604 = vmatprep.mubr.f32.mxu0 0.0
        %3605 = vmatmul.mubr.f32.gmra.mrb[0].mxu0 %v2310
        %v3606 = vpop.f32.mrb[0].mxu0
        %v3607 = vadd.f32 %v3382, %v3606
        %v3608 = vpop.f32.mrb[0].mxu0
        %3609 = vmatprep.mubr.f32.mxu0 0.0
        %3610 = vmatmul.mubr.f32.gmra.mrb[0].mxu0 %v2312
        %v3611 = vpop.f32.mrb[0].mxu0
        %v3612 = vadd.f32 %v3387, %v3611
        %v3613 = vpop.f32.mrb[0].mxu0
        %3614 = vmatprep.mubr.f32.mxu0 0.0
        %3615 = vmatmul.mubr.f32.gmra.mrb[0].mxu0 %v2315
        %v3616 = vpop.f32.mrb[0].mxu0
        %v3617 = vadd.f32 %v3392, %v3616
        %v3618 = vpop.f32.mrb[0].mxu0
        %3619 = vmatprep.mubr.f32.mxu0 0.0
        %3620 = vmatmul.mubr.f32.gmra.mrb[0].mxu0 %v2317
        %v3621 = vpop.f32.mrb[0].mxu0
        %v3622 = vadd.f32 %v3397, %v3621
        %v3623 = vpop.f32.mrb[0].mxu0
        %3624 = vmatprep.mubr.f32.mxu0 0.0
        %3625 = vmatmul.mubr.f32.gmra.mrb[0].mxu0 %v2320
        %v3626 = vpop.f32.mrb[0].mxu0
        %v3627 = vadd.f32 %v3402, %v3626
        %v3628 = vpop.f32.mrb[0].mxu0
        %3629 = vmatprep.mubr.f32.mxu0 0.0
        %3630 = vmatmul.mubr.f32.gmra.mrb[0].mxu0 %v2322
        %v3631 = vpop.f32.mrb[0].mxu0
        %v3632 = vadd.f32 %v3407, %v3631
        %v3633 = vpop.f32.mrb[0].mxu0
        %3634 = vmatprep.mubr.f32.mxu0 0.0
        %3635 = vmatmul.mubr.f32.gmra.mrb[0].mxu0 %v2325
        %v3636 = vpop.f32.mrb[0].mxu0
        %v3637 = vadd.f32 %v3412, %v3636
        %v3638 = vpop.f32.mrb[0].mxu0
        %3639 = vmatprep.mubr.f32.mxu0 0.0
        %3640 = vmatmul.mubr.f32.gmra.mrb[0].mxu0 %v2327
        %v3641 = vpop.f32.mrb[0].mxu0
        %v3642 = vadd.f32 %v3417, %v3641
        %v3643 = vpop.f32.mrb[0].mxu0
        %3644 = vmatprep.mubr.f32.mxu0 0.0
        %3645 = vmatmul.mubr.f32.gmra.mrb[0].mxu0 %v2330
        %v3646 = vpop.f32.mrb[0].mxu0
        %v3647 = vadd.f32 %v3422, %v3646
        %v3648 = vpop.f32.mrb[0].mxu0
        %3649 = vmatprep.mubr.f32.mxu0 0.0
        %3650 = vmatmul.mubr.f32.gmra.mrb[0].mxu0 %v2332
        %v3651 = vpop.f32.mrb[0].mxu0
        %v3652 = vadd.f32 %v3427, %v3651
        %v3653 = vpop.f32.mrb[0].mxu0
        %3654 = vmatprep.mubr.f32.mxu0 0.0
        %3655 = vmatmul.mubr.f32.gmra.mrb[0].mxu0 %v2377
        %v3656 = vpop.f32.mrb[0].mxu0
        %v3657 = vadd.f32 %v3432, %v3656
        %v3658 = vpop.f32.mrb[0].mxu0
        %3659 = vmatprep.mubr.f32.mxu0 0.0
        %3660 = vmatmul.mubr.f32.gmra.mrb[0].mxu0 %v2379
        %v3661 = vpop.f32.mrb[0].mxu0
        %v3662 = vadd.f32 %v3437, %v3661
        %v3663 = vpop.f32.mrb[0].mxu0
        %3664 = vmatprep.mubr.f32.mxu0 0.0
        %3665 = vmatmul.mubr.f32.gmra.mrb[0].mxu0 %v2394
        %v3666 = vpop.f32.mrb[0].mxu0
        %v3667 = vadd.f32 %v3442, %v3666
        %v3668 = vpop.f32.mrb[0].mxu0
        %3669 = vmatprep.mubr.f32.mxu0 0.0
        %3670 = vmatmul.mubr.f32.gmra.mrb[0].mxu0 %v2396
        %v3671 = vpop.f32.mrb[0].mxu0
        %v3672 = vadd.f32 %v3447, %v3671
        %v3673 = vpop.f32.mrb[0].mxu0
        %3674 = vdwg.mxu0
        %v3675 = vadd.f32 %v407, %v3517
        %v3676 = vadd.f32 %v409, %v3522
        %v3677 = vadd.f32 %v412, %v3527
        %v3678 = vadd.f32 %v414, %v3532
        %v3679 = vadd.f32 %v417, %v3537
        %v3680 = vadd.f32 %v419, %v3542
        %v3681 = vadd.f32 %v422, %v3547
        %v3682 = vadd.f32 %v424, %v3552
        %v3683 = vadd.f32 %v427, %v3557
        %v3684 = vadd.f32 %v429, %v3562
        %v3685 = vadd.f32 %v432, %v3567
        %v3686 = vadd.f32 %v434, %v3572
        %v3687 = vadd.f32 %v437, %v3577
        %v3688 = vadd.f32 %v439, %v3582
        %v3689 = vadd.f32 %v442, %v3587
        %v3690 = vadd.f32 %v444, %v3592
        %v3691 = vadd.f32 %v447, %v3597
        %v3692 = vadd.f32 %v449, %v3602
        %v3693 = vadd.f32 %v452, %v3607
        %v3694 = vadd.f32 %v454, %v3612
        %v3695 = vadd.f32 %v457, %v3617
        %v3696 = vadd.f32 %v459, %v3622
        %v3697 = vadd.f32 %v462, %v3627
        %v3698 = vadd.f32 %v464, %v3632
        %v3699 = vadd.f32 %v467, %v3637
        %v3700 = vadd.f32 %v469, %v3642
        %v3701 = vadd.f32 %v472, %v3647
        %v3702 = vadd.f32 %v474, %v3652
        %v3703 = vadd.f32 %v477, %v3657
        %v3704 = vadd.f32 %v479, %v3662
        %v3705 = vadd.f32 %v630, %v3667
        %v3706 = vadd.f32 %v632, %v3672
        %v3707 = vmax.f32 %v3675, 0.0
        %v3708 = vmax.f32 %v3676, 0.0
        %v3709 = vmax.f32 %v3677, 0.0
        %v3710 = vmax.f32 %v3678, 0.0
        %v3711 = vmax.f32 %v3679, 0.0
        %v3712 = vmax.f32 %v3680, 0.0
        %v3713 = vmax.f32 %v3681, 0.0
        %v3714 = vmax.f32 %v3682, 0.0
        %v3715 = vmax.f32 %v3683, 0.0
        %v3716 = vmax.f32 %v3684, 0.0
        %v3717 = vmax.f32 %v3685, 0.0
        %v3718 = vmax.f32 %v3686, 0.0
        %v3719 = vmax.f32 %v3687, 0.0
        %v3720 = vmax.f32 %v3688, 0.0
        %v3721 = vmax.f32 %v3689, 0.0
        %v3722 = vmax.f32 %v3690, 0.0
        %v3723 = vmax.f32 %v3691, 0.0
        %v3724 = vmax.f32 %v3692, 0.0
        %v3725 = vmax.f32 %v3693, 0.0
        %v3726 = vmax.f32 %v3694, 0.0
        %v3727 = vmax.f32 %v3695, 0.0
        %v3728 = vmax.f32 %v3696, 0.0
        %v3729 = vmax.f32 %v3697, 0.0
        %v3730 = vmax.f32 %v3698, 0.0
        %v3731 = vmax.f32 %v3699, 0.0
        %v3732 = vmax.f32 %v3700, 0.0
        %v3733 = vmax.f32 %v3701, 0.0
        %v3734 = vmax.f32 %v3702, 0.0
        %v3735 = vmax.f32 %v3703, 0.0
        %v3736 = vmax.f32 %v3704, 0.0
        %v3737 = vmax.f32 %v3705, 0.0
        %v3738 = vmax.f32 %v3706, 0.0
        %3739 = vst [vmem:[%s296] sm:$0xff] %v3707
        %3740 = vst [vmem:[%s296 + $0x8] sm:$0xff] %v3708
        %3741 = vst [vmem:[%s296 + $0x10] sm:$0xff] %v3709
        %3742 = vst [vmem:[%s296 + $0x18] sm:$0xff] %v3710
        %3743 = vst [vmem:[%s296 + $0x20] sm:$0xff] %v3711
        %3744 = vst [vmem:[%s296 + $0x28] sm:$0xff] %v3712
        %3745 = vst [vmem:[%s296 + $0x30] sm:$0xff] %v3713
        %3746 = vst [vmem:[%s296 + $0x38] sm:$0xff] %v3714
        %3747 = vst [vmem:[%s296 + $0x40] sm:$0xff] %v3715
        %3748 = vst [vmem:[%s296 + $0x48] sm:$0xff] %v3716
        %3749 = vst [vmem:[%s296 + $0x50] sm:$0xff] %v3717
        %3750 = vst [vmem:[%s296 + $0x58] sm:$0xff] %v3718
        %3751 = vst [vmem:[%s296 + $0x60] sm:$0xff] %v3719
        %3752 = vst [vmem:[%s296 + $0x68] sm:$0xff] %v3720
        %3753 = vst [vmem:[%s296 + $0x70] sm:$0xff] %v3721
        %3754 = vst [vmem:[%s296 + $0x78] sm:$0xff] %v3722
        %3755 = vst [vmem:[%s296 + $0x80] sm:$0xff] %v3723
        %3756 = vst [vmem:[%s296 + $0x88] sm:$0xff] %v3724
        %3757 = vst [vmem:[%s296 + $0x90] sm:$0xff] %v3725
        %3758 = vst [vmem:[%s296 + $0x98] sm:$0xff] %v3726
        %3759 = vst [vmem:[%s296 + $0xa0] sm:$0xff] %v3727
        %3760 = vst [vmem:[%s296 + $0xa8] sm:$0xff] %v3728
        %3761 = vst [vmem:[%s296 + $0xb0] sm:$0xff] %v3729
        %3762 = vst [vmem:[%s296 + $0xb8] sm:$0xff] %v3730
        %3763 = vst [vmem:[%s296 + $0xc0] sm:$0xff] %v3731
        %3764 = vst [vmem:[%s296 + $0xc8] sm:$0xff] %v3732
        %3765 = vst [vmem:[%s296 + $0xd0] sm:$0xff] %v3733
        %3766 = vst [vmem:[%s296 + $0xd8] sm:$0xff] %v3734
        %3767 = vst [vmem:[%s296 + $0xe0] sm:$0xff] %v3735
        %3768 = vst [vmem:[%s296 + $0xe8] sm:$0xff] %v3736
        %3769 = vst [vmem:[%s296 + $0xf0] sm:$0xff] %v3737
        %3770 = vst [vmem:[%s296 + $0xf8] sm:$0xff] %v3738
        %s3771 = sand.u32 %s142, 1
        %s3772 = scalar_lea.sflag [#allocation5], %s3771
        %s3773 = sand.u32 %s142, 1
        %s3774 = smul.addr %s3773, 256
        %s3775 = scalar_lea.vmem [#allocation12], %s3774
        // Predicated region
        $region61: #{tpu_custom_call.1} parent=39 // pred_check
          %p3776 = pneg %p152
        $region62: #{tpu_custom_call.1} parent=39 // pred_check_branch
          %3778 = sbr.rel (%p3776) target = $region64
        $region63: #{tpu_custom_call.1} parent=39 // pred_region
          %s3780 = ssub.s32 4096, 4096
          %3781 = vsyncadd %s3772, %s3780
          %s3782 = smul.addr %s24, 32
          %s3783 = smul.addr %s3782, 128
          %s3784 = scalar_lea.hbm %s5, %s3783
          %s3785 = sshll.u32 %s3775, 4
          %s3786 = int_to_ptr.vmem [resolvable:$true] %s3785
          %3791 = dma.vmem_to_hbm [thread:$0]  %s3786, 4096, %s3784, %s3772, 128, 128, 8
        $region64: #{tpu_custom_call.1} parent=39 // pred_fallthru
          _
      $region40: #{tpu_custom_call.1} parent=5 // pred_fallthru
        _
      %p3792 = scmp.le.s32.totalorder 2, %s19
      // Predicated region
      $region65: #{tpu_custom_call.1} parent=5 // pred_check
        %p3793 = pneg %p3792
      $region66: #{tpu_custom_call.1} parent=5 // pred_check_branch
        %3795 = sbr.rel (%p3793) target = $region68
      $region67: #{tpu_custom_call.1} parent=5 // pred_region
        %s3796 = ssub.s32 %s19, 2
        // Predicated region
        $region69: #{tpu_custom_call.1} parent=67 // pred_check
          %p3797 = pneg %p158
        $region70: #{tpu_custom_call.1} parent=67 // pred_check_branch
          %3799 = sbr.rel (%p3797) target = $region72
        $region71: #{tpu_custom_call.1} parent=67 // pred_region
          %s3800 = sand.u32 %s143, 1
          %s3801 = scalar_lea.sflag [#allocation5], %s3800
          %s3802 = sand.u32 %s143, 1
          %s3803 = smul.addr %s3802, 256
          %s3804 = scalar_lea.vmem [#allocation12], %s3803
          %3805 = dma.done %s3801, 4096
        $region72: #{tpu_custom_call.1} parent=67 // pred_fallthru
          _
      $region68: #{tpu_custom_call.1} parent=5 // pred_fallthru
        _
    $region6: #{tpu_custom_call.1} parent=1 // loop_footer
      %s23 = sadd.s32 1, %s19
    $region7: #{tpu_custom_call.1} parent=1 // loop_footer_branch
      %18 = sbr.rel target = $region3
    $region8: #{tpu_custom_call.1} parent=1 // loop_exit
      _
    %3806 = vsyncpa [#allocation4], 1
    %s3807 = scalar_lea.sflag [#allocation4], 1
    %3808 = vsyncpa %s3807, 1
    %3809 = vsyncpa [#allocation7], 1
    %3810 = vsyncpa [#allocation10], 1
    %3811 = vsyncpa [#allocation5], 1
    %s3812 = scalar_lea.sflag [#allocation5], 1
    %3813 = vsyncpa %s3812, 1

</llo_original>
